<compile_context>
chip_gen: v6e
topology: v6e:2x2x1
jax: 0.10.0
libtpu: 0.0.40
codegen_flags: <defaults>
</compile_context>

<pallas_src>
import functools
import numpy as np

import jax
import jax.numpy as jnp
from jax import lax
from jax.experimental import pallas as pl
from jax.experimental.pallas import tpu as pltpu

START_TAG = "<START>"
STOP_TAG = "<STOP>"


# ----------------------------------------------------------------------------
# Fused kernel: BiLSTM -> hidden2tag -> Viterbi DP -> on-device backtrack
# (one batch tile of Bt sequences per grid step)
# ----------------------------------------------------------------------------
def _fused_bilstm_crf_kernel(
    # inputs
    xc_ref,      # (S*Bt, 2E)  row t*Bt+b = [x[b,t] | x[b,S-1-t]]
    wxc_ref,     # (2E, 8H)    block-structured input weights (gate-major cols)
    b_ref,       # (1, 8H)     combined biases (b_ih + b_hh per direction)
    whd_ref,     # (2H, 8H)    block-diagonal recurrent weights
    h0_ref,      # (Bt, 2H)    [h0_fwd | h0_bwd] per sequence
    c0_ref,      # (Bt, 2H)
    w2t_ref,     # (2H, T)     hidden2tag weight^T
    b2_ref,      # (1, T)
    trans_ref,   # (T, T)      transitions[next, prev]
    # outputs
    path_ref,    # (Bt, S) int32  decoded tag sequences
    score_ref,   # (Bt, 1) f32    viterbi path scores
    start_ref,   # (Bt, 1) int32  backpointer before step 0 (must equal START)
    # scratch
    xpre_scr,    # (S*Bt, 8H) f32 hoisted input projections
    hall_scr,    # (S*Bt, 2H) f32 bidirectional hidden states [fwd | bwd]
    feats_scr,   # (S*Bt, T)  f32 emission scores
    bptrs_scr,   # (S*Bt, T)  i32 viterbi backpointers
    *, start_idx, stop_idx,
):
    Bt, D2 = h0_ref.shape               # D2 = 2H
    H = D2 // 2
    GG = whd_ref.shape[1]                # 8H
    T = trans_ref.shape[0]
    rows = xc_ref.shape[0]
    S = rows // Bt

    # ---- 1. hoisted input projections: ONE (S*Bt, 2E)@(2E, 8H) GEMM covers both
    #         directions and all 4 gates (rows 0:E feed fwd columns with x[t],
    #         rows E:2E feed bwd columns with the already time-reversed x[S-1-t]).
    xpre_scr[...] = (
        jnp.dot(xc_ref[...], wxc_ref[...], preferred_element_type=jnp.float32)
        + b_ref[...]
    )

    whd = whd_ref[...]                                            # loop-invariant
    lane = lax.broadcasted_iota(jnp.int32, (Bt, GG), 1)
    g_mask = (lane >= 2 * D2) & (lane < 3 * D2)                   # g-gate lanes -> tanh

    # ---- 2. both LSTM directions for the whole batch tile in one recurrence.
    #         Gate-major column layout: [i | f | g | o], each 2H wide = [fwd | bwd],
    #         so every gate slice is already aligned with the (Bt, 2H) state.
    def lstm_step(s, carry):
        h, c = carry                                              # (Bt, 2H) each
        offf = pl.multiple_of(s * Bt, Bt)                         # fwd time = s
        offr = pl.multiple_of((S - 1 - s) * Bt, Bt)               # bwd time = S-1-s
        pre = (jnp.dot(h, whd, preferred_element_type=jnp.float32)
               + xpre_scr[pl.ds(offf, Bt), :])                    # (Bt, 8H)
        # full-width nonlinearities (2 EUP passes) + hoisted lane-mask select
        act = jnp.where(g_mask, jnp.tanh(pre), jax.nn.sigmoid(pre))
        i_g = act[:, 0:D2]
        f_g = act[:, D2:2 * D2]
        g_g = act[:, 2 * D2:3 * D2]
        o_g = act[:, 3 * D2:4 * D2]
        c_new = f_g * c + i_g * g_g
        h_new = o_g * jnp.tanh(c_new)
        hall_scr[pl.ds(offf, Bt), 0:H] = h_new[:, 0:H]            # h_fwd(t=s)
        hall_scr[pl.ds(offr, Bt), H:D2] = h_new[:, H:D2]          # h_bwd(t=S-1-s)
        return h_new, c_new

    lax.fori_loop(0, S, lstm_step, (h0_ref[...], c0_ref[...]), unroll=True)

    # ---- 3. hidden2tag: single (S*Bt, 2H)@(2H, T) GEMM, feats stay in VMEM
    feats_scr[...] = (
        jnp.dot(hall_scr[...], w2t_ref[...], preferred_element_type=jnp.float32)
        + b2_ref[...]
    )

    # ---- 4. Viterbi DP batched over the tile. fv is (Bt, T); prev tags live on
    #         the lane axis so the max reduces along lanes (no relayout needed).
    trans = trans_ref[...]                                        # (T, T)[next, prev]
    trans_rows = [trans[n:n + 1, :] for n in range(T)]            # hoisted (1, T) rows
    lane_t = lax.broadcasted_iota(jnp.int32, (Bt, T), 1)
    fv0 = jnp.where(lane_t == start_idx, 0.0, -10000.0).astype(jnp.float32)

    def vit_step(t, fv):
        off = pl.multiple_of(t * Bt, Bt)
        feat = feats_scr[pl.ds(off, Bt), :]                       # (Bt, T)
        fv_new = jnp.zeros_like(fv)
        bp_row = jnp.zeros_like(lane_t)
        for nxt in range(T):                                      # static, tiny T
            sc = fv + trans_rows[nxt]                             # (Bt, T) over prev
            m = jnp.max(sc, axis=1, keepdims=True)                # (Bt, 1)
            bp = jnp.min(jnp.where(sc == m, lane_t, T),
                         axis=1, keepdims=True)                   # first argmax on ties
            sel = lane_t == nxt
            fv_new = jnp.where(sel, m, fv_new)
            bp_row = jnp.where(sel, bp, bp_row)
        bptrs_scr[pl.ds(off, Bt), :] = bp_row
        return fv_new + feat                                      # new forward_var

    fv_final = lax.fori_loop(0, S, vit_step, fv0, unroll=True)    # (Bt, T)

    # ---- 5. terminal transition + best final tag (per sequence)
    term = fv_final + trans_rows[stop_idx]                        # (Bt, T)
    best = jnp.max(term, axis=1, keepdims=True)                   # (Bt, 1)
    score_ref[...] = best
    idx = jnp.min(jnp.where(term == best, lane_t, T),
                  axis=1, keepdims=True)                          # (Bt, 1) int32

    # ---- 6. on-device backtrack: path accumulated in a single (Bt, S) register,
    #         stored once; backpointer gathers stay in int32.
    lane_s = lax.broadcasted_iota(jnp.int32, (Bt, S), 1)
    path0 = jnp.where(lane_s == S - 1, idx, 0)                    # (Bt, S) int32

    def bt_step(k, carry):
        cur, path = carry                                         # (Bt,1), (Bt,S)
        t = S - 1 - k
        off = pl.multiple_of(t * Bt, Bt)
        row = bptrs_scr[pl.ds(off, Bt), :]                        # (Bt, T) int32
        prev = jnp.sum(jnp.where(lane_t == cur, row, 0),
                       axis=1, keepdims=True)                     # (Bt, 1) int32
        path = jnp.where(lane_s == t - 1, prev, path)
        return prev, path

    cur0, path_final = lax.fori_loop(0, S - 1, bt_step, (idx, path0), unroll=True)
    path_ref[...] = path_final

    row0 = bptrs_scr[pl.ds(0, Bt), :]
    start_ref[...] = jnp.sum(jnp.where(lane_t == cur0, row0, 0),
                             axis=1, keepdims=True)               # must equal START


# ----------------------------------------------------------------------------
# Python wrapper
# ----------------------------------------------------------------------------
def scibert_bilstm_crf_forward(x, p, start_idx, stop_idx, batch_tile=8):
    """Mirrors SciBert_BiLSTM_CRF.forward for a batch of sequences:
    LSTM features -> viterbi decode.  x: (B, S, E) synthetic SciBERT embeddings."""
    B, S, E = x.shape
    Bt = batch_tile
    assert B % Bt == 0, "batch must be a multiple of the batch tile"
    nt = B // Bt
    D2 = p["h0"].shape[1]               # 2H
    GG = p["whd"].shape[1]              # 8H
    T = p["b2"].shape[1]
    rows = S * Bt

    # Wrapper-side layout plumbing (free XLA ops): per tile, rows ordered (t, b),
    # each row = [x[b, t] | x[b, S-1-t]] so one GEMM covers both LSTM directions.
    xg = x.reshape(nt, Bt, S, E)
    xf = jnp.transpose(xg, (0, 2, 1, 3))                          # (nt, S, Bt, E)
    xr = jnp.transpose(xg[:, :, ::-1, :], (0, 2, 1, 3))           # time-reversed
    xc = jnp.concatenate([xf, xr], axis=-1).reshape(nt * rows, 2 * E)

    kernel = functools.partial(_fused_bilstm_crf_kernel,
                               start_idx=start_idx, stop_idx=stop_idx)

    grid_spec = pltpu.PrefetchScalarGridSpec(
        num_scalar_prefetch=0,
        grid=(nt,),
        in_specs=[
            pl.BlockSpec((rows, 2 * E), lambda i: (i, 0)),        # xc (per tile)
            pl.BlockSpec((2 * E, GG), lambda i: (0, 0)),          # wxc
            pl.BlockSpec((1, GG), lambda i: (0, 0)),              # bias
            pl.BlockSpec((D2, GG), lambda i: (0, 0)),             # whd
            pl.BlockSpec((Bt, D2), lambda i: (i, 0)),             # h0 (per tile)
            pl.BlockSpec((Bt, D2), lambda i: (i, 0)),             # c0 (per tile)
            pl.BlockSpec((D2, T), lambda i: (0, 0)),              # w2t
            pl.BlockSpec((1, T), lambda i: (0, 0)),               # b2
            pl.BlockSpec((T, T), lambda i: (0, 0)),               # transitions
        ],
        out_specs=(
            pl.BlockSpec((Bt, S), lambda i: (i, 0)),              # path
            pl.BlockSpec((Bt, 1), lambda i: (i, 0)),              # score
            pl.BlockSpec((Bt, 1), lambda i: (i, 0)),              # start check
        ),
        scratch_shapes=[
            pltpu.VMEM((rows, GG), jnp.float32),                  # xpre
            pltpu.VMEM((rows, D2), jnp.float32),                  # hidden states
            pltpu.VMEM((rows, T), jnp.float32),                   # feats
            pltpu.VMEM((rows, T), jnp.int32),                     # backpointers
        ],
    )

    path, score, start_tag = pl.pallas_call(
        kernel,
        out_shape=(jax.ShapeDtypeStruct((B, S), jnp.int32),
                   jax.ShapeDtypeStruct((B, 1), jnp.float32),
                   jax.ShapeDtypeStruct((B, 1), jnp.int32)),
        grid_spec=grid_spec,
        compiler_params=pltpu.CompilerParams(
            dimension_semantics=("parallel",)),                   # v7x: tile per TC
    )(xc, p["wxc"], p["b"], p["whd"], p["h0"], p["c0"],
      p["w2t"], p["b2"], p["transitions"])
    return path, score, start_tag


# ----------------------------------------------------------------------------
# Deterministic parameter construction (shapes follow the nn.Module __init__)
# ----------------------------------------------------------------------------
def init_params(key, embedding_dim, hidden_dim, tagset_size, start_idx, stop_idx,
                batch):
    H = hidden_dim // 2
    E = embedding_dim
    T = tagset_size
    D2 = 2 * H
    GG = 8 * H
    ks = jax.random.split(key, 16)
    s = 1.0 / np.sqrt(H)

    def uni(k, shape, bound):
        return jax.random.uniform(k, shape, jnp.float32, -bound, bound)

    # Per-direction nn.LSTM params (native gate order i,f,g,o), pre-transposed.
    wx_f = uni(ks[0], (E, 4 * H), s)
    wh_f = uni(ks[1], (H, 4 * H), s)
    b_f = uni(ks[2], (1, 4 * H), s) + uni(ks[3], (1, 4 * H), s)   # b_ih + b_hh
    wx_b = uni(ks[4], (E, 4 * H), s)
    wh_b = uni(ks[5], (H, 4 * H), s)
    b_b = uni(ks[6], (1, 4 * H), s) + uni(ks[7], (1, 4 * H), s)

    # Packed layouts used by the fused kernel.  Gate-major columns:
    #   cols [g*2H : g*2H+H]       = gate g, forward direction
    #   cols [g*2H+H : (g+1)*2H]   = gate g, backward direction
    # wxc rows 0:E are fed by x[t], rows E:2E by x[S-1-t] (block structure -> 1 GEMM);
    # whd rows 0:H are fed by h_fwd, rows H:2H by h_bwd    (block-diagonal recurrence).
    wxc = jnp.zeros((2 * E, GG), jnp.float32)
    whd = jnp.zeros((D2, GG), jnp.float32)
    b = jnp.zeros((1, GG), jnp.float32)
    for g in range(4):
        cf = slice(g * D2, g * D2 + H)
        cb = slice(g * D2 + H, (g + 1) * D2)
        gs = slice(g * H, (g + 1) * H)
        wxc = wxc.at[0:E, cf].set(wx_f[:, gs])
        wxc = wxc.at[E:2 * E, cb].set(wx_b[:, gs])
        whd = whd.at[0:H, cf].set(wh_f[:, gs])
        whd = whd.at[H:D2, cb].set(wh_b[:, gs])
        b = b.at[:, cf].set(b_f[:, gs])
        b = b.at[:, cb].set(b_b[:, gs])

    # init_hidden(): torch.randn(2, 1, H) per forward; here sampled once per sequence.
    h0 = jax.random.normal(ks[8], (batch, D2), jnp.float32)
    c0 = jax.random.normal(ks[9], (batch, D2), jnp.float32)

    # hidden2tag: Linear(hidden_dim, tagset_size)
    s2 = 1.0 / np.sqrt(hidden_dim)
    w2 = uni(ks[10], (T, hidden_dim), s2)
    b2 = uni(ks[11], (1, T), s2)

    # CRF transitions[next, prev]: randn, forbid transitions into START / out of STOP.
    transitions = jax.random.normal(ks[12], (T, T), jnp.float32)
    transitions = transitions.at[start_idx, :].set(-10000.0)
    transitions = transitions.at[:, stop_idx].set(-10000.0)

    return {
        "wxc": wxc, "whd": whd, "b": b, "h0": h0, "c0": c0,
        "w2t": w2.T, "b2": b2, "transitions": transitions,
    }


if __name__ == "__main__":
    tag_to_ix = {"B": 0, "I": 1, "O": 2, START_TAG: 3, STOP_TAG: 4}
    tagset_size = len(tag_to_ix)
    embedding_dim = 32
    hidden_dim = 32          # H = 16 per direction
    seq_len = 8
    batch = 16               # 16 sequences decoded in one fused pallas_call
    start_idx = tag_to_ix[START_TAG]
    stop_idx = tag_to_ix[STOP_TAG]

    key = jax.random.PRNGKey(0)
    k_emb, k_par = jax.random.split(key)

    # Synthetic stand-in for `scibert_out.view(seq_len, embedding_dim)` per sequence.
    x = jax.random.normal(k_emb, (batch, seq_len, embedding_dim), jnp.float32)
    params = init_params(k_par, embedding_dim, hidden_dim, tagset_size,
                         start_idx, stop_idx, batch)

    path, score, start_tag = scibert_bilstm_crf_forward(
        x, params, start_idx, stop_idx, batch_tile=8)
    jax.block_until_ready((path, score, start_tag))

    path_np = np.asarray(path)
    score_np = np.asarray(score)
    start_np = np.asarray(start_tag)

    assert path_np.shape == (batch, seq_len)
    assert np.all((path_np >= 0) & (path_np < tagset_size))
    assert np.all(np.isfinite(score_np))
    assert np.all(start_np[:, 0] == start_idx)   # same check as the PyTorch module
    print("KERNEL_OK")
</pallas_src>

<mosaic_0001>
module attributes {stable_mosaic.version = 11 : i64} {
  func.func @_fused_bilstm_crf_kernel(%arg0: i32, %arg1: memref<64x64xf32, #tpu.memory_space<vmem>>, %arg2: memref<64x128xf32, #tpu.memory_space<vmem>>, %arg3: memref<1x128xf32, #tpu.memory_space<vmem>>, %arg4: memref<32x128xf32, #tpu.memory_space<vmem>>, %arg5: memref<8x32xf32, #tpu.memory_space<vmem>>, %arg6: memref<8x32xf32, #tpu.memory_space<vmem>>, %arg7: memref<32x5xf32, #tpu.memory_space<vmem>>, %arg8: memref<1x5xf32, #tpu.memory_space<vmem>>, %arg9: memref<5x5xf32, #tpu.memory_space<vmem>>, %arg10: memref<8x8xi32, #tpu.memory_space<vmem>>, %arg11: memref<8x1xf32, #tpu.memory_space<vmem>>, %arg12: memref<8x1xi32, #tpu.memory_space<vmem>>, %arg13: memref<64x128xf32, #tpu.memory_space<vmem>>, %arg14: memref<64x32xf32, #tpu.memory_space<vmem>>, %arg15: memref<64x5xf32, #tpu.memory_space<vmem>>, %arg16: memref<64x5xi32, #tpu.memory_space<vmem>>) attributes {dimension_semantics = [#tpu.dimension_semantics<parallel>], iteration_bounds = array<i64: 2>, scalar_prefetch = 0 : i64, scratch_operands = 4 : i64, tpu.core_type = #tpu.core_type<tc>, window_params = [{transform_indices = @transform_0, window_bounds = array<i64: 64, 64>}, {pipeline_mode = #tpu.pipeline_mode<synchronous>, transform_indices = @transform_1, window_bounds = array<i64: 64, 128>}, {pipeline_mode = #tpu.pipeline_mode<synchronous>, transform_indices = @transform_2, window_bounds = array<i64: 1, 128>}, {pipeline_mode = #tpu.pipeline_mode<synchronous>, transform_indices = @transform_3, window_bounds = array<i64: 32, 128>}, {transform_indices = @transform_4, window_bounds = array<i64: 8, 32>}, {transform_indices = @transform_5, window_bounds = array<i64: 8, 32>}, {pipeline_mode = #tpu.pipeline_mode<synchronous>, transform_indices = @transform_6, window_bounds = array<i64: 32, 5>}, {pipeline_mode = #tpu.pipeline_mode<synchronous>, transform_indices = @transform_7, window_bounds = array<i64: 1, 5>}, {pipeline_mode = #tpu.pipeline_mode<synchronous>, transform_indices = @transform_8, window_bounds = array<i64: 5, 5>}, {transform_indices = @transform_9, window_bounds = array<i64: 8, 8>}, {transform_indices = @transform_10, window_bounds = array<i64: 8, 1>}, {transform_indices = @transform_11, window_bounds = array<i64: 8, 1>}]} {
    %c0 = arith.constant 0 : index
    %c0_0 = arith.constant 0 : index
    %0 = vector.load %arg1[%c0, %c0_0] : memref<64x64xf32, #tpu.memory_space<vmem>>, vector<64x64xf32>
    %c0_1 = arith.constant 0 : index
    %c0_2 = arith.constant 0 : index
    %1 = vector.load %arg2[%c0_1, %c0_2] : memref<64x128xf32, #tpu.memory_space<vmem>>, vector<64x128xf32>
    %cst = arith.constant dense<0.000000e+00> : vector<64x128xf32>
    %2 = tpu.matmul %0, %1, %cst {dimension_numbers = #tpu.dot_dimension_numbers<[1], [0], [0], [1], [0, 0, 1, 1], [], []>} : vector<64x64xf32>, vector<64x128xf32>, vector<64x128xf32> -> vector<64x128xf32>
    %c0_3 = arith.constant 0 : index
    %c0_4 = arith.constant 0 : index
    %3 = vector.load %arg3[%c0_3, %c0_4] : memref<1x128xf32, #tpu.memory_space<vmem>>, vector<1x128xf32>
    %4 = vector.broadcast %3 : vector<1x128xf32> to vector<64x128xf32>
    %5 = arith.addf %2, %4 : vector<64x128xf32>
    %c0_5 = arith.constant 0 : index
    %c0_6 = arith.constant 0 : index
    %6 = vector.load %arg13[%c0_5, %c0_6] : memref<64x128xf32, #tpu.memory_space<vmem>>, vector<64x128xf32>
    tpu.vector_store %arg13[%c0_5, %c0_6], %5 {strides = array<i32>} : memref<64x128xf32, #tpu.memory_space<vmem>>, vector<64x128xf32>,
    %c0_7 = arith.constant 0 : index
    %c0_8 = arith.constant 0 : index
    %7 = vector.load %arg4[%c0_7, %c0_8] : memref<32x128xf32, #tpu.memory_space<vmem>>, vector<32x128xf32>
    %8 = tpu.iota {dimensions = array<i32: 1>} : vector<8x128xi32>
    %c64_i32 = arith.constant 64 : i32
    %9 = vector.broadcast %c64_i32 : i32 to vector<8x128xi32>
    %10 = arith.cmpi sge, %8, %9 : vector<8x128xi32>
    %c96_i32 = arith.constant 96 : i32
    %11 = vector.broadcast %c96_i32 : i32 to vector<8x128xi32>
    %12 = arith.cmpi slt, %8, %11 : vector<8x128xi32>
    %13 = arith.andi %10, %12 : vector<8x128xi1>
    %c0_9 = arith.constant 0 : index
    %c0_10 = arith.constant 0 : index
    %14 = vector.load %arg5[%c0_9, %c0_10] : memref<8x32xf32, #tpu.memory_space<vmem>>, vector<8x32xf32>
    %c0_11 = arith.constant 0 : index
    %c0_12 = arith.constant 0 : index
    %15 = vector.load %arg6[%c0_11, %c0_12] : memref<8x32xf32, #tpu.memory_space<vmem>>, vector<8x32xf32>
    %c0_i32 = arith.constant 0 : i32
    %c8_i32 = arith.constant 8 : i32
    %16 = arith.muli %c0_i32, %c8_i32 : i32
    %17 = tpu.assume_multiple %16, 8 : i32
    %c7_i32 = arith.constant 7 : i32
    %18 = arith.subi %c7_i32, %c0_i32 : i32
    %c8_i32_13 = arith.constant 8 : i32
    %19 = arith.muli %18, %c8_i32_13 : i32
    %20 = tpu.assume_multiple %19, 8 : i32
    %cst_14 = arith.constant dense<0.000000e+00> : vector<8x128xf32>
    %21 = tpu.matmul %14, %7, %cst_14 {dimension_numbers = #tpu.dot_dimension_numbers<[1], [0], [0], [1], [0, 0, 1, 1], [], []>} : vector<8x32xf32>, vector<32x128xf32>, vector<8x128xf32> -> vector<8x128xf32>
    %22 = arith.index_cast %17 : i32 to index
    %c0_15 = arith.constant 0 : index
    %23 = vector.load %arg13[%22, %c0_15] : memref<64x128xf32, #tpu.memory_space<vmem>>, vector<8x128xf32>
    %24 = arith.addf %21, %23 : vector<8x128xf32>
    %25 = math.tanh %24 : vector<8x128xf32>
    %26 = arith.negf %24 : vector<8x128xf32>
    %27 = math.exp %26 : vector<8x128xf32>
    %cst_16 = arith.constant 1.000000e+00 : f32
    %28 = vector.broadcast %cst_16 : f32 to vector<8x128xf32>
    %29 = arith.addf %28, %27 : vector<8x128xf32>
    %30 = arith.divf %28, %29 : vector<8x128xf32>
    %31 = arith.select %13, %25, %30 : vector<8x128xi1>, vector<8x128xf32>
    %32 = vector.extract_strided_slice %31 {offsets = [0, 0], sizes = [8, 32], strides = [1, 1]} : vector<8x128xf32> to vector<8x32xf32>
    %33 = vector.extract_strided_slice %31 {offsets = [0, 32], sizes = [8, 32], strides = [1, 1]} : vector<8x128xf32> to vector<8x32xf32>
    %34 = vector.extract_strided_slice %31 {offsets = [0, 64], sizes = [8, 32], strides = [1, 1]} : vector<8x128xf32> to vector<8x32xf32>
    %35 = vector.extract_strided_slice %31 {offsets = [0, 96], sizes = [8, 32], strides = [1, 1]} : vector<8x128xf32> to vector<8x32xf32>
    %36 = arith.mulf %33, %15 : vector<8x32xf32>
    %37 = arith.mulf %32, %34 : vector<8x32xf32>
    %38 = arith.addf %36, %37 : vector<8x32xf32>
    %39 = math.tanh %38 : vector<8x32xf32>
    %40 = arith.mulf %35, %39 : vector<8x32xf32>
    %41 = vector.extract_strided_slice %40 {offsets = [0, 0], sizes = [8, 16], strides = [1, 1]} : vector<8x32xf32> to vector<8x16xf32>
    %42 = arith.index_cast %17 : i32 to index
    %c0_17 = arith.constant 0 : index
    %43 = vector.load %arg14[%42, %c0_17] : memref<64x32xf32, #tpu.memory_space<vmem>>, vector<8x16xf32>
    tpu.vector_store %arg14[%42, %c0_17], %41 {strides = array<i32>} : memref<64x32xf32, #tpu.memory_space<vmem>>, vector<8x16xf32>,
    %44 = vector.extract_strided_slice %40 {offsets = [0, 16], sizes = [8, 16], strides = [1, 1]} : vector<8x32xf32> to vector<8x16xf32>
    %45 = arith.index_cast %20 : i32 to index
    %c16 = arith.constant 16 : index
    %46 = vector.load %arg14[%45, %c16] : memref<64x32xf32, #tpu.memory_space<vmem>>, vector<8x16xf32>
    tpu.vector_store %arg14[%45, %c16], %44 {strides = array<i32>} : memref<64x32xf32, #tpu.memory_space<vmem>>, vector<8x16xf32>,
    %c1_i32 = arith.constant 1 : i32
    %c8_i32_18 = arith.constant 8 : i32
    %47 = arith.muli %c1_i32, %c8_i32_18 : i32
    %48 = tpu.assume_multiple %47, 8 : i32
    %c7_i32_19 = arith.constant 7 : i32
    %49 = arith.subi %c7_i32_19, %c1_i32 : i32
    %c8_i32_20 = arith.constant 8 : i32
    %50 = arith.muli %49, %c8_i32_20 : i32
    %51 = tpu.assume_multiple %50, 8 : i32
    %cst_21 = arith.constant dense<0.000000e+00> : vector<8x128xf32>
    %52 = tpu.matmul %40, %7, %cst_21 {dimension_numbers = #tpu.dot_dimension_numbers<[1], [0], [0], [1], [0, 0, 1, 1], [], []>} : vector<8x32xf32>, vector<32x128xf32>, vector<8x128xf32> -> vector<8x128xf32>
    %53 = arith.index_cast %48 : i32 to index
    %c0_22 = arith.constant 0 : index
    %54 = vector.load %arg13[%53, %c0_22] : memref<64x128xf32, #tpu.memory_space<vmem>>, vector<8x128xf32>
    %55 = arith.addf %52, %54 : vector<8x128xf32>
    %56 = math.tanh %55 : vector<8x128xf32>
    %57 = arith.negf %55 : vector<8x128xf32>
    %58 = math.exp %57 : vector<8x128xf32>
    %cst_23 = arith.constant 1.000000e+00 : f32
    %59 = vector.broadcast %cst_23 : f32 to vector<8x128xf32>
    %60 = arith.addf %59, %58 : vector<8x128xf32>
    %61 = arith.divf %59, %60 : vector<8x128xf32>
    %62 = arith.select %13, %56, %61 : vector<8x128xi1>, vector<8x128xf32>
    %63 = vector.extract_strided_slice %62 {offsets = [0, 0], sizes = [8, 32], strides = [1, 1]} : vector<8x128xf32> to vector<8x32xf32>
    %64 = vector.extract_strided_slice %62 {offsets = [0, 32], sizes = [8, 32], strides = [1, 1]} : vector<8x128xf32> to vector<8x32xf32>
    %65 = vector.extract_strided_slice %62 {offsets = [0, 64], sizes = [8, 32], strides = [1, 1]} : vector<8x128xf32> to vector<8x32xf32>
    %66 = vector.extract_strided_slice %62 {offsets = [0, 96], sizes = [8, 32], strides = [1, 1]} : vector<8x128xf32> to vector<8x32xf32>
    %67 = arith.mulf %64, %38 : vector<8x32xf32>
    %68 = arith.mulf %63, %65 : vector<8x32xf32>
    %69 = arith.addf %67, %68 : vector<8x32xf32>
    %70 = math.tanh %69 : vector<8x32xf32>
    %71 = arith.mulf %66, %70 : vector<8x32xf32>
    %72 = vector.extract_strided_slice %71 {offsets = [0, 0], sizes = [8, 16], strides = [1, 1]} : vector<8x32xf32> to vector<8x16xf32>
    %73 = arith.index_cast %48 : i32 to index
    %c0_24 = arith.constant 0 : index
    %74 = vector.load %arg14[%73, %c0_24] : memref<64x32xf32, #tpu.memory_space<vmem>>, vector<8x16xf32>
    tpu.vector_store %arg14[%73, %c0_24], %72 {strides = array<i32>} : memref<64x32xf32, #tpu.memory_space<vmem>>, vector<8x16xf32>,
    %75 = vector.extract_strided_slice %71 {offsets = [0, 16], sizes = [8, 16], strides = [1, 1]} : vector<8x32xf32> to vector<8x16xf32>
    %76 = arith.index_cast %51 : i32 to index
    %c16_25 = arith.constant 16 : index
    %77 = vector.load %arg14[%76, %c16_25] : memref<64x32xf32, #tpu.memory_space<vmem>>, vector<8x16xf32>
    tpu.vector_store %arg14[%76, %c16_25], %75 {strides = array<i32>} : memref<64x32xf32, #tpu.memory_space<vmem>>, vector<8x16xf32>,
    %c2_i32 = arith.constant 2 : i32
    %c8_i32_26 = arith.constant 8 : i32
    %78 = arith.muli %c2_i32, %c8_i32_26 : i32
    %79 = tpu.assume_multiple %78, 8 : i32
    %c7_i32_27 = arith.constant 7 : i32
    %80 = arith.subi %c7_i32_27, %c2_i32 : i32
    %c8_i32_28 = arith.constant 8 : i32
    %81 = arith.muli %80, %c8_i32_28 : i32
    %82 = tpu.assume_multiple %81, 8 : i32
    %cst_29 = arith.constant dense<0.000000e+00> : vector<8x128xf32>
    %83 = tpu.matmul %71, %7, %cst_29 {dimension_numbers = #tpu.dot_dimension_numbers<[1], [0], [0], [1], [0, 0, 1, 1], [], []>} : vector<8x32xf32>, vector<32x128xf32>, vector<8x128xf32> -> vector<8x128xf32>
    %84 = arith.index_cast %79 : i32 to index
    %c0_30 = arith.constant 0 : index
    %85 = vector.load %arg13[%84, %c0_30] : memref<64x128xf32, #tpu.memory_space<vmem>>, vector<8x128xf32>
    %86 = arith.addf %83, %85 : vector<8x128xf32>
    %87 = math.tanh %86 : vector<8x128xf32>
    %88 = arith.negf %86 : vector<8x128xf32>
    %89 = math.exp %88 : vector<8x128xf32>
    %cst_31 = arith.constant 1.000000e+00 : f32
    %90 = vector.broadcast %cst_31 : f32 to vector<8x128xf32>
    %91 = arith.addf %90, %89 : vector<8x128xf32>
    %92 = arith.divf %90, %91 : vector<8x128xf32>
    %93 = arith.select %13, %87, %92 : vector<8x128xi1>, vector<8x128xf32>
    %94 = vector.extract_strided_slice %93 {offsets = [0, 0], sizes = [8, 32], strides = [1, 1]} : vector<8x128xf32> to vector<8x32xf32>
    %95 = vector.extract_strided_slice %93 {offsets = [0, 32], sizes = [8, 32], strides = [1, 1]} : vector<8x128xf32> to vector<8x32xf32>
    %96 = vector.extract_strided_slice %93 {offsets = [0, 64], sizes = [8, 32], strides = [1, 1]} : vector<8x128xf32> to vector<8x32xf32>
    %97 = vector.extract_strided_slice %93 {offsets = [0, 96], sizes = [8, 32], strides = [1, 1]} : vector<8x128xf32> to vector<8x32xf32>
    %98 = arith.mulf %95, %69 : vector<8x32xf32>
    %99 = arith.mulf %94, %96 : vector<8x32xf32>
    %100 = arith.addf %98, %99 : vector<8x32xf32>
    %101 = math.tanh %100 : vector<8x32xf32>
    %102 = arith.mulf %97, %101 : vector<8x32xf32>
    %103 = vector.extract_strided_slice %102 {offsets = [0, 0], sizes = [8, 16], strides = [1, 1]} : vector<8x32xf32> to vector<8x16xf32>
    %104 = arith.index_cast %79 : i32 to index
    %c0_32 = arith.constant 0 : index
    %105 = vector.load %arg14[%104, %c0_32] : memref<64x32xf32, #tpu.memory_space<vmem>>, vector<8x16xf32>
    tpu.vector_store %arg14[%104, %c0_32], %103 {strides = array<i32>} : memref<64x32xf32, #tpu.memory_space<vmem>>, vector<8x16xf32>,
    %106 = vector.extract_strided_slice %102 {offsets = [0, 16], sizes = [8, 16], strides = [1, 1]} : vector<8x32xf32> to vector<8x16xf32>
    %107 = arith.index_cast %82 : i32 to index
    %c16_33 = arith.constant 16 : index
    %108 = vector.load %arg14[%107, %c16_33] : memref<64x32xf32, #tpu.memory_space<vmem>>, vector<8x16xf32>
    tpu.vector_store %arg14[%107, %c16_33], %106 {strides = array<i32>} : memref<64x32xf32, #tpu.memory_space<vmem>>, vector<8x16xf32>,
    %c3_i32 = arith.constant 3 : i32
    %c8_i32_34 = arith.constant 8 : i32
    %109 = arith.muli %c3_i32, %c8_i32_34 : i32
    %110 = tpu.assume_multiple %109, 8 : i32
    %c7_i32_35 = arith.constant 7 : i32
    %111 = arith.subi %c7_i32_35, %c3_i32 : i32
    %c8_i32_36 = arith.constant 8 : i32
    %112 = arith.muli %111, %c8_i32_36 : i32
    %113 = tpu.assume_multiple %112, 8 : i32
    %cst_37 = arith.constant dense<0.000000e+00> : vector<8x128xf32>
    %114 = tpu.matmul %102, %7, %cst_37 {dimension_numbers = #tpu.dot_dimension_numbers<[1], [0], [0], [1], [0, 0, 1, 1], [], []>} : vector<8x32xf32>, vector<32x128xf32>, vector<8x128xf32> -> vector<8x128xf32>
    %115 = arith.index_cast %110 : i32 to index
    %c0_38 = arith.constant 0 : index
    %116 = vector.load %arg13[%115, %c0_38] : memref<64x128xf32, #tpu.memory_space<vmem>>, vector<8x128xf32>
    %117 = arith.addf %114, %116 : vector<8x128xf32>
    %118 = math.tanh %117 : vector<8x128xf32>
    %119 = arith.negf %117 : vector<8x128xf32>
    %120 = math.exp %119 : vector<8x128xf32>
    %cst_39 = arith.constant 1.000000e+00 : f32
    %121 = vector.broadcast %cst_39 : f32 to vector<8x128xf32>
    %122 = arith.addf %121, %120 : vector<8x128xf32>
    %123 = arith.divf %121, %122 : vector<8x128xf32>
    %124 = arith.select %13, %118, %123 : vector<8x128xi1>, vector<8x128xf32>
    %125 = vector.extract_strided_slice %124 {offsets = [0, 0], sizes = [8, 32], strides = [1, 1]} : vector<8x128xf32> to vector<8x32xf32>
    %126 = vector.extract_strided_slice %124 {offsets = [0, 32], sizes = [8, 32], strides = [1, 1]} : vector<8x128xf32> to vector<8x32xf32>
    %127 = vector.extract_strided_slice %124 {offsets = [0, 64], sizes = [8, 32], strides = [1, 1]} : vector<8x128xf32> to vector<8x32xf32>
    %128 = vector.extract_strided_slice %124 {offsets = [0, 96], sizes = [8, 32], strides = [1, 1]} : vector<8x128xf32> to vector<8x32xf32>
    %129 = arith.mulf %126, %100 : vector<8x32xf32>
    %130 = arith.mulf %125, %127 : vector<8x32xf32>
    %131 = arith.addf %129, %130 : vector<8x32xf32>
    %132 = math.tanh %131 : vector<8x32xf32>
    %133 = arith.mulf %128, %132 : vector<8x32xf32>
    %134 = vector.extract_strided_slice %133 {offsets = [0, 0], sizes = [8, 16], strides = [1, 1]} : vector<8x32xf32> to vector<8x16xf32>
    %135 = arith.index_cast %110 : i32 to index
    %c0_40 = arith.constant 0 : index
    %136 = vector.load %arg14[%135, %c0_40] : memref<64x32xf32, #tpu.memory_space<vmem>>, vector<8x16xf32>
    tpu.vector_store %arg14[%135, %c0_40], %134 {strides = array<i32>} : memref<64x32xf32, #tpu.memory_space<vmem>>, vector<8x16xf32>,
    %137 = vector.extract_strided_slice %133 {offsets = [0, 16], sizes = [8, 16], strides = [1, 1]} : vector<8x32xf32> to vector<8x16xf32>
    %138 = arith.index_cast %113 : i32 to index
    %c16_41 = arith.constant 16 : index
    %139 = vector.load %arg14[%138, %c16_41] : memref<64x32xf32, #tpu.memory_space<vmem>>, vector<8x16xf32>
    tpu.vector_store %arg14[%138, %c16_41], %137 {strides = array<i32>} : memref<64x32xf32, #tpu.memory_space<vmem>>, vector<8x16xf32>,
    %c4_i32 = arith.constant 4 : i32
    %c8_i32_42 = arith.constant 8 : i32
    %140 = arith.muli %c4_i32, %c8_i32_42 : i32
    %141 = tpu.assume_multiple %140, 8 : i32
    %c7_i32_43 = arith.constant 7 : i32
    %142 = arith.subi %c7_i32_43, %c4_i32 : i32
    %c8_i32_44 = arith.constant 8 : i32
    %143 = arith.muli %142, %c8_i32_44 : i32
    %144 = tpu.assume_multiple %143, 8 : i32
    %cst_45 = arith.constant dense<0.000000e+00> : vector<8x128xf32>
    %145 = tpu.matmul %133, %7, %cst_45 {dimension_numbers = #tpu.dot_dimension_numbers<[1], [0], [0], [1], [0, 0, 1, 1], [], []>} : vector<8x32xf32>, vector<32x128xf32>, vector<8x128xf32> -> vector<8x128xf32>
    %146 = arith.index_cast %141 : i32 to index
    %c0_46 = arith.constant 0 : index
    %147 = vector.load %arg13[%146, %c0_46] : memref<64x128xf32, #tpu.memory_space<vmem>>, vector<8x128xf32>
    %148 = arith.addf %145, %147 : vector<8x128xf32>
    %149 = math.tanh %148 : vector<8x128xf32>
    %150 = arith.negf %148 : vector<8x128xf32>
    %151 = math.exp %150 : vector<8x128xf32>
    %cst_47 = arith.constant 1.000000e+00 : f32
    %152 = vector.broadcast %cst_47 : f32 to vector<8x128xf32>
    %153 = arith.addf %152, %151 : vector<8x128xf32>
    %154 = arith.divf %152, %153 : vector<8x128xf32>
    %155 = arith.select %13, %149, %154 : vector<8x128xi1>, vector<8x128xf32>
    %156 = vector.extract_strided_slice %155 {offsets = [0, 0], sizes = [8, 32], strides = [1, 1]} : vector<8x128xf32> to vector<8x32xf32>
    %157 = vector.extract_strided_slice %155 {offsets = [0, 32], sizes = [8, 32], strides = [1, 1]} : vector<8x128xf32> to vector<8x32xf32>
    %158 = vector.extract_strided_slice %155 {offsets = [0, 64], sizes = [8, 32], strides = [1, 1]} : vector<8x128xf32> to vector<8x32xf32>
    %159 = vector.extract_strided_slice %155 {offsets = [0, 96], sizes = [8, 32], strides = [1, 1]} : vector<8x128xf32> to vector<8x32xf32>
    %160 = arith.mulf %157, %131 : vector<8x32xf32>
    %161 = arith.mulf %156, %158 : vector<8x32xf32>
    %162 = arith.addf %160, %161 : vector<8x32xf32>
    %163 = math.tanh %162 : vector<8x32xf32>
    %164 = arith.mulf %159, %163 : vector<8x32xf32>
    %165 = vector.extract_strided_slice %164 {offsets = [0, 0], sizes = [8, 16], strides = [1, 1]} : vector<8x32xf32> to vector<8x16xf32>
    %166 = arith.index_cast %141 : i32 to index
    %c0_48 = arith.constant 0 : index
    %167 = vector.load %arg14[%166, %c0_48] : memref<64x32xf32, #tpu.memory_space<vmem>>, vector<8x16xf32>
    tpu.vector_store %arg14[%166, %c0_48], %165 {strides = array<i32>} : memref<64x32xf32, #tpu.memory_space<vmem>>, vector<8x16xf32>,
    %168 = vector.extract_strided_slice %164 {offsets = [0, 16], sizes = [8, 16], strides = [1, 1]} : vector<8x32xf32> to vector<8x16xf32>
    %169 = arith.index_cast %144 : i32 to index
    %c16_49 = arith.constant 16 : index
    %170 = vector.load %arg14[%169, %c16_49] : memref<64x32xf32, #tpu.memory_space<vmem>>, vector<8x16xf32>
    tpu.vector_store %arg14[%169, %c16_49], %168 {strides = array<i32>} : memref<64x32xf32, #tpu.memory_space<vmem>>, vector<8x16xf32>,
    %c5_i32 = arith.constant 5 : i32
    %c8_i32_50 = arith.constant 8 : i32
    %171 = arith.muli %c5_i32, %c8_i32_50 : i32
    %172 = tpu.assume_multiple %171, 8 : i32
    %c7_i32_51 = arith.constant 7 : i32
    %173 = arith.subi %c7_i32_51, %c5_i32 : i32
    %c8_i32_52 = arith.constant 8 : i32
    %174 = arith.muli %173, %c8_i32_52 : i32
    %175 = tpu.assume_multiple %174, 8 : i32
    %cst_53 = arith.constant dense<0.000000e+00> : vector<8x128xf32>
    %176 = tpu.matmul %164, %7, %cst_53 {dimension_numbers = #tpu.dot_dimension_numbers<[1], [0], [0], [1], [0, 0, 1, 1], [], []>} : vector<8x32xf32>, vector<32x128xf32>, vector<8x128xf32> -> vector<8x128xf32>
    %177 = arith.index_cast %172 : i32 to index
    %c0_54 = arith.constant 0 : index
    %178 = vector.load %arg13[%177, %c0_54] : memref<64x128xf32, #tpu.memory_space<vmem>>, vector<8x128xf32>
    %179 = arith.addf %176, %178 : vector<8x128xf32>
    %180 = math.tanh %179 : vector<8x128xf32>
    %181 = arith.negf %179 : vector<8x128xf32>
    %182 = math.exp %181 : vector<8x128xf32>
    %cst_55 = arith.constant 1.000000e+00 : f32
    %183 = vector.broadcast %cst_55 : f32 to vector<8x128xf32>
    %184 = arith.addf %183, %182 : vector<8x128xf32>
    %185 = arith.divf %183, %184 : vector<8x128xf32>
    %186 = arith.select %13, %180, %185 : vector<8x128xi1>, vector<8x128xf32>
    %187 = vector.extract_strided_slice %186 {offsets = [0, 0], sizes = [8, 32], strides = [1, 1]} : vector<8x128xf32> to vector<8x32xf32>
    %188 = vector.extract_strided_slice %186 {offsets = [0, 32], sizes = [8, 32], strides = [1, 1]} : vector<8x128xf32> to vector<8x32xf32>
    %189 = vector.extract_strided_slice %186 {offsets = [0, 64], sizes = [8, 32], strides = [1, 1]} : vector<8x128xf32> to vector<8x32xf32>
    %190 = vector.extract_strided_slice %186 {offsets = [0, 96], sizes = [8, 32], strides = [1, 1]} : vector<8x128xf32> to vector<8x32xf32>
    %191 = arith.mulf %188, %162 : vector<8x32xf32>
    %192 = arith.mulf %187, %189 : vector<8x32xf32>
    %193 = arith.addf %191, %192 : vector<8x32xf32>
    %194 = math.tanh %193 : vector<8x32xf32>
    %195 = arith.mulf %190, %194 : vector<8x32xf32>
    %196 = vector.extract_strided_slice %195 {offsets = [0, 0], sizes = [8, 16], strides = [1, 1]} : vector<8x32xf32> to vector<8x16xf32>
    %197 = arith.index_cast %172 : i32 to index
    %c0_56 = arith.constant 0 : index
    %198 = vector.load %arg14[%197, %c0_56] : memref<64x32xf32, #tpu.memory_space<vmem>>, vector<8x16xf32>
    tpu.vector_store %arg14[%197, %c0_56], %196 {strides = array<i32>} : memref<64x32xf32, #tpu.memory_space<vmem>>, vector<8x16xf32>,
    %199 = vector.extract_strided_slice %195 {offsets = [0, 16], sizes = [8, 16], strides = [1, 1]} : vector<8x32xf32> to vector<8x16xf32>
    %200 = arith.index_cast %175 : i32 to index
    %c16_57 = arith.constant 16 : index
    %201 = vector.load %arg14[%200, %c16_57] : memref<64x32xf32, #tpu.memory_space<vmem>>, vector<8x16xf32>
    tpu.vector_store %arg14[%200, %c16_57], %199 {strides = array<i32>} : memref<64x32xf32, #tpu.memory_space<vmem>>, vector<8x16xf32>,
    %c6_i32 = arith.constant 6 : i32
    %c8_i32_58 = arith.constant 8 : i32
    %202 = arith.muli %c6_i32, %c8_i32_58 : i32
    %203 = tpu.assume_multiple %202, 8 : i32
    %c7_i32_59 = arith.constant 7 : i32
    %204 = arith.subi %c7_i32_59, %c6_i32 : i32
    %c8_i32_60 = arith.constant 8 : i32
    %205 = arith.muli %204, %c8_i32_60 : i32
    %206 = tpu.assume_multiple %205, 8 : i32
    %cst_61 = arith.constant dense<0.000000e+00> : vector<8x128xf32>
    %207 = tpu.matmul %195, %7, %cst_61 {dimension_numbers = #tpu.dot_dimension_numbers<[1], [0], [0], [1], [0, 0, 1, 1], [], []>} : vector<8x32xf32>, vector<32x128xf32>, vector<8x128xf32> -> vector<8x128xf32>
    %208 = arith.index_cast %203 : i32 to index
    %c0_62 = arith.constant 0 : index
    %209 = vector.load %arg13[%208, %c0_62] : memref<64x128xf32, #tpu.memory_space<vmem>>, vector<8x128xf32>
    %210 = arith.addf %207, %209 : vector<8x128xf32>
    %211 = math.tanh %210 : vector<8x128xf32>
    %212 = arith.negf %210 : vector<8x128xf32>
    %213 = math.exp %212 : vector<8x128xf32>
    %cst_63 = arith.constant 1.000000e+00 : f32
    %214 = vector.broadcast %cst_63 : f32 to vector<8x128xf32>
    %215 = arith.addf %214, %213 : vector<8x128xf32>
    %216 = arith.divf %214, %215 : vector<8x128xf32>
    %217 = arith.select %13, %211, %216 : vector<8x128xi1>, vector<8x128xf32>
    %218 = vector.extract_strided_slice %217 {offsets = [0, 0], sizes = [8, 32], strides = [1, 1]} : vector<8x128xf32> to vector<8x32xf32>
    %219 = vector.extract_strided_slice %217 {offsets = [0, 32], sizes = [8, 32], strides = [1, 1]} : vector<8x128xf32> to vector<8x32xf32>
    %220 = vector.extract_strided_slice %217 {offsets = [0, 64], sizes = [8, 32], strides = [1, 1]} : vector<8x128xf32> to vector<8x32xf32>
    %221 = vector.extract_strided_slice %217 {offsets = [0, 96], sizes = [8, 32], strides = [1, 1]} : vector<8x128xf32> to vector<8x32xf32>
    %222 = arith.mulf %219, %193 : vector<8x32xf32>
    %223 = arith.mulf %218, %220 : vector<8x32xf32>
    %224 = arith.addf %222, %223 : vector<8x32xf32>
    %225 = math.tanh %224 : vector<8x32xf32>
    %226 = arith.mulf %221, %225 : vector<8x32xf32>
    %227 = vector.extract_strided_slice %226 {offsets = [0, 0], sizes = [8, 16], strides = [1, 1]} : vector<8x32xf32> to vector<8x16xf32>
    %228 = arith.index_cast %203 : i32 to index
    %c0_64 = arith.constant 0 : index
    %229 = vector.load %arg14[%228, %c0_64] : memref<64x32xf32, #tpu.memory_space<vmem>>, vector<8x16xf32>
    tpu.vector_store %arg14[%228, %c0_64], %227 {strides = array<i32>} : memref<64x32xf32, #tpu.memory_space<vmem>>, vector<8x16xf32>,
    %230 = vector.extract_strided_slice %226 {offsets = [0, 16], sizes = [8, 16], strides = [1, 1]} : vector<8x32xf32> to vector<8x16xf32>
    %231 = arith.index_cast %206 : i32 to index
    %c16_65 = arith.constant 16 : index
    %232 = vector.load %arg14[%231, %c16_65] : memref<64x32xf32, #tpu.memory_space<vmem>>, vector<8x16xf32>
    tpu.vector_store %arg14[%231, %c16_65], %230 {strides = array<i32>} : memref<64x32xf32, #tpu.memory_space<vmem>>, vector<8x16xf32>,
    %c7_i32_66 = arith.constant 7 : i32
    %c8_i32_67 = arith.constant 8 : i32
    %233 = arith.muli %c7_i32_66, %c8_i32_67 : i32
    %234 = tpu.assume_multiple %233, 8 : i32
    %c7_i32_68 = arith.constant 7 : i32
    %235 = arith.subi %c7_i32_68, %c7_i32_66 : i32
    %c8_i32_69 = arith.constant 8 : i32
    %236 = arith.muli %235, %c8_i32_69 : i32
    %237 = tpu.assume_multiple %236, 8 : i32
    %cst_70 = arith.constant dense<0.000000e+00> : vector<8x128xf32>
    %238 = tpu.matmul %226, %7, %cst_70 {dimension_numbers = #tpu.dot_dimension_numbers<[1], [0], [0], [1], [0, 0, 1, 1], [], []>} : vector<8x32xf32>, vector<32x128xf32>, vector<8x128xf32> -> vector<8x128xf32>
    %239 = arith.index_cast %234 : i32 to index
    %c0_71 = arith.constant 0 : index
    %240 = vector.load %arg13[%239, %c0_71] : memref<64x128xf32, #tpu.memory_space<vmem>>, vector<8x128xf32>
    %241 = arith.addf %238, %240 : vector<8x128xf32>
    %242 = math.tanh %241 : vector<8x128xf32>
    %243 = arith.negf %241 : vector<8x128xf32>
    %244 = math.exp %243 : vector<8x128xf32>
    %cst_72 = arith.constant 1.000000e+00 : f32
    %245 = vector.broadcast %cst_72 : f32 to vector<8x128xf32>
    %246 = arith.addf %245, %244 : vector<8x128xf32>
    %247 = arith.divf %245, %246 : vector<8x128xf32>
    %248 = arith.select %13, %242, %247 : vector<8x128xi1>, vector<8x128xf32>
    %249 = vector.extract_strided_slice %248 {offsets = [0, 0], sizes = [8, 32], strides = [1, 1]} : vector<8x128xf32> to vector<8x32xf32>
    %250 = vector.extract_strided_slice %248 {offsets = [0, 32], sizes = [8, 32], strides = [1, 1]} : vector<8x128xf32> to vector<8x32xf32>
    %251 = vector.extract_strided_slice %248 {offsets = [0, 64], sizes = [8, 32], strides = [1, 1]} : vector<8x128xf32> to vector<8x32xf32>
    %252 = vector.extract_strided_slice %248 {offsets = [0, 96], sizes = [8, 32], strides = [1, 1]} : vector<8x128xf32> to vector<8x32xf32>
    %253 = arith.mulf %250, %224 : vector<8x32xf32>
    %254 = arith.mulf %249, %251 : vector<8x32xf32>
    %255 = arith.addf %253, %254 : vector<8x32xf32>
    %256 = math.tanh %255 : vector<8x32xf32>
    %257 = arith.mulf %252, %256 : vector<8x32xf32>
    %258 = vector.extract_strided_slice %257 {offsets = [0, 0], sizes = [8, 16], strides = [1, 1]} : vector<8x32xf32> to vector<8x16xf32>
    %259 = arith.index_cast %234 : i32 to index
    %c0_73 = arith.constant 0 : index
    %260 = vector.load %arg14[%259, %c0_73] : memref<64x32xf32, #tpu.memory_space<vmem>>, vector<8x16xf32>
    tpu.vector_store %arg14[%259, %c0_73], %258 {strides = array<i32>} : memref<64x32xf32, #tpu.memory_space<vmem>>, vector<8x16xf32>,
    %261 = vector.extract_strided_slice %257 {offsets = [0, 16], sizes = [8, 16], strides = [1, 1]} : vector<8x32xf32> to vector<8x16xf32>
    %262 = arith.index_cast %237 : i32 to index
    %c16_74 = arith.constant 16 : index
    %263 = vector.load %arg14[%262, %c16_74] : memref<64x32xf32, #tpu.memory_space<vmem>>, vector<8x16xf32>
    tpu.vector_store %arg14[%262, %c16_74], %261 {strides = array<i32>} : memref<64x32xf32, #tpu.memory_space<vmem>>, vector<8x16xf32>,
    %c8_i32_75 = arith.constant 8 : i32
    %c0_76 = arith.constant 0 : index
    %c0_77 = arith.constant 0 : index
    %264 = vector.load %arg14[%c0_76, %c0_77] : memref<64x32xf32, #tpu.memory_space<vmem>>, vector<64x32xf32>
    %c0_78 = arith.constant 0 : index
    %c0_79 = arith.constant 0 : index
    %265 = vector.load %arg7[%c0_78, %c0_79] : memref<32x5xf32, #tpu.memory_space<vmem>>, vector<32x5xf32>
    %cst_80 = arith.constant dense<0.000000e+00> : vector<64x5xf32>
    %266 = tpu.matmul %264, %265, %cst_80 {dimension_numbers = #tpu.dot_dimension_numbers<[1], [0], [0], [1], [0, 0, 1, 1], [], []>} : vector<64x32xf32>, vector<32x5xf32>, vector<64x5xf32> -> vector<64x5xf32>
    %c0_81 = arith.constant 0 : index
    %c0_82 = arith.constant 0 : index
    %267 = vector.load %arg8[%c0_81, %c0_82] : memref<1x5xf32, #tpu.memory_space<vmem>>, vector<1x5xf32>
    %268 = vector.broadcast %267 : vector<1x5xf32> to vector<64x5xf32>
    %269 = arith.addf %266, %268 : vector<64x5xf32>
    %c0_83 = arith.constant 0 : index
    %c0_84 = arith.constant 0 : index
    %270 = vector.load %arg15[%c0_83, %c0_84] : memref<64x5xf32, #tpu.memory_space<vmem>>, vector<64x5xf32>
    tpu.vector_store %arg15[%c0_83, %c0_84], %269 {strides = array<i32>} : memref<64x5xf32, #tpu.memory_space<vmem>>, vector<64x5xf32>,
    %c0_85 = arith.constant 0 : index
    %c0_86 = arith.constant 0 : index
    %271 = vector.load %arg9[%c0_85, %c0_86] : memref<5x5xf32, #tpu.memory_space<vmem>>, vector<5x5xf32>
    %272 = vector.extract_strided_slice %271 {offsets = [0, 0], sizes = [1, 5], strides = [1, 1]} : vector<5x5xf32> to vector<1x5xf32>
    %273 = vector.extract_strided_slice %271 {offsets = [1, 0], sizes = [1, 5], strides = [1, 1]} : vector<5x5xf32> to vector<1x5xf32>
    %274 = vector.extract_strided_slice %271 {offsets = [2, 0], sizes = [1, 5], strides = [1, 1]} : vector<5x5xf32> to vector<1x5xf32>
    %275 = vector.extract_strided_slice %271 {offsets = [3, 0], sizes = [1, 5], strides = [1, 1]} : vector<5x5xf32> to vector<1x5xf32>
    %276 = vector.extract_strided_slice %271 {offsets = [4, 0], sizes = [1, 5], strides = [1, 1]} : vector<5x5xf32> to vector<1x5xf32>
    %277 = tpu.iota {dimensions = array<i32: 1>} : vector<8x5xi32>
    %c3_i32_87 = arith.constant 3 : i32
    %278 = vector.broadcast %c3_i32_87 : i32 to vector<8x5xi32>
    %279 = arith.cmpi eq, %277, %278 : vector<8x5xi32>
    %cst_88 = arith.constant 0.000000e+00 : f32
    %cst_89 = arith.constant -1.000000e+04 : f32
    %280 = vector.broadcast %cst_88 : f32 to vector<8x5xf32>
    %281 = vector.broadcast %cst_89 : f32 to vector<8x5xf32>
    %282 = arith.select %279, %280, %281 : vector<8x5xi1>, vector<8x5xf32>
    %c0_i32_90 = arith.constant 0 : i32
    %c8_i32_91 = arith.constant 8 : i32
    %283 = arith.muli %c0_i32_90, %c8_i32_91 : i32
    %284 = tpu.assume_multiple %283, 8 : i32
    %285 = arith.index_cast %284 : i32 to index
    %c0_92 = arith.constant 0 : index
    %286 = vector.load %arg15[%285, %c0_92] : memref<64x5xf32, #tpu.memory_space<vmem>>, vector<8x5xf32>
    %cst_93 = arith.constant 0.000000e+00 : f32
    %287 = vector.broadcast %cst_93 : f32 to vector<8x5xf32>
    %c0_i32_94 = arith.constant 0 : i32
    %288 = vector.broadcast %c0_i32_94 : i32 to vector<8x5xi32>
    %289 = vector.broadcast %272 : vector<1x5xf32> to vector<8x5xf32>
    %290 = arith.addf %282, %289 : vector<8x5xf32>
    %cst_95 = arith.constant dense<0xFF800000> : vector<8xf32>
    %291 = vector.multi_reduction <maximumf>, %290, %cst_95 [1] : vector<8x5xf32> to vector<8xf32>
    %292 = vector.shape_cast %291 : vector<8xf32> to vector<8x1xf32>
    %293 = vector.broadcast %292 : vector<8x1xf32> to vector<8x5xf32>
    %294 = arith.cmpf oeq, %290, %293 : vector<8x5xf32>
    %c5_i32_96 = arith.constant 5 : i32
    %295 = vector.broadcast %c5_i32_96 : i32 to vector<8x5xi32>
    %296 = arith.select %294, %277, %295 : vector<8x5xi1>, vector<8x5xi32>
    %cst_97 = arith.constant dense<2147483647> : vector<8xi32>
    %297 = vector.multi_reduction <minsi>, %296, %cst_97 [1] : vector<8x5xi32> to vector<8xi32>
    %298 = vector.shape_cast %297 : vector<8xi32> to vector<8x1xi32>
    %c0_i32_98 = arith.constant 0 : i32
    %299 = vector.broadcast %c0_i32_98 : i32 to vector<8x5xi32>
    %300 = arith.cmpi eq, %277, %299 : vector<8x5xi32>
    %301 = vector.shape_cast %292 : vector<8x1xf32> to vector<8x1xf32>
    %302 = vector.broadcast %301 : vector<8x1xf32> to vector<8x5xf32>
    %303 = arith.select %300, %302, %287 : vector<8x5xi1>, vector<8x5xf32>
    %304 = vector.shape_cast %298 : vector<8x1xi32> to vector<8x1xi32>
    %305 = vector.broadcast %304 : vector<8x1xi32> to vector<8x5xi32>
    %306 = arith.select %300, %305, %288 : vector<8x5xi1>, vector<8x5xi32>
    %307 = vector.broadcast %273 : vector<1x5xf32> to vector<8x5xf32>
    %308 = arith.addf %282, %307 : vector<8x5xf32>
    %cst_99 = arith.constant dense<0xFF800000> : vector<8xf32>
    %309 = vector.multi_reduction <maximumf>, %308, %cst_99 [1] : vector<8x5xf32> to vector<8xf32>
    %310 = vector.shape_cast %309 : vector<8xf32> to vector<8x1xf32>
    %311 = vector.broadcast %310 : vector<8x1xf32> to vector<8x5xf32>
    %312 = arith.cmpf oeq, %308, %311 : vector<8x5xf32>
    %c5_i32_100 = arith.constant 5 : i32
    %313 = vector.broadcast %c5_i32_100 : i32 to vector<8x5xi32>
    %314 = arith.select %312, %277, %313 : vector<8x5xi1>, vector<8x5xi32>
    %cst_101 = arith.constant dense<2147483647> : vector<8xi32>
    %315 = vector.multi_reduction <minsi>, %314, %cst_101 [1] : vector<8x5xi32> to vector<8xi32>
    %316 = vector.shape_cast %315 : vector<8xi32> to vector<8x1xi32>
    %c1_i32_102 = arith.constant 1 : i32
    %317 = vector.broadcast %c1_i32_102 : i32 to vector<8x5xi32>
    %318 = arith.cmpi eq, %277, %317 : vector<8x5xi32>
    %319 = vector.shape_cast %310 : vector<8x1xf32> to vector<8x1xf32>
    %320 = vector.broadcast %319 : vector<8x1xf32> to vector<8x5xf32>
    %321 = arith.select %318, %320, %303 : vector<8x5xi1>, vector<8x5xf32>
    %322 = vector.shape_cast %316 : vector<8x1xi32> to vector<8x1xi32>
    %323 = vector.broadcast %322 : vector<8x1xi32> to vector<8x5xi32>
    %324 = arith.select %318, %323, %306 : vector<8x5xi1>, vector<8x5xi32>
    %325 = vector.broadcast %274 : vector<1x5xf32> to vector<8x5xf32>
    %326 = arith.addf %282, %325 : vector<8x5xf32>
    %cst_103 = arith.constant dense<0xFF800000> : vector<8xf32>
    %327 = vector.multi_reduction <maximumf>, %326, %cst_103 [1] : vector<8x5xf32> to vector<8xf32>
    %328 = vector.shape_cast %327 : vector<8xf32> to vector<8x1xf32>
    %329 = vector.broadcast %328 : vector<8x1xf32> to vector<8x5xf32>
    %330 = arith.cmpf oeq, %326, %329 : vector<8x5xf32>
    %c5_i32_104 = arith.constant 5 : i32
    %331 = vector.broadcast %c5_i32_104 : i32 to vector<8x5xi32>
    %332 = arith.select %330, %277, %331 : vector<8x5xi1>, vector<8x5xi32>
    %cst_105 = arith.constant dense<2147483647> : vector<8xi32>
    %333 = vector.multi_reduction <minsi>, %332, %cst_105 [1] : vector<8x5xi32> to vector<8xi32>
    %334 = vector.shape_cast %333 : vector<8xi32> to vector<8x1xi32>
    %c2_i32_106 = arith.constant 2 : i32
    %335 = vector.broadcast %c2_i32_106 : i32 to vector<8x5xi32>
    %336 = arith.cmpi eq, %277, %335 : vector<8x5xi32>
    %337 = vector.shape_cast %328 : vector<8x1xf32> to vector<8x1xf32>
    %338 = vector.broadcast %337 : vector<8x1xf32> to vector<8x5xf32>
    %339 = arith.select %336, %338, %321 : vector<8x5xi1>, vector<8x5xf32>
    %340 = vector.shape_cast %334 : vector<8x1xi32> to vector<8x1xi32>
    %341 = vector.broadcast %340 : vector<8x1xi32> to vector<8x5xi32>
    %342 = arith.select %336, %341, %324 : vector<8x5xi1>, vector<8x5xi32>
    %343 = vector.broadcast %275 : vector<1x5xf32> to vector<8x5xf32>
    %344 = arith.addf %282, %343 : vector<8x5xf32>
    %cst_107 = arith.constant dense<0xFF800000> : vector<8xf32>
    %345 = vector.multi_reduction <maximumf>, %344, %cst_107 [1] : vector<8x5xf32> to vector<8xf32>
    %346 = vector.shape_cast %345 : vector<8xf32> to vector<8x1xf32>
    %347 = vector.broadcast %346 : vector<8x1xf32> to vector<8x5xf32>
    %348 = arith.cmpf oeq, %344, %347 : vector<8x5xf32>
    %c5_i32_108 = arith.constant 5 : i32
    %349 = vector.broadcast %c5_i32_108 : i32 to vector<8x5xi32>
    %350 = arith.select %348, %277, %349 : vector<8x5xi1>, vector<8x5xi32>
    %cst_109 = arith.constant dense<2147483647> : vector<8xi32>
    %351 = vector.multi_reduction <minsi>, %350, %cst_109 [1] : vector<8x5xi32> to vector<8xi32>
    %352 = vector.shape_cast %351 : vector<8xi32> to vector<8x1xi32>
    %c3_i32_110 = arith.constant 3 : i32
    %353 = vector.broadcast %c3_i32_110 : i32 to vector<8x5xi32>
    %354 = arith.cmpi eq, %277, %353 : vector<8x5xi32>
    %355 = vector.shape_cast %346 : vector<8x1xf32> to vector<8x1xf32>
    %356 = vector.broadcast %355 : vector<8x1xf32> to vector<8x5xf32>
    %357 = arith.select %354, %356, %339 : vector<8x5xi1>, vector<8x5xf32>
    %358 = vector.shape_cast %352 : vector<8x1xi32> to vector<8x1xi32>
    %359 = vector.broadcast %358 : vector<8x1xi32> to vector<8x5xi32>
    %360 = arith.select %354, %359, %342 : vector<8x5xi1>, vector<8x5xi32>
    %361 = vector.broadcast %276 : vector<1x5xf32> to vector<8x5xf32>
    %362 = arith.addf %282, %361 : vector<8x5xf32>
    %cst_111 = arith.constant dense<0xFF800000> : vector<8xf32>
    %363 = vector.multi_reduction <maximumf>, %362, %cst_111 [1] : vector<8x5xf32> to vector<8xf32>
    %364 = vector.shape_cast %363 : vector<8xf32> to vector<8x1xf32>
    %365 = vector.broadcast %364 : vector<8x1xf32> to vector<8x5xf32>
    %366 = arith.cmpf oeq, %362, %365 : vector<8x5xf32>
    %c5_i32_112 = arith.constant 5 : i32
    %367 = vector.broadcast %c5_i32_112 : i32 to vector<8x5xi32>
    %368 = arith.select %366, %277, %367 : vector<8x5xi1>, vector<8x5xi32>
    %cst_113 = arith.constant dense<2147483647> : vector<8xi32>
    %369 = vector.multi_reduction <minsi>, %368, %cst_113 [1] : vector<8x5xi32> to vector<8xi32>
    %370 = vector.shape_cast %369 : vector<8xi32> to vector<8x1xi32>
    %c4_i32_114 = arith.constant 4 : i32
    %371 = vector.broadcast %c4_i32_114 : i32 to vector<8x5xi32>
    %372 = arith.cmpi eq, %277, %371 : vector<8x5xi32>
    %373 = vector.shape_cast %364 : vector<8x1xf32> to vector<8x1xf32>
    %374 = vector.broadcast %373 : vector<8x1xf32> to vector<8x5xf32>
    %375 = arith.select %372, %374, %357 : vector<8x5xi1>, vector<8x5xf32>
    %376 = vector.shape_cast %370 : vector<8x1xi32> to vector<8x1xi32>
    %377 = vector.broadcast %376 : vector<8x1xi32> to vector<8x5xi32>
    %378 = arith.select %372, %377, %360 : vector<8x5xi1>, vector<8x5xi32>
    %379 = arith.index_cast %284 : i32 to index
    %c0_115 = arith.constant 0 : index
    %380 = vector.load %arg16[%379, %c0_115] : memref<64x5xi32, #tpu.memory_space<vmem>>, vector<8x5xi32>
    tpu.vector_store %arg16[%379, %c0_115], %378 {strides = array<i32>} : memref<64x5xi32, #tpu.memory_space<vmem>>, vector<8x5xi32>,
    %381 = arith.addf %375, %286 : vector<8x5xf32>
    %c1_i32_116 = arith.constant 1 : i32
    %c8_i32_117 = arith.constant 8 : i32
    %382 = arith.muli %c1_i32_116, %c8_i32_117 : i32
    %383 = tpu.assume_multiple %382, 8 : i32
    %384 = arith.index_cast %383 : i32 to index
    %c0_118 = arith.constant 0 : index
    %385 = vector.load %arg15[%384, %c0_118] : memref<64x5xf32, #tpu.memory_space<vmem>>, vector<8x5xf32>
    %cst_119 = arith.constant 0.000000e+00 : f32
    %386 = vector.broadcast %cst_119 : f32 to vector<8x5xf32>
    %c0_i32_120 = arith.constant 0 : i32
    %387 = vector.broadcast %c0_i32_120 : i32 to vector<8x5xi32>
    %388 = vector.broadcast %272 : vector<1x5xf32> to vector<8x5xf32>
    %389 = arith.addf %381, %388 : vector<8x5xf32>
    %cst_121 = arith.constant dense<0xFF800000> : vector<8xf32>
    %390 = vector.multi_reduction <maximumf>, %389, %cst_121 [1] : vector<8x5xf32> to vector<8xf32>
    %391 = vector.shape_cast %390 : vector<8xf32> to vector<8x1xf32>
    %392 = vector.broadcast %391 : vector<8x1xf32> to vector<8x5xf32>
    %393 = arith.cmpf oeq, %389, %392 : vector<8x5xf32>
    %c5_i32_122 = arith.constant 5 : i32
    %394 = vector.broadcast %c5_i32_122 : i32 to vector<8x5xi32>
    %395 = arith.select %393, %277, %394 : vector<8x5xi1>, vector<8x5xi32>
    %cst_123 = arith.constant dense<2147483647> : vector<8xi32>
    %396 = vector.multi_reduction <minsi>, %395, %cst_123 [1] : vector<8x5xi32> to vector<8xi32>
    %397 = vector.shape_cast %396 : vector<8xi32> to vector<8x1xi32>
    %c0_i32_124 = arith.constant 0 : i32
    %398 = vector.broadcast %c0_i32_124 : i32 to vector<8x5xi32>
    %399 = arith.cmpi eq, %277, %398 : vector<8x5xi32>
    %400 = vector.shape_cast %391 : vector<8x1xf32> to vector<8x1xf32>
    %401 = vector.broadcast %400 : vector<8x1xf32> to vector<8x5xf32>
    %402 = arith.select %399, %401, %386 : vector<8x5xi1>, vector<8x5xf32>
    %403 = vector.shape_cast %397 : vector<8x1xi32> to vector<8x1xi32>
    %404 = vector.broadcast %403 : vector<8x1xi32> to vector<8x5xi32>
    %405 = arith.select %399, %404, %387 : vector<8x5xi1>, vector<8x5xi32>
    %406 = vector.broadcast %273 : vector<1x5xf32> to vector<8x5xf32>
    %407 = arith.addf %381, %406 : vector<8x5xf32>
    %cst_125 = arith.constant dense<0xFF800000> : vector<8xf32>
    %408 = vector.multi_reduction <maximumf>, %407, %cst_125 [1] : vector<8x5xf32> to vector<8xf32>
    %409 = vector.shape_cast %408 : vector<8xf32> to vector<8x1xf32>
    %410 = vector.broadcast %409 : vector<8x1xf32> to vector<8x5xf32>
    %411 = arith.cmpf oeq, %407, %410 : vector<8x5xf32>
    %c5_i32_126 = arith.constant 5 : i32
    %412 = vector.broadcast %c5_i32_126 : i32 to vector<8x5xi32>
    %413 = arith.select %411, %277, %412 : vector<8x5xi1>, vector<8x5xi32>
    %cst_127 = arith.constant dense<2147483647> : vector<8xi32>
    %414 = vector.multi_reduction <minsi>, %413, %cst_127 [1] : vector<8x5xi32> to vector<8xi32>
    %415 = vector.shape_cast %414 : vector<8xi32> to vector<8x1xi32>
    %c1_i32_128 = arith.constant 1 : i32
    %416 = vector.broadcast %c1_i32_128 : i32 to vector<8x5xi32>
    %417 = arith.cmpi eq, %277, %416 : vector<8x5xi32>
    %418 = vector.shape_cast %409 : vector<8x1xf32> to vector<8x1xf32>
    %419 = vector.broadcast %418 : vector<8x1xf32> to vector<8x5xf32>
    %420 = arith.select %417, %419, %402 : vector<8x5xi1>, vector<8x5xf32>
    %421 = vector.shape_cast %415 : vector<8x1xi32> to vector<8x1xi32>
    %422 = vector.broadcast %421 : vector<8x1xi32> to vector<8x5xi32>
    %423 = arith.select %417, %422, %405 : vector<8x5xi1>, vector<8x5xi32>
    %424 = vector.broadcast %274 : vector<1x5xf32> to vector<8x5xf32>
    %425 = arith.addf %381, %424 : vector<8x5xf32>
    %cst_129 = arith.constant dense<0xFF800000> : vector<8xf32>
    %426 = vector.multi_reduction <maximumf>, %425, %cst_129 [1] : vector<8x5xf32> to vector<8xf32>
    %427 = vector.shape_cast %426 : vector<8xf32> to vector<8x1xf32>
    %428 = vector.broadcast %427 : vector<8x1xf32> to vector<8x5xf32>
    %429 = arith.cmpf oeq, %425, %428 : vector<8x5xf32>
    %c5_i32_130 = arith.constant 5 : i32
    %430 = vector.broadcast %c5_i32_130 : i32 to vector<8x5xi32>
    %431 = arith.select %429, %277, %430 : vector<8x5xi1>, vector<8x5xi32>
    %cst_131 = arith.constant dense<2147483647> : vector<8xi32>
    %432 = vector.multi_reduction <minsi>, %431, %cst_131 [1] : vector<8x5xi32> to vector<8xi32>
    %433 = vector.shape_cast %432 : vector<8xi32> to vector<8x1xi32>
    %c2_i32_132 = arith.constant 2 : i32
    %434 = vector.broadcast %c2_i32_132 : i32 to vector<8x5xi32>
    %435 = arith.cmpi eq, %277, %434 : vector<8x5xi32>
    %436 = vector.shape_cast %427 : vector<8x1xf32> to vector<8x1xf32>
    %437 = vector.broadcast %436 : vector<8x1xf32> to vector<8x5xf32>
    %438 = arith.select %435, %437, %420 : vector<8x5xi1>, vector<8x5xf32>
    %439 = vector.shape_cast %433 : vector<8x1xi32> to vector<8x1xi32>
    %440 = vector.broadcast %439 : vector<8x1xi32> to vector<8x5xi32>
    %441 = arith.select %435, %440, %423 : vector<8x5xi1>, vector<8x5xi32>
    %442 = vector.broadcast %275 : vector<1x5xf32> to vector<8x5xf32>
    %443 = arith.addf %381, %442 : vector<8x5xf32>
    %cst_133 = arith.constant dense<0xFF800000> : vector<8xf32>
    %444 = vector.multi_reduction <maximumf>, %443, %cst_133 [1] : vector<8x5xf32> to vector<8xf32>
    %445 = vector.shape_cast %444 : vector<8xf32> to vector<8x1xf32>
    %446 = vector.broadcast %445 : vector<8x1xf32> to vector<8x5xf32>
    %447 = arith.cmpf oeq, %443, %446 : vector<8x5xf32>
    %c5_i32_134 = arith.constant 5 : i32
    %448 = vector.broadcast %c5_i32_134 : i32 to vector<8x5xi32>
    %449 = arith.select %447, %277, %448 : vector<8x5xi1>, vector<8x5xi32>
    %cst_135 = arith.constant dense<2147483647> : vector<8xi32>
    %450 = vector.multi_reduction <minsi>, %449, %cst_135 [1] : vector<8x5xi32> to vector<8xi32>
    %451 = vector.shape_cast %450 : vector<8xi32> to vector<8x1xi32>
    %c3_i32_136 = arith.constant 3 : i32
    %452 = vector.broadcast %c3_i32_136 : i32 to vector<8x5xi32>
    %453 = arith.cmpi eq, %277, %452 : vector<8x5xi32>
    %454 = vector.shape_cast %445 : vector<8x1xf32> to vector<8x1xf32>
    %455 = vector.broadcast %454 : vector<8x1xf32> to vector<8x5xf32>
    %456 = arith.select %453, %455, %438 : vector<8x5xi1>, vector<8x5xf32>
    %457 = vector.shape_cast %451 : vector<8x1xi32> to vector<8x1xi32>
    %458 = vector.broadcast %457 : vector<8x1xi32> to vector<8x5xi32>
    %459 = arith.select %453, %458, %441 : vector<8x5xi1>, vector<8x5xi32>
    %460 = vector.broadcast %276 : vector<1x5xf32> to vector<8x5xf32>
    %461 = arith.addf %381, %460 : vector<8x5xf32>
    %cst_137 = arith.constant dense<0xFF800000> : vector<8xf32>
    %462 = vector.multi_reduction <maximumf>, %461, %cst_137 [1] : vector<8x5xf32> to vector<8xf32>
    %463 = vector.shape_cast %462 : vector<8xf32> to vector<8x1xf32>
    %464 = vector.broadcast %463 : vector<8x1xf32> to vector<8x5xf32>
    %465 = arith.cmpf oeq, %461, %464 : vector<8x5xf32>
    %c5_i32_138 = arith.constant 5 : i32
    %466 = vector.broadcast %c5_i32_138 : i32 to vector<8x5xi32>
    %467 = arith.select %465, %277, %466 : vector<8x5xi1>, vector<8x5xi32>
    %cst_139 = arith.constant dense<2147483647> : vector<8xi32>
    %468 = vector.multi_reduction <minsi>, %467, %cst_139 [1] : vector<8x5xi32> to vector<8xi32>
    %469 = vector.shape_cast %468 : vector<8xi32> to vector<8x1xi32>
    %c4_i32_140 = arith.constant 4 : i32
    %470 = vector.broadcast %c4_i32_140 : i32 to vector<8x5xi32>
    %471 = arith.cmpi eq, %277, %470 : vector<8x5xi32>
    %472 = vector.shape_cast %463 : vector<8x1xf32> to vector<8x1xf32>
    %473 = vector.broadcast %472 : vector<8x1xf32> to vector<8x5xf32>
    %474 = arith.select %471, %473, %456 : vector<8x5xi1>, vector<8x5xf32>
    %475 = vector.shape_cast %469 : vector<8x1xi32> to vector<8x1xi32>
    %476 = vector.broadcast %475 : vector<8x1xi32> to vector<8x5xi32>
    %477 = arith.select %471, %476, %459 : vector<8x5xi1>, vector<8x5xi32>
    %478 = arith.index_cast %383 : i32 to index
    %c0_141 = arith.constant 0 : index
    %479 = vector.load %arg16[%478, %c0_141] : memref<64x5xi32, #tpu.memory_space<vmem>>, vector<8x5xi32>
    tpu.vector_store %arg16[%478, %c0_141], %477 {strides = array<i32>} : memref<64x5xi32, #tpu.memory_space<vmem>>, vector<8x5xi32>,
    %480 = arith.addf %474, %385 : vector<8x5xf32>
    %c2_i32_142 = arith.constant 2 : i32
    %c8_i32_143 = arith.constant 8 : i32
    %481 = arith.muli %c2_i32_142, %c8_i32_143 : i32
    %482 = tpu.assume_multiple %481, 8 : i32
    %483 = arith.index_cast %482 : i32 to index
    %c0_144 = arith.constant 0 : index
    %484 = vector.load %arg15[%483, %c0_144] : memref<64x5xf32, #tpu.memory_space<vmem>>, vector<8x5xf32>
    %cst_145 = arith.constant 0.000000e+00 : f32
    %485 = vector.broadcast %cst_145 : f32 to vector<8x5xf32>
    %c0_i32_146 = arith.constant 0 : i32
    %486 = vector.broadcast %c0_i32_146 : i32 to vector<8x5xi32>
    %487 = vector.broadcast %272 : vector<1x5xf32> to vector<8x5xf32>
    %488 = arith.addf %480, %487 : vector<8x5xf32>
    %cst_147 = arith.constant dense<0xFF800000> : vector<8xf32>
    %489 = vector.multi_reduction <maximumf>, %488, %cst_147 [1] : vector<8x5xf32> to vector<8xf32>
    %490 = vector.shape_cast %489 : vector<8xf32> to vector<8x1xf32>
    %491 = vector.broadcast %490 : vector<8x1xf32> to vector<8x5xf32>
    %492 = arith.cmpf oeq, %488, %491 : vector<8x5xf32>
    %c5_i32_148 = arith.constant 5 : i32
    %493 = vector.broadcast %c5_i32_148 : i32 to vector<8x5xi32>
    %494 = arith.select %492, %277, %493 : vector<8x5xi1>, vector<8x5xi32>
    %cst_149 = arith.constant dense<2147483647> : vector<8xi32>
    %495 = vector.multi_reduction <minsi>, %494, %cst_149 [1] : vector<8x5xi32> to vector<8xi32>
    %496 = vector.shape_cast %495 : vector<8xi32> to vector<8x1xi32>
    %c0_i32_150 = arith.constant 0 : i32
    %497 = vector.broadcast %c0_i32_150 : i32 to vector<8x5xi32>
    %498 = arith.cmpi eq, %277, %497 : vector<8x5xi32>
    %499 = vector.shape_cast %490 : vector<8x1xf32> to vector<8x1xf32>
    %500 = vector.broadcast %499 : vector<8x1xf32> to vector<8x5xf32>
    %501 = arith.select %498, %500, %485 : vector<8x5xi1>, vector<8x5xf32>
    %502 = vector.shape_cast %496 : vector<8x1xi32> to vector<8x1xi32>
    %503 = vector.broadcast %502 : vector<8x1xi32> to vector<8x5xi32>
    %504 = arith.select %498, %503, %486 : vector<8x5xi1>, vector<8x5xi32>
    %505 = vector.broadcast %273 : vector<1x5xf32> to vector<8x5xf32>
    %506 = arith.addf %480, %505 : vector<8x5xf32>
    %cst_151 = arith.constant dense<0xFF800000> : vector<8xf32>
    %507 = vector.multi_reduction <maximumf>, %506, %cst_151 [1] : vector<8x5xf32> to vector<8xf32>
    %508 = vector.shape_cast %507 : vector<8xf32> to vector<8x1xf32>
    %509 = vector.broadcast %508 : vector<8x1xf32> to vector<8x5xf32>
    %510 = arith.cmpf oeq, %506, %509 : vector<8x5xf32>
    %c5_i32_152 = arith.constant 5 : i32
    %511 = vector.broadcast %c5_i32_152 : i32 to vector<8x5xi32>
    %512 = arith.select %510, %277, %511 : vector<8x5xi1>, vector<8x5xi32>
    %cst_153 = arith.constant dense<2147483647> : vector<8xi32>
    %513 = vector.multi_reduction <minsi>, %512, %cst_153 [1] : vector<8x5xi32> to vector<8xi32>
    %514 = vector.shape_cast %513 : vector<8xi32> to vector<8x1xi32>
    %c1_i32_154 = arith.constant 1 : i32
    %515 = vector.broadcast %c1_i32_154 : i32 to vector<8x5xi32>
    %516 = arith.cmpi eq, %277, %515 : vector<8x5xi32>
    %517 = vector.shape_cast %508 : vector<8x1xf32> to vector<8x1xf32>
    %518 = vector.broadcast %517 : vector<8x1xf32> to vector<8x5xf32>
    %519 = arith.select %516, %518, %501 : vector<8x5xi1>, vector<8x5xf32>
    %520 = vector.shape_cast %514 : vector<8x1xi32> to vector<8x1xi32>
    %521 = vector.broadcast %520 : vector<8x1xi32> to vector<8x5xi32>
    %522 = arith.select %516, %521, %504 : vector<8x5xi1>, vector<8x5xi32>
    %523 = vector.broadcast %274 : vector<1x5xf32> to vector<8x5xf32>
    %524 = arith.addf %480, %523 : vector<8x5xf32>
    %cst_155 = arith.constant dense<0xFF800000> : vector<8xf32>
    %525 = vector.multi_reduction <maximumf>, %524, %cst_155 [1] : vector<8x5xf32> to vector<8xf32>
    %526 = vector.shape_cast %525 : vector<8xf32> to vector<8x1xf32>
    %527 = vector.broadcast %526 : vector<8x1xf32> to vector<8x5xf32>
    %528 = arith.cmpf oeq, %524, %527 : vector<8x5xf32>
    %c5_i32_156 = arith.constant 5 : i32
    %529 = vector.broadcast %c5_i32_156 : i32 to vector<8x5xi32>
    %530 = arith.select %528, %277, %529 : vector<8x5xi1>, vector<8x5xi32>
    %cst_157 = arith.constant dense<2147483647> : vector<8xi32>
    %531 = vector.multi_reduction <minsi>, %530, %cst_157 [1] : vector<8x5xi32> to vector<8xi32>
    %532 = vector.shape_cast %531 : vector<8xi32> to vector<8x1xi32>
    %c2_i32_158 = arith.constant 2 : i32
    %533 = vector.broadcast %c2_i32_158 : i32 to vector<8x5xi32>
    %534 = arith.cmpi eq, %277, %533 : vector<8x5xi32>
    %535 = vector.shape_cast %526 : vector<8x1xf32> to vector<8x1xf32>
    %536 = vector.broadcast %535 : vector<8x1xf32> to vector<8x5xf32>
    %537 = arith.select %534, %536, %519 : vector<8x5xi1>, vector<8x5xf32>
    %538 = vector.shape_cast %532 : vector<8x1xi32> to vector<8x1xi32>
    %539 = vector.broadcast %538 : vector<8x1xi32> to vector<8x5xi32>
    %540 = arith.select %534, %539, %522 : vector<8x5xi1>, vector<8x5xi32>
    %541 = vector.broadcast %275 : vector<1x5xf32> to vector<8x5xf32>
    %542 = arith.addf %480, %541 : vector<8x5xf32>
    %cst_159 = arith.constant dense<0xFF800000> : vector<8xf32>
    %543 = vector.multi_reduction <maximumf>, %542, %cst_159 [1] : vector<8x5xf32> to vector<8xf32>
    %544 = vector.shape_cast %543 : vector<8xf32> to vector<8x1xf32>
    %545 = vector.broadcast %544 : vector<8x1xf32> to vector<8x5xf32>
    %546 = arith.cmpf oeq, %542, %545 : vector<8x5xf32>
    %c5_i32_160 = arith.constant 5 : i32
    %547 = vector.broadcast %c5_i32_160 : i32 to vector<8x5xi32>
    %548 = arith.select %546, %277, %547 : vector<8x5xi1>, vector<8x5xi32>
    %cst_161 = arith.constant dense<2147483647> : vector<8xi32>
    %549 = vector.multi_reduction <minsi>, %548, %cst_161 [1] : vector<8x5xi32> to vector<8xi32>
    %550 = vector.shape_cast %549 : vector<8xi32> to vector<8x1xi32>
    %c3_i32_162 = arith.constant 3 : i32
    %551 = vector.broadcast %c3_i32_162 : i32 to vector<8x5xi32>
    %552 = arith.cmpi eq, %277, %551 : vector<8x5xi32>
    %553 = vector.shape_cast %544 : vector<8x1xf32> to vector<8x1xf32>
    %554 = vector.broadcast %553 : vector<8x1xf32> to vector<8x5xf32>
    %555 = arith.select %552, %554, %537 : vector<8x5xi1>, vector<8x5xf32>
    %556 = vector.shape_cast %550 : vector<8x1xi32> to vector<8x1xi32>
    %557 = vector.broadcast %556 : vector<8x1xi32> to vector<8x5xi32>
    %558 = arith.select %552, %557, %540 : vector<8x5xi1>, vector<8x5xi32>
    %559 = vector.broadcast %276 : vector<1x5xf32> to vector<8x5xf32>
    %560 = arith.addf %480, %559 : vector<8x5xf32>
    %cst_163 = arith.constant dense<0xFF800000> : vector<8xf32>
    %561 = vector.multi_reduction <maximumf>, %560, %cst_163 [1] : vector<8x5xf32> to vector<8xf32>
    %562 = vector.shape_cast %561 : vector<8xf32> to vector<8x1xf32>
    %563 = vector.broadcast %562 : vector<8x1xf32> to vector<8x5xf32>
    %564 = arith.cmpf oeq, %560, %563 : vector<8x5xf32>
    %c5_i32_164 = arith.constant 5 : i32
    %565 = vector.broadcast %c5_i32_164 : i32 to vector<8x5xi32>
    %566 = arith.select %564, %277, %565 : vector<8x5xi1>, vector<8x5xi32>
    %cst_165 = arith.constant dense<2147483647> : vector<8xi32>
    %567 = vector.multi_reduction <minsi>, %566, %cst_165 [1] : vector<8x5xi32> to vector<8xi32>
    %568 = vector.shape_cast %567 : vector<8xi32> to vector<8x1xi32>
    %c4_i32_166 = arith.constant 4 : i32
    %569 = vector.broadcast %c4_i32_166 : i32 to vector<8x5xi32>
    %570 = arith.cmpi eq, %277, %569 : vector<8x5xi32>
    %571 = vector.shape_cast %562 : vector<8x1xf32> to vector<8x1xf32>
    %572 = vector.broadcast %571 : vector<8x1xf32> to vector<8x5xf32>
    %573 = arith.select %570, %572, %555 : vector<8x5xi1>, vector<8x5xf32>
    %574 = vector.shape_cast %568 : vector<8x1xi32> to vector<8x1xi32>
    %575 = vector.broadcast %574 : vector<8x1xi32> to vector<8x5xi32>
    %576 = arith.select %570, %575, %558 : vector<8x5xi1>, vector<8x5xi32>
    %577 = arith.index_cast %482 : i32 to index
    %c0_167 = arith.constant 0 : index
    %578 = vector.load %arg16[%577, %c0_167] : memref<64x5xi32, #tpu.memory_space<vmem>>, vector<8x5xi32>
    tpu.vector_store %arg16[%577, %c0_167], %576 {strides = array<i32>} : memref<64x5xi32, #tpu.memory_space<vmem>>, vector<8x5xi32>,
    %579 = arith.addf %573, %484 : vector<8x5xf32>
    %c3_i32_168 = arith.constant 3 : i32
    %c8_i32_169 = arith.constant 8 : i32
    %580 = arith.muli %c3_i32_168, %c8_i32_169 : i32
    %581 = tpu.assume_multiple %580, 8 : i32
    %582 = arith.index_cast %581 : i32 to index
    %c0_170 = arith.constant 0 : index
    %583 = vector.load %arg15[%582, %c0_170] : memref<64x5xf32, #tpu.memory_space<vmem>>, vector<8x5xf32>
    %cst_171 = arith.constant 0.000000e+00 : f32
    %584 = vector.broadcast %cst_171 : f32 to vector<8x5xf32>
    %c0_i32_172 = arith.constant 0 : i32
    %585 = vector.broadcast %c0_i32_172 : i32 to vector<8x5xi32>
    %586 = vector.broadcast %272 : vector<1x5xf32> to vector<8x5xf32>
    %587 = arith.addf %579, %586 : vector<8x5xf32>
    %cst_173 = arith.constant dense<0xFF800000> : vector<8xf32>
    %588 = vector.multi_reduction <maximumf>, %587, %cst_173 [1] : vector<8x5xf32> to vector<8xf32>
    %589 = vector.shape_cast %588 : vector<8xf32> to vector<8x1xf32>
    %590 = vector.broadcast %589 : vector<8x1xf32> to vector<8x5xf32>
    %591 = arith.cmpf oeq, %587, %590 : vector<8x5xf32>
    %c5_i32_174 = arith.constant 5 : i32
    %592 = vector.broadcast %c5_i32_174 : i32 to vector<8x5xi32>
    %593 = arith.select %591, %277, %592 : vector<8x5xi1>, vector<8x5xi32>
    %cst_175 = arith.constant dense<2147483647> : vector<8xi32>
    %594 = vector.multi_reduction <minsi>, %593, %cst_175 [1] : vector<8x5xi32> to vector<8xi32>
    %595 = vector.shape_cast %594 : vector<8xi32> to vector<8x1xi32>
    %c0_i32_176 = arith.constant 0 : i32
    %596 = vector.broadcast %c0_i32_176 : i32 to vector<8x5xi32>
    %597 = arith.cmpi eq, %277, %596 : vector<8x5xi32>
    %598 = vector.shape_cast %589 : vector<8x1xf32> to vector<8x1xf32>
    %599 = vector.broadcast %598 : vector<8x1xf32> to vector<8x5xf32>
    %600 = arith.select %597, %599, %584 : vector<8x5xi1>, vector<8x5xf32>
    %601 = vector.shape_cast %595 : vector<8x1xi32> to vector<8x1xi32>
    %602 = vector.broadcast %601 : vector<8x1xi32> to vector<8x5xi32>
    %603 = arith.select %597, %602, %585 : vector<8x5xi1>, vector<8x5xi32>
    %604 = vector.broadcast %273 : vector<1x5xf32> to vector<8x5xf32>
    %605 = arith.addf %579, %604 : vector<8x5xf32>
    %cst_177 = arith.constant dense<0xFF800000> : vector<8xf32>
    %606 = vector.multi_reduction <maximumf>, %605, %cst_177 [1] : vector<8x5xf32> to vector<8xf32>
    %607 = vector.shape_cast %606 : vector<8xf32> to vector<8x1xf32>
    %608 = vector.broadcast %607 : vector<8x1xf32> to vector<8x5xf32>
    %609 = arith.cmpf oeq, %605, %608 : vector<8x5xf32>
    %c5_i32_178 = arith.constant 5 : i32
    %610 = vector.broadcast %c5_i32_178 : i32 to vector<8x5xi32>
    %611 = arith.select %609, %277, %610 : vector<8x5xi1>, vector<8x5xi32>
    %cst_179 = arith.constant dense<2147483647> : vector<8xi32>
    %612 = vector.multi_reduction <minsi>, %611, %cst_179 [1] : vector<8x5xi32> to vector<8xi32>
    %613 = vector.shape_cast %612 : vector<8xi32> to vector<8x1xi32>
    %c1_i32_180 = arith.constant 1 : i32
    %614 = vector.broadcast %c1_i32_180 : i32 to vector<8x5xi32>
    %615 = arith.cmpi eq, %277, %614 : vector<8x5xi32>
    %616 = vector.shape_cast %607 : vector<8x1xf32> to vector<8x1xf32>
    %617 = vector.broadcast %616 : vector<8x1xf32> to vector<8x5xf32>
    %618 = arith.select %615, %617, %600 : vector<8x5xi1>, vector<8x5xf32>
    %619 = vector.shape_cast %613 : vector<8x1xi32> to vector<8x1xi32>
    %620 = vector.broadcast %619 : vector<8x1xi32> to vector<8x5xi32>
    %621 = arith.select %615, %620, %603 : vector<8x5xi1>, vector<8x5xi32>
    %622 = vector.broadcast %274 : vector<1x5xf32> to vector<8x5xf32>
    %623 = arith.addf %579, %622 : vector<8x5xf32>
    %cst_181 = arith.constant dense<0xFF800000> : vector<8xf32>
    %624 = vector.multi_reduction <maximumf>, %623, %cst_181 [1] : vector<8x5xf32> to vector<8xf32>
    %625 = vector.shape_cast %624 : vector<8xf32> to vector<8x1xf32>
    %626 = vector.broadcast %625 : vector<8x1xf32> to vector<8x5xf32>
    %627 = arith.cmpf oeq, %623, %626 : vector<8x5xf32>
    %c5_i32_182 = arith.constant 5 : i32
    %628 = vector.broadcast %c5_i32_182 : i32 to vector<8x5xi32>
    %629 = arith.select %627, %277, %628 : vector<8x5xi1>, vector<8x5xi32>
    %cst_183 = arith.constant dense<2147483647> : vector<8xi32>
    %630 = vector.multi_reduction <minsi>, %629, %cst_183 [1] : vector<8x5xi32> to vector<8xi32>
    %631 = vector.shape_cast %630 : vector<8xi32> to vector<8x1xi32>
    %c2_i32_184 = arith.constant 2 : i32
    %632 = vector.broadcast %c2_i32_184 : i32 to vector<8x5xi32>
    %633 = arith.cmpi eq, %277, %632 : vector<8x5xi32>
    %634 = vector.shape_cast %625 : vector<8x1xf32> to vector<8x1xf32>
    %635 = vector.broadcast %634 : vector<8x1xf32> to vector<8x5xf32>
    %636 = arith.select %633, %635, %618 : vector<8x5xi1>, vector<8x5xf32>
    %637 = vector.shape_cast %631 : vector<8x1xi32> to vector<8x1xi32>
    %638 = vector.broadcast %637 : vector<8x1xi32> to vector<8x5xi32>
    %639 = arith.select %633, %638, %621 : vector<8x5xi1>, vector<8x5xi32>
    %640 = vector.broadcast %275 : vector<1x5xf32> to vector<8x5xf32>
    %641 = arith.addf %579, %640 : vector<8x5xf32>
    %cst_185 = arith.constant dense<0xFF800000> : vector<8xf32>
    %642 = vector.multi_reduction <maximumf>, %641, %cst_185 [1] : vector<8x5xf32> to vector<8xf32>
    %643 = vector.shape_cast %642 : vector<8xf32> to vector<8x1xf32>
    %644 = vector.broadcast %643 : vector<8x1xf32> to vector<8x5xf32>
    %645 = arith.cmpf oeq, %641, %644 : vector<8x5xf32>
    %c5_i32_186 = arith.constant 5 : i32
    %646 = vector.broadcast %c5_i32_186 : i32 to vector<8x5xi32>
    %647 = arith.select %645, %277, %646 : vector<8x5xi1>, vector<8x5xi32>
    %cst_187 = arith.constant dense<2147483647> : vector<8xi32>
    %648 = vector.multi_reduction <minsi>, %647, %cst_187 [1] : vector<8x5xi32> to vector<8xi32>
    %649 = vector.shape_cast %648 : vector<8xi32> to vector<8x1xi32>
    %c3_i32_188 = arith.constant 3 : i32
    %650 = vector.broadcast %c3_i32_188 : i32 to vector<8x5xi32>
    %651 = arith.cmpi eq, %277, %650 : vector<8x5xi32>
    %652 = vector.shape_cast %643 : vector<8x1xf32> to vector<8x1xf32>
    %653 = vector.broadcast %652 : vector<8x1xf32> to vector<8x5xf32>
    %654 = arith.select %651, %653, %636 : vector<8x5xi1>, vector<8x5xf32>
    %655 = vector.shape_cast %649 : vector<8x1xi32> to vector<8x1xi32>
    %656 = vector.broadcast %655 : vector<8x1xi32> to vector<8x5xi32>
    %657 = arith.select %651, %656, %639 : vector<8x5xi1>, vector<8x5xi32>
    %658 = vector.broadcast %276 : vector<1x5xf32> to vector<8x5xf32>
    %659 = arith.addf %579, %658 : vector<8x5xf32>
    %cst_189 = arith.constant dense<0xFF800000> : vector<8xf32>
    %660 = vector.multi_reduction <maximumf>, %659, %cst_189 [1] : vector<8x5xf32> to vector<8xf32>
    %661 = vector.shape_cast %660 : vector<8xf32> to vector<8x1xf32>
    %662 = vector.broadcast %661 : vector<8x1xf32> to vector<8x5xf32>
    %663 = arith.cmpf oeq, %659, %662 : vector<8x5xf32>
    %c5_i32_190 = arith.constant 5 : i32
    %664 = vector.broadcast %c5_i32_190 : i32 to vector<8x5xi32>
    %665 = arith.select %663, %277, %664 : vector<8x5xi1>, vector<8x5xi32>
    %cst_191 = arith.constant dense<2147483647> : vector<8xi32>
    %666 = vector.multi_reduction <minsi>, %665, %cst_191 [1] : vector<8x5xi32> to vector<8xi32>
    %667 = vector.shape_cast %666 : vector<8xi32> to vector<8x1xi32>
    %c4_i32_192 = arith.constant 4 : i32
    %668 = vector.broadcast %c4_i32_192 : i32 to vector<8x5xi32>
    %669 = arith.cmpi eq, %277, %668 : vector<8x5xi32>
    %670 = vector.shape_cast %661 : vector<8x1xf32> to vector<8x1xf32>
    %671 = vector.broadcast %670 : vector<8x1xf32> to vector<8x5xf32>
    %672 = arith.select %669, %671, %654 : vector<8x5xi1>, vector<8x5xf32>
    %673 = vector.shape_cast %667 : vector<8x1xi32> to vector<8x1xi32>
    %674 = vector.broadcast %673 : vector<8x1xi32> to vector<8x5xi32>
    %675 = arith.select %669, %674, %657 : vector<8x5xi1>, vector<8x5xi32>
    %676 = arith.index_cast %581 : i32 to index
    %c0_193 = arith.constant 0 : index
    %677 = vector.load %arg16[%676, %c0_193] : memref<64x5xi32, #tpu.memory_space<vmem>>, vector<8x5xi32>
    tpu.vector_store %arg16[%676, %c0_193], %675 {strides = array<i32>} : memref<64x5xi32, #tpu.memory_space<vmem>>, vector<8x5xi32>,
    %678 = arith.addf %672, %583 : vector<8x5xf32>
    %c4_i32_194 = arith.constant 4 : i32
    %c8_i32_195 = arith.constant 8 : i32
    %679 = arith.muli %c4_i32_194, %c8_i32_195 : i32
    %680 = tpu.assume_multiple %679, 8 : i32
    %681 = arith.index_cast %680 : i32 to index
    %c0_196 = arith.constant 0 : index
    %682 = vector.load %arg15[%681, %c0_196] : memref<64x5xf32, #tpu.memory_space<vmem>>, vector<8x5xf32>
    %cst_197 = arith.constant 0.000000e+00 : f32
    %683 = vector.broadcast %cst_197 : f32 to vector<8x5xf32>
    %c0_i32_198 = arith.constant 0 : i32
    %684 = vector.broadcast %c0_i32_198 : i32 to vector<8x5xi32>
    %685 = vector.broadcast %272 : vector<1x5xf32> to vector<8x5xf32>
    %686 = arith.addf %678, %685 : vector<8x5xf32>
    %cst_199 = arith.constant dense<0xFF800000> : vector<8xf32>
    %687 = vector.multi_reduction <maximumf>, %686, %cst_199 [1] : vector<8x5xf32> to vector<8xf32>
    %688 = vector.shape_cast %687 : vector<8xf32> to vector<8x1xf32>
    %689 = vector.broadcast %688 : vector<8x1xf32> to vector<8x5xf32>
    %690 = arith.cmpf oeq, %686, %689 : vector<8x5xf32>
    %c5_i32_200 = arith.constant 5 : i32
    %691 = vector.broadcast %c5_i32_200 : i32 to vector<8x5xi32>
    %692 = arith.select %690, %277, %691 : vector<8x5xi1>, vector<8x5xi32>
    %cst_201 = arith.constant dense<2147483647> : vector<8xi32>
    %693 = vector.multi_reduction <minsi>, %692, %cst_201 [1] : vector<8x5xi32> to vector<8xi32>
    %694 = vector.shape_cast %693 : vector<8xi32> to vector<8x1xi32>
    %c0_i32_202 = arith.constant 0 : i32
    %695 = vector.broadcast %c0_i32_202 : i32 to vector<8x5xi32>
    %696 = arith.cmpi eq, %277, %695 : vector<8x5xi32>
    %697 = vector.shape_cast %688 : vector<8x1xf32> to vector<8x1xf32>
    %698 = vector.broadcast %697 : vector<8x1xf32> to vector<8x5xf32>
    %699 = arith.select %696, %698, %683 : vector<8x5xi1>, vector<8x5xf32>
    %700 = vector.shape_cast %694 : vector<8x1xi32> to vector<8x1xi32>
    %701 = vector.broadcast %700 : vector<8x1xi32> to vector<8x5xi32>
    %702 = arith.select %696, %701, %684 : vector<8x5xi1>, vector<8x5xi32>
    %703 = vector.broadcast %273 : vector<1x5xf32> to vector<8x5xf32>
    %704 = arith.addf %678, %703 : vector<8x5xf32>
    %cst_203 = arith.constant dense<0xFF800000> : vector<8xf32>
    %705 = vector.multi_reduction <maximumf>, %704, %cst_203 [1] : vector<8x5xf32> to vector<8xf32>
    %706 = vector.shape_cast %705 : vector<8xf32> to vector<8x1xf32>
    %707 = vector.broadcast %706 : vector<8x1xf32> to vector<8x5xf32>
    %708 = arith.cmpf oeq, %704, %707 : vector<8x5xf32>
    %c5_i32_204 = arith.constant 5 : i32
    %709 = vector.broadcast %c5_i32_204 : i32 to vector<8x5xi32>
    %710 = arith.select %708, %277, %709 : vector<8x5xi1>, vector<8x5xi32>
    %cst_205 = arith.constant dense<2147483647> : vector<8xi32>
    %711 = vector.multi_reduction <minsi>, %710, %cst_205 [1] : vector<8x5xi32> to vector<8xi32>
    %712 = vector.shape_cast %711 : vector<8xi32> to vector<8x1xi32>
    %c1_i32_206 = arith.constant 1 : i32
    %713 = vector.broadcast %c1_i32_206 : i32 to vector<8x5xi32>
    %714 = arith.cmpi eq, %277, %713 : vector<8x5xi32>
    %715 = vector.shape_cast %706 : vector<8x1xf32> to vector<8x1xf32>
    %716 = vector.broadcast %715 : vector<8x1xf32> to vector<8x5xf32>
    %717 = arith.select %714, %716, %699 : vector<8x5xi1>, vector<8x5xf32>
    %718 = vector.shape_cast %712 : vector<8x1xi32> to vector<8x1xi32>
    %719 = vector.broadcast %718 : vector<8x1xi32> to vector<8x5xi32>
    %720 = arith.select %714, %719, %702 : vector<8x5xi1>, vector<8x5xi32>
    %721 = vector.broadcast %274 : vector<1x5xf32> to vector<8x5xf32>
    %722 = arith.addf %678, %721 : vector<8x5xf32>
    %cst_207 = arith.constant dense<0xFF800000> : vector<8xf32>
    %723 = vector.multi_reduction <maximumf>, %722, %cst_207 [1] : vector<8x5xf32> to vector<8xf32>
    %724 = vector.shape_cast %723 : vector<8xf32> to vector<8x1xf32>
    %725 = vector.broadcast %724 : vector<8x1xf32> to vector<8x5xf32>
    %726 = arith.cmpf oeq, %722, %725 : vector<8x5xf32>
    %c5_i32_208 = arith.constant 5 : i32
    %727 = vector.broadcast %c5_i32_208 : i32 to vector<8x5xi32>
    %728 = arith.select %726, %277, %727 : vector<8x5xi1>, vector<8x5xi32>
    %cst_209 = arith.constant dense<2147483647> : vector<8xi32>
    %729 = vector.multi_reduction <minsi>, %728, %cst_209 [1] : vector<8x5xi32> to vector<8xi32>
    %730 = vector.shape_cast %729 : vector<8xi32> to vector<8x1xi32>
    %c2_i32_210 = arith.constant 2 : i32
    %731 = vector.broadcast %c2_i32_210 : i32 to vector<8x5xi32>
    %732 = arith.cmpi eq, %277, %731 : vector<8x5xi32>
    %733 = vector.shape_cast %724 : vector<8x1xf32> to vector<8x1xf32>
    %734 = vector.broadcast %733 : vector<8x1xf32> to vector<8x5xf32>
    %735 = arith.select %732, %734, %717 : vector<8x5xi1>, vector<8x5xf32>
    %736 = vector.shape_cast %730 : vector<8x1xi32> to vector<8x1xi32>
    %737 = vector.broadcast %736 : vector<8x1xi32> to vector<8x5xi32>
    %738 = arith.select %732, %737, %720 : vector<8x5xi1>, vector<8x5xi32>
    %739 = vector.broadcast %275 : vector<1x5xf32> to vector<8x5xf32>
    %740 = arith.addf %678, %739 : vector<8x5xf32>
    %cst_211 = arith.constant dense<0xFF800000> : vector<8xf32>
    %741 = vector.multi_reduction <maximumf>, %740, %cst_211 [1] : vector<8x5xf32> to vector<8xf32>
    %742 = vector.shape_cast %741 : vector<8xf32> to vector<8x1xf32>
    %743 = vector.broadcast %742 : vector<8x1xf32> to vector<8x5xf32>
    %744 = arith.cmpf oeq, %740, %743 : vector<8x5xf32>
    %c5_i32_212 = arith.constant 5 : i32
    %745 = vector.broadcast %c5_i32_212 : i32 to vector<8x5xi32>
    %746 = arith.select %744, %277, %745 : vector<8x5xi1>, vector<8x5xi32>
    %cst_213 = arith.constant dense<2147483647> : vector<8xi32>
    %747 = vector.multi_reduction <minsi>, %746, %cst_213 [1] : vector<8x5xi32> to vector<8xi32>
    %748 = vector.shape_cast %747 : vector<8xi32> to vector<8x1xi32>
    %c3_i32_214 = arith.constant 3 : i32
    %749 = vector.broadcast %c3_i32_214 : i32 to vector<8x5xi32>
    %750 = arith.cmpi eq, %277, %749 : vector<8x5xi32>
    %751 = vector.shape_cast %742 : vector<8x1xf32> to vector<8x1xf32>
    %752 = vector.broadcast %751 : vector<8x1xf32> to vector<8x5xf32>
    %753 = arith.select %750, %752, %735 : vector<8x5xi1>, vector<8x5xf32>
    %754 = vector.shape_cast %748 : vector<8x1xi32> to vector<8x1xi32>
    %755 = vector.broadcast %754 : vector<8x1xi32> to vector<8x5xi32>
    %756 = arith.select %750, %755, %738 : vector<8x5xi1>, vector<8x5xi32>
    %757 = vector.broadcast %276 : vector<1x5xf32> to vector<8x5xf32>
    %758 = arith.addf %678, %757 : vector<8x5xf32>
    %cst_215 = arith.constant dense<0xFF800000> : vector<8xf32>
    %759 = vector.multi_reduction <maximumf>, %758, %cst_215 [1] : vector<8x5xf32> to vector<8xf32>
    %760 = vector.shape_cast %759 : vector<8xf32> to vector<8x1xf32>
    %761 = vector.broadcast %760 : vector<8x1xf32> to vector<8x5xf32>
    %762 = arith.cmpf oeq, %758, %761 : vector<8x5xf32>
    %c5_i32_216 = arith.constant 5 : i32
    %763 = vector.broadcast %c5_i32_216 : i32 to vector<8x5xi32>
    %764 = arith.select %762, %277, %763 : vector<8x5xi1>, vector<8x5xi32>
    %cst_217 = arith.constant dense<2147483647> : vector<8xi32>
    %765 = vector.multi_reduction <minsi>, %764, %cst_217 [1] : vector<8x5xi32> to vector<8xi32>
    %766 = vector.shape_cast %765 : vector<8xi32> to vector<8x1xi32>
    %c4_i32_218 = arith.constant 4 : i32
    %767 = vector.broadcast %c4_i32_218 : i32 to vector<8x5xi32>
    %768 = arith.cmpi eq, %277, %767 : vector<8x5xi32>
    %769 = vector.shape_cast %760 : vector<8x1xf32> to vector<8x1xf32>
    %770 = vector.broadcast %769 : vector<8x1xf32> to vector<8x5xf32>
    %771 = arith.select %768, %770, %753 : vector<8x5xi1>, vector<8x5xf32>
    %772 = vector.shape_cast %766 : vector<8x1xi32> to vector<8x1xi32>
    %773 = vector.broadcast %772 : vector<8x1xi32> to vector<8x5xi32>
    %774 = arith.select %768, %773, %756 : vector<8x5xi1>, vector<8x5xi32>
    %775 = arith.index_cast %680 : i32 to index
    %c0_219 = arith.constant 0 : index
    %776 = vector.load %arg16[%775, %c0_219] : memref<64x5xi32, #tpu.memory_space<vmem>>, vector<8x5xi32>
    tpu.vector_store %arg16[%775, %c0_219], %774 {strides = array<i32>} : memref<64x5xi32, #tpu.memory_space<vmem>>, vector<8x5xi32>,
    %777 = arith.addf %771, %682 : vector<8x5xf32>
    %c5_i32_220 = arith.constant 5 : i32
    %c8_i32_221 = arith.constant 8 : i32
    %778 = arith.muli %c5_i32_220, %c8_i32_221 : i32
    %779 = tpu.assume_multiple %778, 8 : i32
    %780 = arith.index_cast %779 : i32 to index
    %c0_222 = arith.constant 0 : index
    %781 = vector.load %arg15[%780, %c0_222] : memref<64x5xf32, #tpu.memory_space<vmem>>, vector<8x5xf32>
    %cst_223 = arith.constant 0.000000e+00 : f32
    %782 = vector.broadcast %cst_223 : f32 to vector<8x5xf32>
    %c0_i32_224 = arith.constant 0 : i32
    %783 = vector.broadcast %c0_i32_224 : i32 to vector<8x5xi32>
    %784 = vector.broadcast %272 : vector<1x5xf32> to vector<8x5xf32>
    %785 = arith.addf %777, %784 : vector<8x5xf32>
    %cst_225 = arith.constant dense<0xFF800000> : vector<8xf32>
    %786 = vector.multi_reduction <maximumf>, %785, %cst_225 [1] : vector<8x5xf32> to vector<8xf32>
    %787 = vector.shape_cast %786 : vector<8xf32> to vector<8x1xf32>
    %788 = vector.broadcast %787 : vector<8x1xf32> to vector<8x5xf32>
    %789 = arith.cmpf oeq, %785, %788 : vector<8x5xf32>
    %c5_i32_226 = arith.constant 5 : i32
    %790 = vector.broadcast %c5_i32_226 : i32 to vector<8x5xi32>
    %791 = arith.select %789, %277, %790 : vector<8x5xi1>, vector<8x5xi32>
    %cst_227 = arith.constant dense<2147483647> : vector<8xi32>
    %792 = vector.multi_reduction <minsi>, %791, %cst_227 [1] : vector<8x5xi32> to vector<8xi32>
    %793 = vector.shape_cast %792 : vector<8xi32> to vector<8x1xi32>
    %c0_i32_228 = arith.constant 0 : i32
    %794 = vector.broadcast %c0_i32_228 : i32 to vector<8x5xi32>
    %795 = arith.cmpi eq, %277, %794 : vector<8x5xi32>
    %796 = vector.shape_cast %787 : vector<8x1xf32> to vector<8x1xf32>
    %797 = vector.broadcast %796 : vector<8x1xf32> to vector<8x5xf32>
    %798 = arith.select %795, %797, %782 : vector<8x5xi1>, vector<8x5xf32>
    %799 = vector.shape_cast %793 : vector<8x1xi32> to vector<8x1xi32>
    %800 = vector.broadcast %799 : vector<8x1xi32> to vector<8x5xi32>
    %801 = arith.select %795, %800, %783 : vector<8x5xi1>, vector<8x5xi32>
    %802 = vector.broadcast %273 : vector<1x5xf32> to vector<8x5xf32>
    %803 = arith.addf %777, %802 : vector<8x5xf32>
    %cst_229 = arith.constant dense<0xFF800000> : vector<8xf32>
    %804 = vector.multi_reduction <maximumf>, %803, %cst_229 [1] : vector<8x5xf32> to vector<8xf32>
    %805 = vector.shape_cast %804 : vector<8xf32> to vector<8x1xf32>
    %806 = vector.broadcast %805 : vector<8x1xf32> to vector<8x5xf32>
    %807 = arith.cmpf oeq, %803, %806 : vector<8x5xf32>
    %c5_i32_230 = arith.constant 5 : i32
    %808 = vector.broadcast %c5_i32_230 : i32 to vector<8x5xi32>
    %809 = arith.select %807, %277, %808 : vector<8x5xi1>, vector<8x5xi32>
    %cst_231 = arith.constant dense<2147483647> : vector<8xi32>
    %810 = vector.multi_reduction <minsi>, %809, %cst_231 [1] : vector<8x5xi32> to vector<8xi32>
    %811 = vector.shape_cast %810 : vector<8xi32> to vector<8x1xi32>
    %c1_i32_232 = arith.constant 1 : i32
    %812 = vector.broadcast %c1_i32_232 : i32 to vector<8x5xi32>
    %813 = arith.cmpi eq, %277, %812 : vector<8x5xi32>
    %814 = vector.shape_cast %805 : vector<8x1xf32> to vector<8x1xf32>
    %815 = vector.broadcast %814 : vector<8x1xf32> to vector<8x5xf32>
    %816 = arith.select %813, %815, %798 : vector<8x5xi1>, vector<8x5xf32>
    %817 = vector.shape_cast %811 : vector<8x1xi32> to vector<8x1xi32>
    %818 = vector.broadcast %817 : vector<8x1xi32> to vector<8x5xi32>
    %819 = arith.select %813, %818, %801 : vector<8x5xi1>, vector<8x5xi32>
    %820 = vector.broadcast %274 : vector<1x5xf32> to vector<8x5xf32>
    %821 = arith.addf %777, %820 : vector<8x5xf32>
    %cst_233 = arith.constant dense<0xFF800000> : vector<8xf32>
    %822 = vector.multi_reduction <maximumf>, %821, %cst_233 [1] : vector<8x5xf32> to vector<8xf32>
    %823 = vector.shape_cast %822 : vector<8xf32> to vector<8x1xf32>
    %824 = vector.broadcast %823 : vector<8x1xf32> to vector<8x5xf32>
    %825 = arith.cmpf oeq, %821, %824 : vector<8x5xf32>
    %c5_i32_234 = arith.constant 5 : i32
    %826 = vector.broadcast %c5_i32_234 : i32 to vector<8x5xi32>
    %827 = arith.select %825, %277, %826 : vector<8x5xi1>, vector<8x5xi32>
    %cst_235 = arith.constant dense<2147483647> : vector<8xi32>
    %828 = vector.multi_reduction <minsi>, %827, %cst_235 [1] : vector<8x5xi32> to vector<8xi32>
    %829 = vector.shape_cast %828 : vector<8xi32> to vector<8x1xi32>
    %c2_i32_236 = arith.constant 2 : i32
    %830 = vector.broadcast %c2_i32_236 : i32 to vector<8x5xi32>
    %831 = arith.cmpi eq, %277, %830 : vector<8x5xi32>
    %832 = vector.shape_cast %823 : vector<8x1xf32> to vector<8x1xf32>
    %833 = vector.broadcast %832 : vector<8x1xf32> to vector<8x5xf32>
    %834 = arith.select %831, %833, %816 : vector<8x5xi1>, vector<8x5xf32>
    %835 = vector.shape_cast %829 : vector<8x1xi32> to vector<8x1xi32>
    %836 = vector.broadcast %835 : vector<8x1xi32> to vector<8x5xi32>
    %837 = arith.select %831, %836, %819 : vector<8x5xi1>, vector<8x5xi32>
    %838 = vector.broadcast %275 : vector<1x5xf32> to vector<8x5xf32>
    %839 = arith.addf %777, %838 : vector<8x5xf32>
    %cst_237 = arith.constant dense<0xFF800000> : vector<8xf32>
    %840 = vector.multi_reduction <maximumf>, %839, %cst_237 [1] : vector<8x5xf32> to vector<8xf32>
    %841 = vector.shape_cast %840 : vector<8xf32> to vector<8x1xf32>
    %842 = vector.broadcast %841 : vector<8x1xf32> to vector<8x5xf32>
    %843 = arith.cmpf oeq, %839, %842 : vector<8x5xf32>
    %c5_i32_238 = arith.constant 5 : i32
    %844 = vector.broadcast %c5_i32_238 : i32 to vector<8x5xi32>
    %845 = arith.select %843, %277, %844 : vector<8x5xi1>, vector<8x5xi32>
    %cst_239 = arith.constant dense<2147483647> : vector<8xi32>
    %846 = vector.multi_reduction <minsi>, %845, %cst_239 [1] : vector<8x5xi32> to vector<8xi32>
    %847 = vector.shape_cast %846 : vector<8xi32> to vector<8x1xi32>
    %c3_i32_240 = arith.constant 3 : i32
    %848 = vector.broadcast %c3_i32_240 : i32 to vector<8x5xi32>
    %849 = arith.cmpi eq, %277, %848 : vector<8x5xi32>
    %850 = vector.shape_cast %841 : vector<8x1xf32> to vector<8x1xf32>
    %851 = vector.broadcast %850 : vector<8x1xf32> to vector<8x5xf32>
    %852 = arith.select %849, %851, %834 : vector<8x5xi1>, vector<8x5xf32>
    %853 = vector.shape_cast %847 : vector<8x1xi32> to vector<8x1xi32>
    %854 = vector.broadcast %853 : vector<8x1xi32> to vector<8x5xi32>
    %855 = arith.select %849, %854, %837 : vector<8x5xi1>, vector<8x5xi32>
    %856 = vector.broadcast %276 : vector<1x5xf32> to vector<8x5xf32>
    %857 = arith.addf %777, %856 : vector<8x5xf32>
    %cst_241 = arith.constant dense<0xFF800000> : vector<8xf32>
    %858 = vector.multi_reduction <maximumf>, %857, %cst_241 [1] : vector<8x5xf32> to vector<8xf32>
    %859 = vector.shape_cast %858 : vector<8xf32> to vector<8x1xf32>
    %860 = vector.broadcast %859 : vector<8x1xf32> to vector<8x5xf32>
    %861 = arith.cmpf oeq, %857, %860 : vector<8x5xf32>
    %c5_i32_242 = arith.constant 5 : i32
    %862 = vector.broadcast %c5_i32_242 : i32 to vector<8x5xi32>
    %863 = arith.select %861, %277, %862 : vector<8x5xi1>, vector<8x5xi32>
    %cst_243 = arith.constant dense<2147483647> : vector<8xi32>
    %864 = vector.multi_reduction <minsi>, %863, %cst_243 [1] : vector<8x5xi32> to vector<8xi32>
    %865 = vector.shape_cast %864 : vector<8xi32> to vector<8x1xi32>
    %c4_i32_244 = arith.constant 4 : i32
    %866 = vector.broadcast %c4_i32_244 : i32 to vector<8x5xi32>
    %867 = arith.cmpi eq, %277, %866 : vector<8x5xi32>
    %868 = vector.shape_cast %859 : vector<8x1xf32> to vector<8x1xf32>
    %869 = vector.broadcast %868 : vector<8x1xf32> to vector<8x5xf32>
    %870 = arith.select %867, %869, %852 : vector<8x5xi1>, vector<8x5xf32>
    %871 = vector.shape_cast %865 : vector<8x1xi32> to vector<8x1xi32>
    %872 = vector.broadcast %871 : vector<8x1xi32> to vector<8x5xi32>
    %873 = arith.select %867, %872, %855 : vector<8x5xi1>, vector<8x5xi32>
    %874 = arith.index_cast %779 : i32 to index
    %c0_245 = arith.constant 0 : index
    %875 = vector.load %arg16[%874, %c0_245] : memref<64x5xi32, #tpu.memory_space<vmem>>, vector<8x5xi32>
    tpu.vector_store %arg16[%874, %c0_245], %873 {strides = array<i32>} : memref<64x5xi32, #tpu.memory_space<vmem>>, vector<8x5xi32>,
    %876 = arith.addf %870, %781 : vector<8x5xf32>
    %c6_i32_246 = arith.constant 6 : i32
    %c8_i32_247 = arith.constant 8 : i32
    %877 = arith.muli %c6_i32_246, %c8_i32_247 : i32
    %878 = tpu.assume_multiple %877, 8 : i32
    %879 = arith.index_cast %878 : i32 to index
    %c0_248 = arith.constant 0 : index
    %880 = vector.load %arg15[%879, %c0_248] : memref<64x5xf32, #tpu.memory_space<vmem>>, vector<8x5xf32>
    %cst_249 = arith.constant 0.000000e+00 : f32
    %881 = vector.broadcast %cst_249 : f32 to vector<8x5xf32>
    %c0_i32_250 = arith.constant 0 : i32
    %882 = vector.broadcast %c0_i32_250 : i32 to vector<8x5xi32>
    %883 = vector.broadcast %272 : vector<1x5xf32> to vector<8x5xf32>
    %884 = arith.addf %876, %883 : vector<8x5xf32>
    %cst_251 = arith.constant dense<0xFF800000> : vector<8xf32>
    %885 = vector.multi_reduction <maximumf>, %884, %cst_251 [1] : vector<8x5xf32> to vector<8xf32>
    %886 = vector.shape_cast %885 : vector<8xf32> to vector<8x1xf32>
    %887 = vector.broadcast %886 : vector<8x1xf32> to vector<8x5xf32>
    %888 = arith.cmpf oeq, %884, %887 : vector<8x5xf32>
    %c5_i32_252 = arith.constant 5 : i32
    %889 = vector.broadcast %c5_i32_252 : i32 to vector<8x5xi32>
    %890 = arith.select %888, %277, %889 : vector<8x5xi1>, vector<8x5xi32>
    %cst_253 = arith.constant dense<2147483647> : vector<8xi32>
    %891 = vector.multi_reduction <minsi>, %890, %cst_253 [1] : vector<8x5xi32> to vector<8xi32>
    %892 = vector.shape_cast %891 : vector<8xi32> to vector<8x1xi32>
    %c0_i32_254 = arith.constant 0 : i32
    %893 = vector.broadcast %c0_i32_254 : i32 to vector<8x5xi32>
    %894 = arith.cmpi eq, %277, %893 : vector<8x5xi32>
    %895 = vector.shape_cast %886 : vector<8x1xf32> to vector<8x1xf32>
    %896 = vector.broadcast %895 : vector<8x1xf32> to vector<8x5xf32>
    %897 = arith.select %894, %896, %881 : vector<8x5xi1>, vector<8x5xf32>
    %898 = vector.shape_cast %892 : vector<8x1xi32> to vector<8x1xi32>
    %899 = vector.broadcast %898 : vector<8x1xi32> to vector<8x5xi32>
    %900 = arith.select %894, %899, %882 : vector<8x5xi1>, vector<8x5xi32>
    %901 = vector.broadcast %273 : vector<1x5xf32> to vector<8x5xf32>
    %902 = arith.addf %876, %901 : vector<8x5xf32>
    %cst_255 = arith.constant dense<0xFF800000> : vector<8xf32>
    %903 = vector.multi_reduction <maximumf>, %902, %cst_255 [1] : vector<8x5xf32> to vector<8xf32>
    %904 = vector.shape_cast %903 : vector<8xf32> to vector<8x1xf32>
    %905 = vector.broadcast %904 : vector<8x1xf32> to vector<8x5xf32>
    %906 = arith.cmpf oeq, %902, %905 : vector<8x5xf32>
    %c5_i32_256 = arith.constant 5 : i32
    %907 = vector.broadcast %c5_i32_256 : i32 to vector<8x5xi32>
    %908 = arith.select %906, %277, %907 : vector<8x5xi1>, vector<8x5xi32>
    %cst_257 = arith.constant dense<2147483647> : vector<8xi32>
    %909 = vector.multi_reduction <minsi>, %908, %cst_257 [1] : vector<8x5xi32> to vector<8xi32>
    %910 = vector.shape_cast %909 : vector<8xi32> to vector<8x1xi32>
    %c1_i32_258 = arith.constant 1 : i32
    %911 = vector.broadcast %c1_i32_258 : i32 to vector<8x5xi32>
    %912 = arith.cmpi eq, %277, %911 : vector<8x5xi32>
    %913 = vector.shape_cast %904 : vector<8x1xf32> to vector<8x1xf32>
    %914 = vector.broadcast %913 : vector<8x1xf32> to vector<8x5xf32>
    %915 = arith.select %912, %914, %897 : vector<8x5xi1>, vector<8x5xf32>
    %916 = vector.shape_cast %910 : vector<8x1xi32> to vector<8x1xi32>
    %917 = vector.broadcast %916 : vector<8x1xi32> to vector<8x5xi32>
    %918 = arith.select %912, %917, %900 : vector<8x5xi1>, vector<8x5xi32>
    %919 = vector.broadcast %274 : vector<1x5xf32> to vector<8x5xf32>
    %920 = arith.addf %876, %919 : vector<8x5xf32>
    %cst_259 = arith.constant dense<0xFF800000> : vector<8xf32>
    %921 = vector.multi_reduction <maximumf>, %920, %cst_259 [1] : vector<8x5xf32> to vector<8xf32>
    %922 = vector.shape_cast %921 : vector<8xf32> to vector<8x1xf32>
    %923 = vector.broadcast %922 : vector<8x1xf32> to vector<8x5xf32>
    %924 = arith.cmpf oeq, %920, %923 : vector<8x5xf32>
    %c5_i32_260 = arith.constant 5 : i32
    %925 = vector.broadcast %c5_i32_260 : i32 to vector<8x5xi32>
    %926 = arith.select %924, %277, %925 : vector<8x5xi1>, vector<8x5xi32>
    %cst_261 = arith.constant dense<2147483647> : vector<8xi32>
    %927 = vector.multi_reduction <minsi>, %926, %cst_261 [1] : vector<8x5xi32> to vector<8xi32>
    %928 = vector.shape_cast %927 : vector<8xi32> to vector<8x1xi32>
    %c2_i32_262 = arith.constant 2 : i32
    %929 = vector.broadcast %c2_i32_262 : i32 to vector<8x5xi32>
    %930 = arith.cmpi eq, %277, %929 : vector<8x5xi32>
    %931 = vector.shape_cast %922 : vector<8x1xf32> to vector<8x1xf32>
    %932 = vector.broadcast %931 : vector<8x1xf32> to vector<8x5xf32>
    %933 = arith.select %930, %932, %915 : vector<8x5xi1>, vector<8x5xf32>
    %934 = vector.shape_cast %928 : vector<8x1xi32> to vector<8x1xi32>
    %935 = vector.broadcast %934 : vector<8x1xi32> to vector<8x5xi32>
    %936 = arith.select %930, %935, %918 : vector<8x5xi1>, vector<8x5xi32>
    %937 = vector.broadcast %275 : vector<1x5xf32> to vector<8x5xf32>
    %938 = arith.addf %876, %937 : vector<8x5xf32>
    %cst_263 = arith.constant dense<0xFF800000> : vector<8xf32>
    %939 = vector.multi_reduction <maximumf>, %938, %cst_263 [1] : vector<8x5xf32> to vector<8xf32>
    %940 = vector.shape_cast %939 : vector<8xf32> to vector<8x1xf32>
    %941 = vector.broadcast %940 : vector<8x1xf32> to vector<8x5xf32>
    %942 = arith.cmpf oeq, %938, %941 : vector<8x5xf32>
    %c5_i32_264 = arith.constant 5 : i32
    %943 = vector.broadcast %c5_i32_264 : i32 to vector<8x5xi32>
    %944 = arith.select %942, %277, %943 : vector<8x5xi1>, vector<8x5xi32>
    %cst_265 = arith.constant dense<2147483647> : vector<8xi32>
    %945 = vector.multi_reduction <minsi>, %944, %cst_265 [1] : vector<8x5xi32> to vector<8xi32>
    %946 = vector.shape_cast %945 : vector<8xi32> to vector<8x1xi32>
    %c3_i32_266 = arith.constant 3 : i32
    %947 = vector.broadcast %c3_i32_266 : i32 to vector<8x5xi32>
    %948 = arith.cmpi eq, %277, %947 : vector<8x5xi32>
    %949 = vector.shape_cast %940 : vector<8x1xf32> to vector<8x1xf32>
    %950 = vector.broadcast %949 : vector<8x1xf32> to vector<8x5xf32>
    %951 = arith.select %948, %950, %933 : vector<8x5xi1>, vector<8x5xf32>
    %952 = vector.shape_cast %946 : vector<8x1xi32> to vector<8x1xi32>
    %953 = vector.broadcast %952 : vector<8x1xi32> to vector<8x5xi32>
    %954 = arith.select %948, %953, %936 : vector<8x5xi1>, vector<8x5xi32>
    %955 = vector.broadcast %276 : vector<1x5xf32> to vector<8x5xf32>
    %956 = arith.addf %876, %955 : vector<8x5xf32>
    %cst_267 = arith.constant dense<0xFF800000> : vector<8xf32>
    %957 = vector.multi_reduction <maximumf>, %956, %cst_267 [1] : vector<8x5xf32> to vector<8xf32>
    %958 = vector.shape_cast %957 : vector<8xf32> to vector<8x1xf32>
    %959 = vector.broadcast %958 : vector<8x1xf32> to vector<8x5xf32>
    %960 = arith.cmpf oeq, %956, %959 : vector<8x5xf32>
    %c5_i32_268 = arith.constant 5 : i32
    %961 = vector.broadcast %c5_i32_268 : i32 to vector<8x5xi32>
    %962 = arith.select %960, %277, %961 : vector<8x5xi1>, vector<8x5xi32>
    %cst_269 = arith.constant dense<2147483647> : vector<8xi32>
    %963 = vector.multi_reduction <minsi>, %962, %cst_269 [1] : vector<8x5xi32> to vector<8xi32>
    %964 = vector.shape_cast %963 : vector<8xi32> to vector<8x1xi32>
    %c4_i32_270 = arith.constant 4 : i32
    %965 = vector.broadcast %c4_i32_270 : i32 to vector<8x5xi32>
    %966 = arith.cmpi eq, %277, %965 : vector<8x5xi32>
    %967 = vector.shape_cast %958 : vector<8x1xf32> to vector<8x1xf32>
    %968 = vector.broadcast %967 : vector<8x1xf32> to vector<8x5xf32>
    %969 = arith.select %966, %968, %951 : vector<8x5xi1>, vector<8x5xf32>
    %970 = vector.shape_cast %964 : vector<8x1xi32> to vector<8x1xi32>
    %971 = vector.broadcast %970 : vector<8x1xi32> to vector<8x5xi32>
    %972 = arith.select %966, %971, %954 : vector<8x5xi1>, vector<8x5xi32>
    %973 = arith.index_cast %878 : i32 to index
    %c0_271 = arith.constant 0 : index
    %974 = vector.load %arg16[%973, %c0_271] : memref<64x5xi32, #tpu.memory_space<vmem>>, vector<8x5xi32>
    tpu.vector_store %arg16[%973, %c0_271], %972 {strides = array<i32>} : memref<64x5xi32, #tpu.memory_space<vmem>>, vector<8x5xi32>,
    %975 = arith.addf %969, %880 : vector<8x5xf32>
    %c7_i32_272 = arith.constant 7 : i32
    %c8_i32_273 = arith.constant 8 : i32
    %976 = arith.muli %c7_i32_272, %c8_i32_273 : i32
    %977 = tpu.assume_multiple %976, 8 : i32
    %978 = arith.index_cast %977 : i32 to index
    %c0_274 = arith.constant 0 : index
    %979 = vector.load %arg15[%978, %c0_274] : memref<64x5xf32, #tpu.memory_space<vmem>>, vector<8x5xf32>
    %cst_275 = arith.constant 0.000000e+00 : f32
    %980 = vector.broadcast %cst_275 : f32 to vector<8x5xf32>
    %c0_i32_276 = arith.constant 0 : i32
    %981 = vector.broadcast %c0_i32_276 : i32 to vector<8x5xi32>
    %982 = vector.broadcast %272 : vector<1x5xf32> to vector<8x5xf32>
    %983 = arith.addf %975, %982 : vector<8x5xf32>
    %cst_277 = arith.constant dense<0xFF800000> : vector<8xf32>
    %984 = vector.multi_reduction <maximumf>, %983, %cst_277 [1] : vector<8x5xf32> to vector<8xf32>
    %985 = vector.shape_cast %984 : vector<8xf32> to vector<8x1xf32>
    %986 = vector.broadcast %985 : vector<8x1xf32> to vector<8x5xf32>
    %987 = arith.cmpf oeq, %983, %986 : vector<8x5xf32>
    %c5_i32_278 = arith.constant 5 : i32
    %988 = vector.broadcast %c5_i32_278 : i32 to vector<8x5xi32>
    %989 = arith.select %987, %277, %988 : vector<8x5xi1>, vector<8x5xi32>
    %cst_279 = arith.constant dense<2147483647> : vector<8xi32>
    %990 = vector.multi_reduction <minsi>, %989, %cst_279 [1] : vector<8x5xi32> to vector<8xi32>
    %991 = vector.shape_cast %990 : vector<8xi32> to vector<8x1xi32>
    %c0_i32_280 = arith.constant 0 : i32
    %992 = vector.broadcast %c0_i32_280 : i32 to vector<8x5xi32>
    %993 = arith.cmpi eq, %277, %992 : vector<8x5xi32>
    %994 = vector.shape_cast %985 : vector<8x1xf32> to vector<8x1xf32>
    %995 = vector.broadcast %994 : vector<8x1xf32> to vector<8x5xf32>
    %996 = arith.select %993, %995, %980 : vector<8x5xi1>, vector<8x5xf32>
    %997 = vector.shape_cast %991 : vector<8x1xi32> to vector<8x1xi32>
    %998 = vector.broadcast %997 : vector<8x1xi32> to vector<8x5xi32>
    %999 = arith.select %993, %998, %981 : vector<8x5xi1>, vector<8x5xi32>
    %1000 = vector.broadcast %273 : vector<1x5xf32> to vector<8x5xf32>
    %1001 = arith.addf %975, %1000 : vector<8x5xf32>
    %cst_281 = arith.constant dense<0xFF800000> : vector<8xf32>
    %1002 = vector.multi_reduction <maximumf>, %1001, %cst_281 [1] : vector<8x5xf32> to vector<8xf32>
    %1003 = vector.shape_cast %1002 : vector<8xf32> to vector<8x1xf32>
    %1004 = vector.broadcast %1003 : vector<8x1xf32> to vector<8x5xf32>
    %1005 = arith.cmpf oeq, %1001, %1004 : vector<8x5xf32>
    %c5_i32_282 = arith.constant 5 : i32
    %1006 = vector.broadcast %c5_i32_282 : i32 to vector<8x5xi32>
    %1007 = arith.select %1005, %277, %1006 : vector<8x5xi1>, vector<8x5xi32>
    %cst_283 = arith.constant dense<2147483647> : vector<8xi32>
    %1008 = vector.multi_reduction <minsi>, %1007, %cst_283 [1] : vector<8x5xi32> to vector<8xi32>
    %1009 = vector.shape_cast %1008 : vector<8xi32> to vector<8x1xi32>
    %c1_i32_284 = arith.constant 1 : i32
    %1010 = vector.broadcast %c1_i32_284 : i32 to vector<8x5xi32>
    %1011 = arith.cmpi eq, %277, %1010 : vector<8x5xi32>
    %1012 = vector.shape_cast %1003 : vector<8x1xf32> to vector<8x1xf32>
    %1013 = vector.broadcast %1012 : vector<8x1xf32> to vector<8x5xf32>
    %1014 = arith.select %1011, %1013, %996 : vector<8x5xi1>, vector<8x5xf32>
    %1015 = vector.shape_cast %1009 : vector<8x1xi32> to vector<8x1xi32>
    %1016 = vector.broadcast %1015 : vector<8x1xi32> to vector<8x5xi32>
    %1017 = arith.select %1011, %1016, %999 : vector<8x5xi1>, vector<8x5xi32>
    %1018 = vector.broadcast %274 : vector<1x5xf32> to vector<8x5xf32>
    %1019 = arith.addf %975, %1018 : vector<8x5xf32>
    %cst_285 = arith.constant dense<0xFF800000> : vector<8xf32>
    %1020 = vector.multi_reduction <maximumf>, %1019, %cst_285 [1] : vector<8x5xf32> to vector<8xf32>
    %1021 = vector.shape_cast %1020 : vector<8xf32> to vector<8x1xf32>
    %1022 = vector.broadcast %1021 : vector<8x1xf32> to vector<8x5xf32>
    %1023 = arith.cmpf oeq, %1019, %1022 : vector<8x5xf32>
    %c5_i32_286 = arith.constant 5 : i32
    %1024 = vector.broadcast %c5_i32_286 : i32 to vector<8x5xi32>
    %1025 = arith.select %1023, %277, %1024 : vector<8x5xi1>, vector<8x5xi32>
    %cst_287 = arith.constant dense<2147483647> : vector<8xi32>
    %1026 = vector.multi_reduction <minsi>, %1025, %cst_287 [1] : vector<8x5xi32> to vector<8xi32>
    %1027 = vector.shape_cast %1026 : vector<8xi32> to vector<8x1xi32>
    %c2_i32_288 = arith.constant 2 : i32
    %1028 = vector.broadcast %c2_i32_288 : i32 to vector<8x5xi32>
    %1029 = arith.cmpi eq, %277, %1028 : vector<8x5xi32>
    %1030 = vector.shape_cast %1021 : vector<8x1xf32> to vector<8x1xf32>
    %1031 = vector.broadcast %1030 : vector<8x1xf32> to vector<8x5xf32>
    %1032 = arith.select %1029, %1031, %1014 : vector<8x5xi1>, vector<8x5xf32>
    %1033 = vector.shape_cast %1027 : vector<8x1xi32> to vector<8x1xi32>
    %1034 = vector.broadcast %1033 : vector<8x1xi32> to vector<8x5xi32>
    %1035 = arith.select %1029, %1034, %1017 : vector<8x5xi1>, vector<8x5xi32>
    %1036 = vector.broadcast %275 : vector<1x5xf32> to vector<8x5xf32>
    %1037 = arith.addf %975, %1036 : vector<8x5xf32>
    %cst_289 = arith.constant dense<0xFF800000> : vector<8xf32>
    %1038 = vector.multi_reduction <maximumf>, %1037, %cst_289 [1] : vector<8x5xf32> to vector<8xf32>
    %1039 = vector.shape_cast %1038 : vector<8xf32> to vector<8x1xf32>
    %1040 = vector.broadcast %1039 : vector<8x1xf32> to vector<8x5xf32>
    %1041 = arith.cmpf oeq, %1037, %1040 : vector<8x5xf32>
    %c5_i32_290 = arith.constant 5 : i32
    %1042 = vector.broadcast %c5_i32_290 : i32 to vector<8x5xi32>
    %1043 = arith.select %1041, %277, %1042 : vector<8x5xi1>, vector<8x5xi32>
    %cst_291 = arith.constant dense<2147483647> : vector<8xi32>
    %1044 = vector.multi_reduction <minsi>, %1043, %cst_291 [1] : vector<8x5xi32> to vector<8xi32>
    %1045 = vector.shape_cast %1044 : vector<8xi32> to vector<8x1xi32>
    %c3_i32_292 = arith.constant 3 : i32
    %1046 = vector.broadcast %c3_i32_292 : i32 to vector<8x5xi32>
    %1047 = arith.cmpi eq, %277, %1046 : vector<8x5xi32>
    %1048 = vector.shape_cast %1039 : vector<8x1xf32> to vector<8x1xf32>
    %1049 = vector.broadcast %1048 : vector<8x1xf32> to vector<8x5xf32>
    %1050 = arith.select %1047, %1049, %1032 : vector<8x5xi1>, vector<8x5xf32>
    %1051 = vector.shape_cast %1045 : vector<8x1xi32> to vector<8x1xi32>
    %1052 = vector.broadcast %1051 : vector<8x1xi32> to vector<8x5xi32>
    %1053 = arith.select %1047, %1052, %1035 : vector<8x5xi1>, vector<8x5xi32>
    %1054 = vector.broadcast %276 : vector<1x5xf32> to vector<8x5xf32>
    %1055 = arith.addf %975, %1054 : vector<8x5xf32>
    %cst_293 = arith.constant dense<0xFF800000> : vector<8xf32>
    %1056 = vector.multi_reduction <maximumf>, %1055, %cst_293 [1] : vector<8x5xf32> to vector<8xf32>
    %1057 = vector.shape_cast %1056 : vector<8xf32> to vector<8x1xf32>
    %1058 = vector.broadcast %1057 : vector<8x1xf32> to vector<8x5xf32>
    %1059 = arith.cmpf oeq, %1055, %1058 : vector<8x5xf32>
    %c5_i32_294 = arith.constant 5 : i32
    %1060 = vector.broadcast %c5_i32_294 : i32 to vector<8x5xi32>
    %1061 = arith.select %1059, %277, %1060 : vector<8x5xi1>, vector<8x5xi32>
    %cst_295 = arith.constant dense<2147483647> : vector<8xi32>
    %1062 = vector.multi_reduction <minsi>, %1061, %cst_295 [1] : vector<8x5xi32> to vector<8xi32>
    %1063 = vector.shape_cast %1062 : vector<8xi32> to vector<8x1xi32>
    %c4_i32_296 = arith.constant 4 : i32
    %1064 = vector.broadcast %c4_i32_296 : i32 to vector<8x5xi32>
    %1065 = arith.cmpi eq, %277, %1064 : vector<8x5xi32>
    %1066 = vector.shape_cast %1057 : vector<8x1xf32> to vector<8x1xf32>
    %1067 = vector.broadcast %1066 : vector<8x1xf32> to vector<8x5xf32>
    %1068 = arith.select %1065, %1067, %1050 : vector<8x5xi1>, vector<8x5xf32>
    %1069 = vector.shape_cast %1063 : vector<8x1xi32> to vector<8x1xi32>
    %1070 = vector.broadcast %1069 : vector<8x1xi32> to vector<8x5xi32>
    %1071 = arith.select %1065, %1070, %1053 : vector<8x5xi1>, vector<8x5xi32>
    %1072 = arith.index_cast %977 : i32 to index
    %c0_297 = arith.constant 0 : index
    %1073 = vector.load %arg16[%1072, %c0_297] : memref<64x5xi32, #tpu.memory_space<vmem>>, vector<8x5xi32>
    tpu.vector_store %arg16[%1072, %c0_297], %1071 {strides = array<i32>} : memref<64x5xi32, #tpu.memory_space<vmem>>, vector<8x5xi32>,
    %1074 = arith.addf %1068, %979 : vector<8x5xf32>
    %c8_i32_298 = arith.constant 8 : i32
    %1075 = vector.broadcast %276 : vector<1x5xf32> to vector<8x5xf32>
    %1076 = arith.addf %1074, %1075 : vector<8x5xf32>
    %cst_299 = arith.constant dense<0xFF800000> : vector<8xf32>
    %1077 = vector.multi_reduction <maximumf>, %1076, %cst_299 [1] : vector<8x5xf32> to vector<8xf32>
    %1078 = vector.shape_cast %1077 : vector<8xf32> to vector<8x1xf32>
    %c0_300 = arith.constant 0 : index
    %c0_301 = arith.constant 0 : index
    %1079 = vector.load %arg11[%c0_300, %c0_301] : memref<8x1xf32, #tpu.memory_space<vmem>>, vector<8x1xf32>
    tpu.vector_store %arg11[%c0_300, %c0_301], %1078 {strides = array<i32>} : memref<8x1xf32, #tpu.memory_space<vmem>>, vector<8x1xf32>,
    %1080 = vector.broadcast %1078 : vector<8x1xf32> to vector<8x5xf32>
    %1081 = arith.cmpf oeq, %1076, %1080 : vector<8x5xf32>
    %c5_i32_302 = arith.constant 5 : i32
    %1082 = vector.broadcast %c5_i32_302 : i32 to vector<8x5xi32>
    %1083 = arith.select %1081, %277, %1082 : vector<8x5xi1>, vector<8x5xi32>
    %cst_303 = arith.constant dense<2147483647> : vector<8xi32>
    %1084 = vector.multi_reduction <minsi>, %1083, %cst_303 [1] : vector<8x5xi32> to vector<8xi32>
    %1085 = vector.shape_cast %1084 : vector<8xi32> to vector<8x1xi32>
    %1086 = tpu.iota {dimensions = array<i32: 1>} : vector<8x8xi32>
    %c7_i32_304 = arith.constant 7 : i32
    %1087 = vector.broadcast %c7_i32_304 : i32 to vector<8x8xi32>
    %1088 = arith.cmpi eq, %1086, %1087 : vector<8x8xi32>
    %c0_i32_305 = arith.constant 0 : i32
    %1089 = vector.shape_cast %1085 : vector<8x1xi32> to vector<8x1xi32>
    %1090 = vector.broadcast %1089 : vector<8x1xi32> to vector<8x8xi32>
    %1091 = vector.broadcast %c0_i32_305 : i32 to vector<8x8xi32>
    %1092 = arith.select %1088, %1090, %1091 : vector<8x8xi1>, vector<8x8xi32>
    %c0_i32_306 = arith.constant 0 : i32
    %c7_i32_307 = arith.constant 7 : i32
    %1093 = arith.subi %c7_i32_307, %c0_i32_306 : i32
    %c8_i32_308 = arith.constant 8 : i32
    %1094 = arith.muli %1093, %c8_i32_308 : i32
    %1095 = tpu.assume_multiple %1094, 8 : i32
    %1096 = arith.index_cast %1095 : i32 to index
    %c0_309 = arith.constant 0 : index
    %1097 = vector.load %arg16[%1096, %c0_309] : memref<64x5xi32, #tpu.memory_space<vmem>>, vector<8x5xi32>
    %1098 = vector.broadcast %1085 : vector<8x1xi32> to vector<8x5xi32>
    %1099 = arith.cmpi eq, %277, %1098 : vector<8x5xi32>
    %c0_i32_310 = arith.constant 0 : i32
    %1100 = vector.broadcast %c0_i32_310 : i32 to vector<8x5xi32>
    %1101 = arith.select %1099, %1097, %1100 : vector<8x5xi1>, vector<8x5xi32>
    %cst_311 = arith.constant dense<0> : vector<8xi32>
    %1102 = vector.multi_reduction <add>, %1101, %cst_311 [1] : vector<8x5xi32> to vector<8xi32>
    %1103 = vector.shape_cast %1102 : vector<8xi32> to vector<8x1xi32>
    %c1_i32_312 = arith.constant 1 : i32
    %1104 = arith.subi %1093, %c1_i32_312 : i32
    %1105 = vector.broadcast %1104 : i32 to vector<8x8xi32>
    %1106 = arith.cmpi eq, %1086, %1105 : vector<8x8xi32>
    %1107 = vector.shape_cast %1103 : vector<8x1xi32> to vector<8x1xi32>
    %1108 = vector.broadcast %1107 : vector<8x1xi32> to vector<8x8xi32>
    %1109 = arith.select %1106, %1108, %1092 : vector<8x8xi1>, vector<8x8xi32>
    %c1_i32_313 = arith.constant 1 : i32
    %c7_i32_314 = arith.constant 7 : i32
    %1110 = arith.subi %c7_i32_314, %c1_i32_313 : i32
    %c8_i32_315 = arith.constant 8 : i32
    %1111 = arith.muli %1110, %c8_i32_315 : i32
    %1112 = tpu.assume_multiple %1111, 8 : i32
    %1113 = arith.index_cast %1112 : i32 to index
    %c0_316 = arith.constant 0 : index
    %1114 = vector.load %arg16[%1113, %c0_316] : memref<64x5xi32, #tpu.memory_space<vmem>>, vector<8x5xi32>
    %1115 = vector.broadcast %1103 : vector<8x1xi32> to vector<8x5xi32>
    %1116 = arith.cmpi eq, %277, %1115 : vector<8x5xi32>
    %c0_i32_317 = arith.constant 0 : i32
    %1117 = vector.broadcast %c0_i32_317 : i32 to vector<8x5xi32>
    %1118 = arith.select %1116, %1114, %1117 : vector<8x5xi1>, vector<8x5xi32>
    %cst_318 = arith.constant dense<0> : vector<8xi32>
    %1119 = vector.multi_reduction <add>, %1118, %cst_318 [1] : vector<8x5xi32> to vector<8xi32>
    %1120 = vector.shape_cast %1119 : vector<8xi32> to vector<8x1xi32>
    %c1_i32_319 = arith.constant 1 : i32
    %1121 = arith.subi %1110, %c1_i32_319 : i32
    %1122 = vector.broadcast %1121 : i32 to vector<8x8xi32>
    %1123 = arith.cmpi eq, %1086, %1122 : vector<8x8xi32>
    %1124 = vector.shape_cast %1120 : vector<8x1xi32> to vector<8x1xi32>
    %1125 = vector.broadcast %1124 : vector<8x1xi32> to vector<8x8xi32>
    %1126 = arith.select %1123, %1125, %1109 : vector<8x8xi1>, vector<8x8xi32>
    %c2_i32_320 = arith.constant 2 : i32
    %c7_i32_321 = arith.constant 7 : i32
    %1127 = arith.subi %c7_i32_321, %c2_i32_320 : i32
    %c8_i32_322 = arith.constant 8 : i32
    %1128 = arith.muli %1127, %c8_i32_322 : i32
    %1129 = tpu.assume_multiple %1128, 8 : i32
    %1130 = arith.index_cast %1129 : i32 to index
    %c0_323 = arith.constant 0 : index
    %1131 = vector.load %arg16[%1130, %c0_323] : memref<64x5xi32, #tpu.memory_space<vmem>>, vector<8x5xi32>
    %1132 = vector.broadcast %1120 : vector<8x1xi32> to vector<8x5xi32>
    %1133 = arith.cmpi eq, %277, %1132 : vector<8x5xi32>
    %c0_i32_324 = arith.constant 0 : i32
    %1134 = vector.broadcast %c0_i32_324 : i32 to vector<8x5xi32>
    %1135 = arith.select %1133, %1131, %1134 : vector<8x5xi1>, vector<8x5xi32>
    %cst_325 = arith.constant dense<0> : vector<8xi32>
    %1136 = vector.multi_reduction <add>, %1135, %cst_325 [1] : vector<8x5xi32> to vector<8xi32>
    %1137 = vector.shape_cast %1136 : vector<8xi32> to vector<8x1xi32>
    %c1_i32_326 = arith.constant 1 : i32
    %1138 = arith.subi %1127, %c1_i32_326 : i32
    %1139 = vector.broadcast %1138 : i32 to vector<8x8xi32>
    %1140 = arith.cmpi eq, %1086, %1139 : vector<8x8xi32>
    %1141 = vector.shape_cast %1137 : vector<8x1xi32> to vector<8x1xi32>
    %1142 = vector.broadcast %1141 : vector<8x1xi32> to vector<8x8xi32>
    %1143 = arith.select %1140, %1142, %1126 : vector<8x8xi1>, vector<8x8xi32>
    %c3_i32_327 = arith.constant 3 : i32
    %c7_i32_328 = arith.constant 7 : i32
    %1144 = arith.subi %c7_i32_328, %c3_i32_327 : i32
    %c8_i32_329 = arith.constant 8 : i32
    %1145 = arith.muli %1144, %c8_i32_329 : i32
    %1146 = tpu.assume_multiple %1145, 8 : i32
    %1147 = arith.index_cast %1146 : i32 to index
    %c0_330 = arith.constant 0 : index
    %1148 = vector.load %arg16[%1147, %c0_330] : memref<64x5xi32, #tpu.memory_space<vmem>>, vector<8x5xi32>
    %1149 = vector.broadcast %1137 : vector<8x1xi32> to vector<8x5xi32>
    %1150 = arith.cmpi eq, %277, %1149 : vector<8x5xi32>
    %c0_i32_331 = arith.constant 0 : i32
    %1151 = vector.broadcast %c0_i32_331 : i32 to vector<8x5xi32>
    %1152 = arith.select %1150, %1148, %1151 : vector<8x5xi1>, vector<8x5xi32>
    %cst_332 = arith.constant dense<0> : vector<8xi32>
    %1153 = vector.multi_reduction <add>, %1152, %cst_332 [1] : vector<8x5xi32> to vector<8xi32>
    %1154 = vector.shape_cast %1153 : vector<8xi32> to vector<8x1xi32>
    %c1_i32_333 = arith.constant 1 : i32
    %1155 = arith.subi %1144, %c1_i32_333 : i32
    %1156 = vector.broadcast %1155 : i32 to vector<8x8xi32>
    %1157 = arith.cmpi eq, %1086, %1156 : vector<8x8xi32>
    %1158 = vector.shape_cast %1154 : vector<8x1xi32> to vector<8x1xi32>
    %1159 = vector.broadcast %1158 : vector<8x1xi32> to vector<8x8xi32>
    %1160 = arith.select %1157, %1159, %1143 : vector<8x8xi1>, vector<8x8xi32>
    %c4_i32_334 = arith.constant 4 : i32
    %c7_i32_335 = arith.constant 7 : i32
    %1161 = arith.subi %c7_i32_335, %c4_i32_334 : i32
    %c8_i32_336 = arith.constant 8 : i32
    %1162 = arith.muli %1161, %c8_i32_336 : i32
    %1163 = tpu.assume_multiple %1162, 8 : i32
    %1164 = arith.index_cast %1163 : i32 to index
    %c0_337 = arith.constant 0 : index
    %1165 = vector.load %arg16[%1164, %c0_337] : memref<64x5xi32, #tpu.memory_space<vmem>>, vector<8x5xi32>
    %1166 = vector.broadcast %1154 : vector<8x1xi32> to vector<8x5xi32>
    %1167 = arith.cmpi eq, %277, %1166 : vector<8x5xi32>
    %c0_i32_338 = arith.constant 0 : i32
    %1168 = vector.broadcast %c0_i32_338 : i32 to vector<8x5xi32>
    %1169 = arith.select %1167, %1165, %1168 : vector<8x5xi1>, vector<8x5xi32>
    %cst_339 = arith.constant dense<0> : vector<8xi32>
    %1170 = vector.multi_reduction <add>, %1169, %cst_339 [1] : vector<8x5xi32> to vector<8xi32>
    %1171 = vector.shape_cast %1170 : vector<8xi32> to vector<8x1xi32>
    %c1_i32_340 = arith.constant 1 : i32
    %1172 = arith.subi %1161, %c1_i32_340 : i32
    %1173 = vector.broadcast %1172 : i32 to vector<8x8xi32>
    %1174 = arith.cmpi eq, %1086, %1173 : vector<8x8xi32>
    %1175 = vector.shape_cast %1171 : vector<8x1xi32> to vector<8x1xi32>
    %1176 = vector.broadcast %1175 : vector<8x1xi32> to vector<8x8xi32>
    %1177 = arith.select %1174, %1176, %1160 : vector<8x8xi1>, vector<8x8xi32>
    %c5_i32_341 = arith.constant 5 : i32
    %c7_i32_342 = arith.constant 7 : i32
    %1178 = arith.subi %c7_i32_342, %c5_i32_341 : i32
    %c8_i32_343 = arith.constant 8 : i32
    %1179 = arith.muli %1178, %c8_i32_343 : i32
    %1180 = tpu.assume_multiple %1179, 8 : i32
    %1181 = arith.index_cast %1180 : i32 to index
    %c0_344 = arith.constant 0 : index
    %1182 = vector.load %arg16[%1181, %c0_344] : memref<64x5xi32, #tpu.memory_space<vmem>>, vector<8x5xi32>
    %1183 = vector.broadcast %1171 : vector<8x1xi32> to vector<8x5xi32>
    %1184 = arith.cmpi eq, %277, %1183 : vector<8x5xi32>
    %c0_i32_345 = arith.constant 0 : i32
    %1185 = vector.broadcast %c0_i32_345 : i32 to vector<8x5xi32>
    %1186 = arith.select %1184, %1182, %1185 : vector<8x5xi1>, vector<8x5xi32>
    %cst_346 = arith.constant dense<0> : vector<8xi32>
    %1187 = vector.multi_reduction <add>, %1186, %cst_346 [1] : vector<8x5xi32> to vector<8xi32>
    %1188 = vector.shape_cast %1187 : vector<8xi32> to vector<8x1xi32>
    %c1_i32_347 = arith.constant 1 : i32
    %1189 = arith.subi %1178, %c1_i32_347 : i32
    %1190 = vector.broadcast %1189 : i32 to vector<8x8xi32>
    %1191 = arith.cmpi eq, %1086, %1190 : vector<8x8xi32>
    %1192 = vector.shape_cast %1188 : vector<8x1xi32> to vector<8x1xi32>
    %1193 = vector.broadcast %1192 : vector<8x1xi32> to vector<8x8xi32>
    %1194 = arith.select %1191, %1193, %1177 : vector<8x8xi1>, vector<8x8xi32>
    %c6_i32_348 = arith.constant 6 : i32
    %c7_i32_349 = arith.constant 7 : i32
    %1195 = arith.subi %c7_i32_349, %c6_i32_348 : i32
    %c8_i32_350 = arith.constant 8 : i32
    %1196 = arith.muli %1195, %c8_i32_350 : i32
    %1197 = tpu.assume_multiple %1196, 8 : i32
    %1198 = arith.index_cast %1197 : i32 to index
    %c0_351 = arith.constant 0 : index
    %1199 = vector.load %arg16[%1198, %c0_351] : memref<64x5xi32, #tpu.memory_space<vmem>>, vector<8x5xi32>
    %1200 = vector.broadcast %1188 : vector<8x1xi32> to vector<8x5xi32>
    %1201 = arith.cmpi eq, %277, %1200 : vector<8x5xi32>
    %c0_i32_352 = arith.constant 0 : i32
    %1202 = vector.broadcast %c0_i32_352 : i32 to vector<8x5xi32>
    %1203 = arith.select %1201, %1199, %1202 : vector<8x5xi1>, vector<8x5xi32>
    %cst_353 = arith.constant dense<0> : vector<8xi32>
    %1204 = vector.multi_reduction <add>, %1203, %cst_353 [1] : vector<8x5xi32> to vector<8xi32>
    %1205 = vector.shape_cast %1204 : vector<8xi32> to vector<8x1xi32>
    %c1_i32_354 = arith.constant 1 : i32
    %1206 = arith.subi %1195, %c1_i32_354 : i32
    %1207 = vector.broadcast %1206 : i32 to vector<8x8xi32>
    %1208 = arith.cmpi eq, %1086, %1207 : vector<8x8xi32>
    %1209 = vector.shape_cast %1205 : vector<8x1xi32> to vector<8x1xi32>
    %1210 = vector.broadcast %1209 : vector<8x1xi32> to vector<8x8xi32>
    %1211 = arith.select %1208, %1210, %1194 : vector<8x8xi1>, vector<8x8xi32>
    %c7_i32_355 = arith.constant 7 : i32
    %c0_356 = arith.constant 0 : index
    %c0_357 = arith.constant 0 : index
    %1212 = vector.load %arg10[%c0_356, %c0_357] : memref<8x8xi32, #tpu.memory_space<vmem>>, vector<8x8xi32>
    tpu.vector_store %arg10[%c0_356, %c0_357], %1211 {strides = array<i32>} : memref<8x8xi32, #tpu.memory_space<vmem>>, vector<8x8xi32>,
    %c0_358 = arith.constant 0 : index
    %c0_359 = arith.constant 0 : index
    %1213 = vector.load %arg16[%c0_358, %c0_359] : memref<64x5xi32, #tpu.memory_space<vmem>>, vector<8x5xi32>
    %1214 = vector.broadcast %1205 : vector<8x1xi32> to vector<8x5xi32>
    %1215 = arith.cmpi eq, %277, %1214 : vector<8x5xi32>
    %c0_i32_360 = arith.constant 0 : i32
    %1216 = vector.broadcast %c0_i32_360 : i32 to vector<8x5xi32>
    %1217 = arith.select %1215, %1213, %1216 : vector<8x5xi1>, vector<8x5xi32>
    %cst_361 = arith.constant dense<0> : vector<8xi32>
    %1218 = vector.multi_reduction <add>, %1217, %cst_361 [1] : vector<8x5xi32> to vector<8xi32>
    %1219 = vector.shape_cast %1218 : vector<8xi32> to vector<8x1xi32>
    %c0_362 = arith.constant 0 : index
    %c0_363 = arith.constant 0 : index
    %1220 = vector.load %arg12[%c0_362, %c0_363] : memref<8x1xi32, #tpu.memory_space<vmem>>, vector<8x1xi32>
    tpu.vector_store %arg12[%c0_362, %c0_363], %1219 {strides = array<i32>} : memref<8x1xi32, #tpu.memory_space<vmem>>, vector<8x1xi32>,
    return
  }
  func.func @transform_0(%arg0: i32) -> (i32, i32) {
    %c0_i32 = arith.constant 0 : i32
    %c0_i32_0 = arith.constant 0 : i32
    return %arg0, %c0_i32 : i32, i32
  }
  func.func @transform_1(%arg0: i32) -> (i32, i32) {
    %c0_i32 = arith.constant 0 : i32
    %c0_i32_0 = arith.constant 0 : i32
    %c0_i32_1 = arith.constant 0 : i32
    return %c0_i32, %c0_i32_0 : i32, i32
  }
  func.func @transform_2(%arg0: i32) -> (i32, i32) {
    %c0_i32 = arith.constant 0 : i32
    %c0_i32_0 = arith.constant 0 : i32
    %c0_i32_1 = arith.constant 0 : i32
    return %c0_i32, %c0_i32_0 : i32, i32
  }
  func.func @transform_3(%arg0: i32) -> (i32, i32) {
    %c0_i32 = arith.constant 0 : i32
    %c0_i32_0 = arith.constant 0 : i32
    %c0_i32_1 = arith.constant 0 : i32
    return %c0_i32, %c0_i32_0 : i32, i32
  }
  func.func @transform_4(%arg0: i32) -> (i32, i32) {
    %c0_i32 = arith.constant 0 : i32
    %c0_i32_0 = arith.constant 0 : i32
    return %arg0, %c0_i32 : i32, i32
  }
  func.func @transform_5(%arg0: i32) -> (i32, i32) {
    %c0_i32 = arith.constant 0 : i32
    %c0_i32_0 = arith.constant 0 : i32
    return %arg0, %c0_i32 : i32, i32
  }
  func.func @transform_6(%arg0: i32) -> (i32, i32) {
    %c0_i32 = arith.constant 0 : i32
    %c0_i32_0 = arith.constant 0 : i32
    %c0_i32_1 = arith.constant 0 : i32
    return %c0_i32, %c0_i32_0 : i32, i32
  }
  func.func @transform_7(%arg0: i32) -> (i32, i32) {
    %c0_i32 = arith.constant 0 : i32
    %c0_i32_0 = arith.constant 0 : i32
    %c0_i32_1 = arith.constant 0 : i32
    return %c0_i32, %c0_i32_0 : i32, i32
  }
  func.func @transform_8(%arg0: i32) -> (i32, i32) {
    %c0_i32 = arith.constant 0 : i32
    %c0_i32_0 = arith.constant 0 : i32
    %c0_i32_1 = arith.constant 0 : i32
    return %c0_i32, %c0_i32_0 : i32, i32
  }
  func.func @transform_9(%arg0: i32) -> (i32, i32) {
    %c0_i32 = arith.constant 0 : i32
    %c0_i32_0 = arith.constant 0 : i32
    return %arg0, %c0_i32 : i32, i32
  }
  func.func @transform_10(%arg0: i32) -> (i32, i32) {
    %c0_i32 = arith.constant 0 : i32
    %c0_i32_0 = arith.constant 0 : i32
    return %arg0, %c0_i32 : i32, i32
  }
  func.func @transform_11(%arg0: i32) -> (i32, i32) {
    %c0_i32 = arith.constant 0 : i32
    %c0_i32_0 = arith.constant 0 : i32
    return %arg0, %c0_i32 : i32, i32
  }
}

</mosaic_0001>

<llo_original>
// kernel: tpu_custom_call.1
$region0: #{tpu_custom_call.1}
  #allocation0 [shape = 'u32[]', space=smem, size = 0x4, offset = 0x4, fixed_abs, tag = 'smem constant byte address 0x4 - core index']
  #allocation1 [shape = 'u32[144,128]{1,0:T(1,128)}', space=vmem, size = 0x12000, scoped, tag = 'internal scratch']
  #allocation2 [shape = 'f32[64,128]{1,0:T(8,128)}', space=vmem, size = 0x8000, scoped, tag = 'scratch operand']
  #allocation3 [shape = 'f32[64,32]{1,0:T(8,128)}', space=vmem, size = 0x8000, scoped, tag = 'scratch operand']
  #allocation4 [shape = 'f32[64,5]{1,0:T(8,128)}', space=vmem, size = 0x8000, scoped, tag = 'scratch operand']
  #allocation5 [shape = 's32[64,5]{1,0:T(8,128)}', space=vmem, size = 0x8000, scoped, tag = 'scratch operand']
  %s0 = inlined_call_operand.vmem [shape: f32[128,64], index: 0, kind: input, shape index: {}]
  %s1 = inlined_call_operand.vmem [shape: f32[64,128], index: 1, kind: input, shape index: {}]
  %s2 = inlined_call_operand.vmem [shape: f32[1,128], index: 2, kind: input, shape index: {}]
  %s3 = inlined_call_operand.vmem [shape: f32[32,128], index: 3, kind: input, shape index: {}]
  %s4 = inlined_call_operand.vmem [shape: f32[16,32], index: 4, kind: input, shape index: {}]
  %s5 = inlined_call_operand.vmem [shape: f32[16,32], index: 5, kind: input, shape index: {}]
  %s6 = inlined_call_operand.vmem [shape: f32[32,5], index: 6, kind: input, shape index: {}]
  %s7 = inlined_call_operand.vmem [shape: f32[1,5], index: 7, kind: input, shape index: {}]
  %s8 = inlined_call_operand.vmem [shape: f32[5,5], index: 8, kind: input, shape index: {}]
  %s9 = inlined_call_operand.vmem [shape: s32[16,8], index: 9, kind: output, shape index: {0}]
  %s10 = inlined_call_operand.vmem [shape: f32[16,1], index: 10, kind: output, shape index: {1}]
  %s11 = inlined_call_operand.vmem [shape: s32[16,1], index: 11, kind: output, shape index: {2}]
  %12 = xla_tuple %s9, %s10, %s11
  %s13 = sld [smem:[#allocation0]]
  $region85: #{tpu_custom_call.1} parent=0
    _
  %s15 = ssub.s32 1, %s13
  %s16 = scalar_select 0, %s15, %s13
  loop: start=0, step=1, limit=4
  $region2: #{tpu_custom_call.1} parent=0 // loop_pre_header
    _
  $region3: #{tpu_custom_call.1} parent=0 // loop_header
    %s18 = sphi 0, %s22
    %p19 = scmp.ge.s32.totalorder %s18, 4
    %s28 = sphi 0, %s30
    %s31 = sphi 0, %s28
    %s32 = sphi 0, %s31
    %s48 = sphi 0, %s32
    %s52 = sphi 0, %s52
    %s54 = sphi 0, %s52
    %s55 = sphi 0, %s54
    %s69 = sphi 0, %s55
    %s73 = sphi 0, %s73
    %s75 = sphi 0, %s73
    %s76 = sphi 0, %s75
    %s90 = sphi 0, %s76
    %s94 = sphi 0, %s94
    %s96 = sphi 0, %s94
    %s97 = sphi 0, %s96
    %s111 = sphi 0, %s97
    %s117 = sphi 0, %s119
    %s120 = sphi 0, %s117
    %s121 = sphi 0, %s120
    %s137 = sphi 0, %s121
    %s143 = sphi 0, %s145
    %s146 = sphi 0, %s143
    %s147 = sphi 0, %s146
    %s163 = sphi 0, %s147
    %s167 = sphi 0, %s167
    %s169 = sphi 0, %s167
    %s170 = sphi 0, %s169
    %s184 = sphi 0, %s170
    %s188 = sphi 0, %s188
    %s190 = sphi 0, %s188
    %s191 = sphi 0, %s190
    %s205 = sphi 0, %s191
    %s209 = sphi 0, %s209
    %s211 = sphi 0, %s209
    %s212 = sphi 0, %s211
    %s226 = sphi 0, %s212
    %s232 = sphi 0, %s234
    %s235 = sphi 0, %s232
    %s236 = sphi 0, %s235
    %s252 = sphi 0, %s236
    %s258 = sphi 0, %s260
    %s261 = sphi 0, %s258
    %s262 = sphi 0, %s261
    %s278 = sphi 0, %s262
    %s284 = sphi 0, %s286
    %s287 = sphi 0, %s284
    %s288 = sphi 0, %s287
    %s304 = sphi 0, %s288
  $region4: #{tpu_custom_call.1} parent=0 // loop_header_branch
    %21 = sbr.rel (%p19) target = $region8
  $region5: #{tpu_custom_call.1} parent=0 // loop_body
    %s23 = ssub.s32 %s18, 1
    %s24 = ssub.s32 %s18, 2
    %s25 = sadd.s32 %s18, 1
    %s26 = ssub.s32 %s18, %s25
    %p27 = scmp.eq.s32.totalorder %s26, 0
    %s29 = sadd.s32 %s28, 1
    %s30 = scalar_select %p27, %s28, %s29
    %p33 = pneg %p27
    %p34 = scmp.eq.s32.totalorder %s18, 1
    %p35 = por %p33, %p34
    %p36 = scmp.ne.s32.totalorder %s28, %s31
    %p37 = scmp.eq.s32.totalorder %s18, 0
    %p38 = por %p36, %p37
    %p39 = scmp.ne.s32.totalorder %s28, %s31
    %p40 = scmp.eq.s32.totalorder %s23, 1
    %p41 = por %p39, %p40
    %p42 = scmp.ne.s32.totalorder %s31, %s32
    %p43 = scmp.eq.s32.totalorder %s23, 0
    %p44 = por %p42, %p43
    %p45 = scmp.ne.s32.totalorder %s31, %s32
    %p46 = scmp.eq.s32.totalorder %s24, 1
    %p47 = por %p45, %p46
    %p49 = scmp.ne.s32.totalorder %s32, %s48
    %p50 = scmp.eq.s32.totalorder %s24, 0
    %p51 = por %p49, %p50
    %s53 = sadd.s32 %s52, 1
    %p56 = scmp.eq.s32.totalorder %s18, 1
    %p57 = scmp.ne.s32.totalorder %s52, %s54
    %p58 = scmp.eq.s32.totalorder %s18, 0
    %p59 = por %p57, %p58
    %p60 = scmp.ne.s32.totalorder %s52, %s54
    %p61 = scmp.eq.s32.totalorder %s23, 1
    %p62 = por %p60, %p61
    %p63 = scmp.ne.s32.totalorder %s54, %s55
    %p64 = scmp.eq.s32.totalorder %s23, 0
    %p65 = por %p63, %p64
    %p66 = scmp.ne.s32.totalorder %s54, %s55
    %p67 = scmp.eq.s32.totalorder %s24, 1
    %p68 = por %p66, %p67
    %p70 = scmp.ne.s32.totalorder %s55, %s69
    %p71 = scmp.eq.s32.totalorder %s24, 0
    %p72 = por %p70, %p71
    %s74 = sadd.s32 %s73, 1
    %p77 = scmp.eq.s32.totalorder %s18, 1
    %p78 = scmp.ne.s32.totalorder %s73, %s75
    %p79 = scmp.eq.s32.totalorder %s18, 0
    %p80 = por %p78, %p79
    %p81 = scmp.ne.s32.totalorder %s73, %s75
    %p82 = scmp.eq.s32.totalorder %s23, 1
    %p83 = por %p81, %p82
    %p84 = scmp.ne.s32.totalorder %s75, %s76
    %p85 = scmp.eq.s32.totalorder %s23, 0
    %p86 = por %p84, %p85
    %p87 = scmp.ne.s32.totalorder %s75, %s76
    %p88 = scmp.eq.s32.totalorder %s24, 1
    %p89 = por %p87, %p88
    %p91 = scmp.ne.s32.totalorder %s76, %s90
    %p92 = scmp.eq.s32.totalorder %s24, 0
    %p93 = por %p91, %p92
    %s95 = sadd.s32 %s94, 1
    %p98 = scmp.eq.s32.totalorder %s18, 1
    %p99 = scmp.ne.s32.totalorder %s94, %s96
    %p100 = scmp.eq.s32.totalorder %s18, 0
    %p101 = por %p99, %p100
    %p102 = scmp.ne.s32.totalorder %s94, %s96
    %p103 = scmp.eq.s32.totalorder %s23, 1
    %p104 = por %p102, %p103
    %p105 = scmp.ne.s32.totalorder %s96, %s97
    %p106 = scmp.eq.s32.totalorder %s23, 0
    %p107 = por %p105, %p106
    %p108 = scmp.ne.s32.totalorder %s96, %s97
    %p109 = scmp.eq.s32.totalorder %s24, 1
    %p110 = por %p108, %p109
    %p112 = scmp.ne.s32.totalorder %s97, %s111
    %p113 = scmp.eq.s32.totalorder %s24, 0
    %p114 = por %p112, %p113
    %s115 = ssub.s32 %s18, %s25
    %p116 = scmp.eq.s32.totalorder %s115, 0
    %s118 = sadd.s32 %s117, 1
    %s119 = scalar_select %p116, %s117, %s118
    %p122 = pneg %p116
    %p123 = scmp.eq.s32.totalorder %s18, 1
    %p124 = por %p122, %p123
    %p125 = scmp.ne.s32.totalorder %s117, %s120
    %p126 = scmp.eq.s32.totalorder %s18, 0
    %p127 = por %p125, %p126
    %p128 = scmp.ne.s32.totalorder %s117, %s120
    %p129 = scmp.eq.s32.totalorder %s23, 1
    %p130 = por %p128, %p129
    %p131 = scmp.ne.s32.totalorder %s120, %s121
    %p132 = scmp.eq.s32.totalorder %s23, 0
    %p133 = por %p131, %p132
    %p134 = scmp.ne.s32.totalorder %s120, %s121
    %p135 = scmp.eq.s32.totalorder %s24, 1
    %p136 = por %p134, %p135
    %p138 = scmp.ne.s32.totalorder %s121, %s137
    %p139 = scmp.eq.s32.totalorder %s24, 0
    %p140 = por %p138, %p139
    %s141 = ssub.s32 %s18, %s25
    %p142 = scmp.eq.s32.totalorder %s141, 0
    %s144 = sadd.s32 %s143, 1
    %s145 = scalar_select %p142, %s143, %s144
    %p148 = pneg %p142
    %p149 = scmp.eq.s32.totalorder %s18, 1
    %p150 = por %p148, %p149
    %p151 = scmp.ne.s32.totalorder %s143, %s146
    %p152 = scmp.eq.s32.totalorder %s18, 0
    %p153 = por %p151, %p152
    %p154 = scmp.ne.s32.totalorder %s143, %s146
    %p155 = scmp.eq.s32.totalorder %s23, 1
    %p156 = por %p154, %p155
    %p157 = scmp.ne.s32.totalorder %s146, %s147
    %p158 = scmp.eq.s32.totalorder %s23, 0
    %p159 = por %p157, %p158
    %p160 = scmp.ne.s32.totalorder %s146, %s147
    %p161 = scmp.eq.s32.totalorder %s24, 1
    %p162 = por %p160, %p161
    %p164 = scmp.ne.s32.totalorder %s147, %s163
    %p165 = scmp.eq.s32.totalorder %s24, 0
    %p166 = por %p164, %p165
    %s168 = sadd.s32 %s167, 1
    %p171 = scmp.eq.s32.totalorder %s18, 1
    %p172 = scmp.ne.s32.totalorder %s167, %s169
    %p173 = scmp.eq.s32.totalorder %s18, 0
    %p174 = por %p172, %p173
    %p175 = scmp.ne.s32.totalorder %s167, %s169
    %p176 = scmp.eq.s32.totalorder %s23, 1
    %p177 = por %p175, %p176
    %p178 = scmp.ne.s32.totalorder %s169, %s170
    %p179 = scmp.eq.s32.totalorder %s23, 0
    %p180 = por %p178, %p179
    %p181 = scmp.ne.s32.totalorder %s169, %s170
    %p182 = scmp.eq.s32.totalorder %s24, 1
    %p183 = por %p181, %p182
    %p185 = scmp.ne.s32.totalorder %s170, %s184
    %p186 = scmp.eq.s32.totalorder %s24, 0
    %p187 = por %p185, %p186
    %s189 = sadd.s32 %s188, 1
    %p192 = scmp.eq.s32.totalorder %s18, 1
    %p193 = scmp.ne.s32.totalorder %s188, %s190
    %p194 = scmp.eq.s32.totalorder %s18, 0
    %p195 = por %p193, %p194
    %p196 = scmp.ne.s32.totalorder %s188, %s190
    %p197 = scmp.eq.s32.totalorder %s23, 1
    %p198 = por %p196, %p197
    %p199 = scmp.ne.s32.totalorder %s190, %s191
    %p200 = scmp.eq.s32.totalorder %s23, 0
    %p201 = por %p199, %p200
    %p202 = scmp.ne.s32.totalorder %s190, %s191
    %p203 = scmp.eq.s32.totalorder %s24, 1
    %p204 = por %p202, %p203
    %p206 = scmp.ne.s32.totalorder %s191, %s205
    %p207 = scmp.eq.s32.totalorder %s24, 0
    %p208 = por %p206, %p207
    %s210 = sadd.s32 %s209, 1
    %p213 = scmp.eq.s32.totalorder %s18, 1
    %p214 = scmp.ne.s32.totalorder %s209, %s211
    %p215 = scmp.eq.s32.totalorder %s18, 0
    %p216 = por %p214, %p215
    %p217 = scmp.ne.s32.totalorder %s209, %s211
    %p218 = scmp.eq.s32.totalorder %s23, 1
    %p219 = por %p217, %p218
    %p220 = scmp.ne.s32.totalorder %s211, %s212
    %p221 = scmp.eq.s32.totalorder %s23, 0
    %p222 = por %p220, %p221
    %p223 = scmp.ne.s32.totalorder %s211, %s212
    %p224 = scmp.eq.s32.totalorder %s24, 1
    %p225 = por %p223, %p224
    %p227 = scmp.ne.s32.totalorder %s212, %s226
    %p228 = scmp.eq.s32.totalorder %s24, 0
    %p229 = por %p227, %p228
    %s230 = ssub.s32 %s18, %s25
    %p231 = scmp.eq.s32.totalorder %s230, 0
    %s233 = sadd.s32 %s232, 1
    %s234 = scalar_select %p231, %s232, %s233
    %p237 = pneg %p231
    %p238 = scmp.eq.s32.totalorder %s18, 1
    %p239 = por %p237, %p238
    %p240 = scmp.ne.s32.totalorder %s232, %s235
    %p241 = scmp.eq.s32.totalorder %s18, 0
    %p242 = por %p240, %p241
    %p243 = scmp.ne.s32.totalorder %s232, %s235
    %p244 = scmp.eq.s32.totalorder %s23, 1
    %p245 = por %p243, %p244
    %p246 = scmp.ne.s32.totalorder %s235, %s236
    %p247 = scmp.eq.s32.totalorder %s23, 0
    %p248 = por %p246, %p247
    %p249 = scmp.ne.s32.totalorder %s235, %s236
    %p250 = scmp.eq.s32.totalorder %s24, 1
    %p251 = por %p249, %p250
    %p253 = scmp.ne.s32.totalorder %s236, %s252
    %p254 = scmp.eq.s32.totalorder %s24, 0
    %p255 = por %p253, %p254
    %s256 = ssub.s32 %s18, %s25
    %p257 = scmp.eq.s32.totalorder %s256, 0
    %s259 = sadd.s32 %s258, 1
    %s260 = scalar_select %p257, %s258, %s259
    %p263 = pneg %p257
    %p264 = scmp.eq.s32.totalorder %s18, 1
    %p265 = por %p263, %p264
    %p266 = scmp.ne.s32.totalorder %s258, %s261
    %p267 = scmp.eq.s32.totalorder %s18, 0
    %p268 = por %p266, %p267
    %p269 = scmp.ne.s32.totalorder %s258, %s261
    %p270 = scmp.eq.s32.totalorder %s23, 1
    %p271 = por %p269, %p270
    %p272 = scmp.ne.s32.totalorder %s261, %s262
    %p273 = scmp.eq.s32.totalorder %s23, 0
    %p274 = por %p272, %p273
    %p275 = scmp.ne.s32.totalorder %s261, %s262
    %p276 = scmp.eq.s32.totalorder %s24, 1
    %p277 = por %p275, %p276
    %p279 = scmp.ne.s32.totalorder %s262, %s278
    %p280 = scmp.eq.s32.totalorder %s24, 0
    %p281 = por %p279, %p280
    %s282 = ssub.s32 %s18, %s25
    %p283 = scmp.eq.s32.totalorder %s282, 0
    %s285 = sadd.s32 %s284, 1
    %s286 = scalar_select %p283, %s284, %s285
    %p289 = pneg %p283
    %p290 = scmp.eq.s32.totalorder %s18, 1
    %p291 = por %p289, %p290
    %p292 = scmp.ne.s32.totalorder %s284, %s287
    %p293 = scmp.eq.s32.totalorder %s18, 0
    %p294 = por %p292, %p293
    %p295 = scmp.ne.s32.totalorder %s284, %s287
    %p296 = scmp.eq.s32.totalorder %s23, 1
    %p297 = por %p295, %p296
    %p298 = scmp.ne.s32.totalorder %s287, %s288
    %p299 = scmp.eq.s32.totalorder %s23, 0
    %p300 = por %p298, %p299
    %p301 = scmp.ne.s32.totalorder %s287, %s288
    %p302 = scmp.eq.s32.totalorder %s24, 1
    %p303 = por %p301, %p302
    %p305 = scmp.ne.s32.totalorder %s288, %s304
    %p306 = scmp.eq.s32.totalorder %s24, 0
    %p307 = por %p305, %p306
    %p308 = scmp.le.s32.totalorder 1, %s18
    %p309 = scmp.lt.s32.totalorder %s18, 3
    %p310 = pnand %p308, %p309
    %p311 = pneg %p310
    // Predicated region
    $region9: #{tpu_custom_call.1} parent=5 // pred_check
      _
    $region10: #{tpu_custom_call.1} parent=5 // pred_check_branch
      %313 = sbr.rel (%p310) target = $region12
    $region11: #{tpu_custom_call.1} parent=5 // pred_region
      %s314 = ssub.s32 %s18, 1
      // Predicated region
      $region13: #{tpu_custom_call.1} parent=11 // pred_check
        %p315 = pneg %p65
      $region14: #{tpu_custom_call.1} parent=11 // pred_check_branch
        %317 = sbr.rel (%p315) target = $region16
      $region15: #{tpu_custom_call.1} parent=11 // pred_region
        _
      $region16: #{tpu_custom_call.1} parent=11 // pred_fallthru
        _
      // Predicated region
      $region17: #{tpu_custom_call.1} parent=11 // pred_check
        %p318 = pneg %p86
      $region18: #{tpu_custom_call.1} parent=11 // pred_check_branch
        %320 = sbr.rel (%p318) target = $region20
      $region19: #{tpu_custom_call.1} parent=11 // pred_region
        _
      $region20: #{tpu_custom_call.1} parent=11 // pred_fallthru
        _
      // Predicated region
      $region21: #{tpu_custom_call.1} parent=11 // pred_check
        %p321 = pneg %p107
      $region22: #{tpu_custom_call.1} parent=11 // pred_check_branch
        %323 = sbr.rel (%p321) target = $region24
      $region23: #{tpu_custom_call.1} parent=11 // pred_region
        _
      $region24: #{tpu_custom_call.1} parent=11 // pred_fallthru
        _
      // Predicated region
      $region25: #{tpu_custom_call.1} parent=11 // pred_check
        %p324 = pneg %p180
      $region26: #{tpu_custom_call.1} parent=11 // pred_check_branch
        %326 = sbr.rel (%p324) target = $region28
      $region27: #{tpu_custom_call.1} parent=11 // pred_region
        _
      $region28: #{tpu_custom_call.1} parent=11 // pred_fallthru
        _
      // Predicated region
      $region29: #{tpu_custom_call.1} parent=11 // pred_check
        %p327 = pneg %p201
      $region30: #{tpu_custom_call.1} parent=11 // pred_check_branch
        %329 = sbr.rel (%p327) target = $region32
      $region31: #{tpu_custom_call.1} parent=11 // pred_region
        _
      $region32: #{tpu_custom_call.1} parent=11 // pred_fallthru
        _
      // Predicated region
      $region33: #{tpu_custom_call.1} parent=11 // pred_check
        %p330 = pneg %p222
      $region34: #{tpu_custom_call.1} parent=11 // pred_check_branch
        %332 = sbr.rel (%p330) target = $region36
      $region35: #{tpu_custom_call.1} parent=11 // pred_region
        _
      $region36: #{tpu_custom_call.1} parent=11 // pred_fallthru
        _
    $region12: #{tpu_custom_call.1} parent=5 // pred_fallthru
      _
    %p333 = scmp.lt.s32.totalorder %s18, 2
    // Predicated region
    $region37: #{tpu_custom_call.1} parent=5 // pred_check
      %p334 = pneg %p333
    $region38: #{tpu_custom_call.1} parent=5 // pred_check_branch
      %336 = sbr.rel (%p334) target = $region40
    $region39: #{tpu_custom_call.1} parent=5 // pred_region
      // Predicated region
      $region41: #{tpu_custom_call.1} parent=39 // pred_check
        %p337 = pneg %p38
      $region42: #{tpu_custom_call.1} parent=39 // pred_check_branch
        %339 = sbr.rel (%p337) target = $region44
      $region43: #{tpu_custom_call.1} parent=39 // pred_region
        %s340 = smul.u32 8, %s18
        %p341 = scmp.lt.s32.totalorder %s340, 15
        %s342 = scalar_select %p341, %s340, 15
        %s343 = smul.addr %s342, 8
        %s344 = scalar_lea.vmem %s0, %s343
        %s345 = smul.u32 8, %s18
      $region44: #{tpu_custom_call.1} parent=39 // pred_fallthru
        _
      // Predicated region
      $region45: #{tpu_custom_call.1} parent=39 // pred_check
        %p346 = pneg %p127
      $region46: #{tpu_custom_call.1} parent=39 // pred_check_branch
        %348 = sbr.rel (%p346) target = $region48
      $region47: #{tpu_custom_call.1} parent=39 // pred_region
        %p349 = scmp.lt.s32.totalorder %s18, 1
        %s350 = scalar_select %p349, %s18, 1
        %s351 = smul.addr %s350, 8
        %s352 = scalar_lea.vmem %s4, %s351
      $region48: #{tpu_custom_call.1} parent=39 // pred_fallthru
        _
      // Predicated region
      $region49: #{tpu_custom_call.1} parent=39 // pred_check
        %p353 = pneg %p153
      $region50: #{tpu_custom_call.1} parent=39 // pred_check_branch
        %355 = sbr.rel (%p353) target = $region52
      $region51: #{tpu_custom_call.1} parent=39 // pred_region
        %p356 = scmp.lt.s32.totalorder %s18, 1
        %s357 = scalar_select %p356, %s18, 1
        %s358 = smul.addr %s357, 8
        %s359 = scalar_lea.vmem %s5, %s358
      $region52: #{tpu_custom_call.1} parent=39 // pred_fallthru
        _
    $region40: #{tpu_custom_call.1} parent=5 // pred_fallthru
      _
    %p360 = scmp.le.s32.totalorder 1, %s18
    %p361 = scmp.lt.s32.totalorder %s18, 3
    %p362 = pnand %p360, %p361
    %p363 = pneg %p362
    // Predicated region
    $region53: #{tpu_custom_call.1} parent=5 // pred_check
      _
    $region54: #{tpu_custom_call.1} parent=5 // pred_check_branch
      %365 = sbr.rel (%p362) target = $region56
    $region55: #{tpu_custom_call.1} parent=5 // pred_region
      %s366 = ssub.s32 %s18, 1
      %s367 = smul.u32 8, %s23
      %p368 = scmp.lt.s32.totalorder %s367, 15
      %s369 = scalar_select %p368, %s367, 15
      %s370 = smul.addr %s369, 8
      %s371 = scalar_lea.vmem %s0, %s370
      %p372 = pneg %p44
      %p373 = pneg %p41
      %p374 = pneg %p65
      %p375 = pneg %p62
      %p376 = pneg %p86
      %p377 = pneg %p83
      %p378 = pneg %p107
      %p379 = pneg %p104
      %p380 = scmp.lt.s32.totalorder %s23, 1
      %s381 = scalar_select %p380, %s23, 1
      %s382 = smul.addr %s381, 8
      %s383 = scalar_lea.vmem %s4, %s382
      %p384 = pneg %p133
      %p385 = pneg %p130
      %p386 = scmp.lt.s32.totalorder %s23, 1
      %s387 = scalar_select %p386, %s23, 1
      %s388 = smul.addr %s387, 8
      %s389 = scalar_lea.vmem %s5, %s388
      %p390 = pneg %p159
      %p391 = pneg %p156
      %p392 = pneg %p180
      %p393 = pneg %p177
      %p394 = pneg %p201
      %p395 = pneg %p198
      %p396 = pneg %p222
      %p397 = pneg %p219
      %p398 = pneg %p248
      %p399 = pneg %p245
      %p400 = scmp.lt.s32.totalorder %s23, 1
      %s401 = scalar_select %p400, %s23, 1
      %s402 = smul.addr %s401, 8
      %s403 = scalar_lea.vmem %s9, %s402
      %p404 = pneg %p274
      %p405 = pneg %p271
      %p406 = scmp.lt.s32.totalorder %s23, 1
      %s407 = scalar_select %p406, %s23, 1
      %s408 = smul.addr %s407, 8
      %s409 = scalar_lea.vmem %s10, %s408
      %p410 = pneg %p300
      %p411 = pneg %p297
      %p412 = scmp.lt.s32.totalorder %s23, 1
      %s413 = scalar_select %p412, %s23, 1
      %s414 = smul.addr %s413, 8
      %s415 = scalar_lea.vmem %s11, %s414
      %s416 = smul.u32 8, %s23
      %p417 = scmp.lt.s32.totalorder %s416, 15
      %s418 = scalar_select %p417, %s416, 15
      %s419 = smul.addr %s418, 8
      %s420 = scalar_lea.vmem %s0, %s419
      %s421 = smul.u32 8, %s23
      %p422 = scmp.lt.s32.totalorder %s23, 1
      %s423 = scalar_select %p422, %s23, 1
      %s424 = smul.addr %s423, 8
      %s425 = scalar_lea.vmem %s4, %s424
      %p426 = scmp.lt.s32.totalorder %s23, 1
      %s427 = scalar_select %p426, %s23, 1
      %s428 = smul.addr %s427, 8
      %s429 = scalar_lea.vmem %s5, %s428
      %p430 = scmp.lt.s32.totalorder %s23, 1
      %s431 = scalar_select %p430, %s23, 1
      %s432 = smul.addr %s431, 8
      %s433 = scalar_lea.vmem %s9, %s432
      %p434 = scmp.lt.s32.totalorder %s23, 1
      %s435 = scalar_select %p434, %s23, 1
      %s436 = smul.addr %s435, 8
      %s437 = scalar_lea.vmem %s10, %s436
      %p438 = scmp.lt.s32.totalorder %s23, 1
      %s439 = scalar_select %p438, %s23, 1
      %s440 = smul.addr %s439, 8
      %s441 = scalar_lea.vmem %s11, %s440
      %v442 = vld [vmem:[%s420] sm:$0xff]
      %v443 = vld [vmem:[%s420 + $0x8] sm:$0xff]
      %v444 = vld [vmem:[%s420 + $0x10] sm:$0xff]
      %v445 = vld [vmem:[%s420 + $0x18] sm:$0xff]
      %v446 = vld [vmem:[%s420 + $0x20] sm:$0xff]
      %v447 = vld [vmem:[%s420 + $0x28] sm:$0xff]
      %v448 = vld [vmem:[%s420 + $0x30] sm:$0xff]
      %v449 = vld [vmem:[%s420 + $0x38] sm:$0xff]
      %v450 = vld [vmem:[%s1] sm:$0xff]
      %v451 = vld [vmem:[%s1 + $0x8] sm:$0xff]
      %v452 = vld [vmem:[%s1 + $0x10] sm:$0xff]
      %v453 = vld [vmem:[%s1 + $0x18] sm:$0xff]
      %v454 = vld [vmem:[%s1 + $0x20] sm:$0xff]
      %v455 = vld [vmem:[%s1 + $0x28] sm:$0xff]
      %v456 = vld [vmem:[%s1 + $0x30] sm:$0xff]
      %v457 = vld [vmem:[%s1 + $0x38] sm:$0xff]
      %v458 = vld [vmem:[%s2] sm:$0x1]
      %v460 = vlaneseq
      %v461 = vshrl.u32 %v460, 7
      %v462 = vsub.s32 0, %v461
      %v463 = vrot.slane %v458, %v462
      %vm465 = vcmask 523264
      %v467 = vsel %vm465, %v442, 0
      %v470 = vsel %vm465, %v443, 0
      %v473 = vsel %vm465, %v444, 0
      %v476 = vsel %vm465, %v445, 0
      %v479 = vsel %vm465, %v446, 0
      %v482 = vsel %vm465, %v447, 0
      %v485 = vsel %vm465, %v448, 0
      %v488 = vsel %vm465, %v449, 0
      %490 = vmatprep.subr.mxu0 0.0
      %491 = vmatpush1.msra.mxu0 0.0
      %492 = vmatprep.subr.mxu0 0.0
      %493 = vmatpush1.msra.mxu0 0.0
      %494 = vmatprep.subr.mxu0 0.0
      %495 = vmatpush1.msra.mxu0 0.0
      %496 = vmatprep.subr.mxu0 0.0
      %497 = vmatpush1.msra.mxu0 0.0
      %498 = vmatprep.subr.mxu0 0.0
      %499 = vmatpush1.msra.mxu0 0.0
      %500 = vmatprep.subr.mxu0 0.0
      %501 = vmatpush1.msra.mxu0 0.0
      %502 = vmatprep.subr.mxu0 0.0
      %503 = vmatpush1.msra.mxu0 0.0
      %504 = vmatprep.subr.mxu0 0.0
      %505 = vmatpush1.msra.mxu0 0.0
      %506 = vmatprep.subr.mxu0 0.0
      %507 = vmatpush1.msra.mxu0 %v457
      %508 = vmatprep.subr.mxu0 0.0
      %509 = vmatpush1.msra.mxu0 %v456
      %510 = vmatprep.subr.mxu0 0.0
      %511 = vmatpush1.msra.mxu0 %v455
      %512 = vmatprep.subr.mxu0 0.0
      %513 = vmatpush1.msra.mxu0 %v454
      %514 = vmatprep.subr.mxu0 0.0
      %515 = vmatpush1.msra.mxu0 %v453
      %516 = vmatprep.subr.mxu0 0.0
      %517 = vmatpush1.msra.mxu0 %v452
      %518 = vmatprep.subr.mxu0 0.0
      %519 = vmatpush1.msra.mxu0 %v451
      %520 = vmatprep.subr.mxu0 0.0
      %521 = vmatpush1.msra.mxu0 %v450
      %522 = vmatprep.subr.mxu0 0.0
      %523 = vmatpush2.msra.mxu0 0.0
      %524 = vmatprep.subr.mxu0 0.0
      %525 = vmatpush2.msra.mxu0 0.0
      %526 = vmatprep.subr.mxu0 0.0
      %527 = vmatpush2.msra.mxu0 0.0
      %528 = vmatprep.subr.mxu0 0.0
      %529 = vmatpush2.msra.mxu0 0.0
      %530 = vmatprep.subr.mxu0 0.0
      %531 = vmatpush2.msra.mxu0 0.0
      %532 = vmatprep.subr.mxu0 0.0
      %533 = vmatpush2.msra.mxu0 0.0
      %534 = vmatprep.subr.mxu0 0.0
      %535 = vmatpush2.msra.mxu0 0.0
      %536 = vmatprep.subr.mxu0 0.0
      %537 = vmatpush2.msra.mxu0 0.0
      %538 = vmatprep.subr.mxu0 0.0
      %539 = vmatpush2.msra.mxu0 0.0
      %540 = vmatprep.subr.mxu0 0.0
      %541 = vmatpush2.msra.mxu0 0.0
      %542 = vmatprep.subr.mxu0 0.0
      %543 = vmatpush2.msra.mxu0 0.0
      %544 = vmatprep.subr.mxu0 0.0
      %545 = vmatpush2.msra.mxu0 0.0
      %546 = vmatprep.subr.mxu0 0.0
      %547 = vmatpush2.msra.mxu0 0.0
      %548 = vmatprep.subr.mxu0 0.0
      %549 = vmatpush2.msra.mxu0 0.0
      %550 = vmatprep.subr.mxu0 0.0
      %551 = vmatpush2.msra.mxu0 0.0
      %552 = vmatprep.subr.mxu0 0.0
      %553 = vmatpush2.msra.mxu0 0.0
      %554 = vmatprep.mubr.f32.mxu0 0.0
      %555 = vmatmul.mubr.f32.gmra.mxu0 %v467
      %v556 = vpop.f32.mrf.mxu0
      %v557 = vadd.f32 %v463, %v556
      %v558 = vpop.f32.mrf.mxu0
      %559 = vmatprep.mubr.f32.mxu0 0.0
      %560 = vmatmul.mubr.f32.gmra.mxu0 %v470
      %v561 = vpop.f32.mrf.mxu0
      %v562 = vadd.f32 %v463, %v561
      %v563 = vpop.f32.mrf.mxu0
      %564 = vmatprep.mubr.f32.mxu0 0.0
      %565 = vmatmul.mubr.f32.gmra.mxu0 %v473
      %v566 = vpop.f32.mrf.mxu0
      %v567 = vadd.f32 %v463, %v566
      %v568 = vpop.f32.mrf.mxu0
      %569 = vmatprep.mubr.f32.mxu0 0.0
      %570 = vmatmul.mubr.f32.gmra.mxu0 %v476
      %v571 = vpop.f32.mrf.mxu0
      %v572 = vadd.f32 %v463, %v571
      %v573 = vpop.f32.mrf.mxu0
      %574 = vmatprep.mubr.f32.mxu0 0.0
      %575 = vmatmul.mubr.f32.gmra.mxu0 %v479
      %v576 = vpop.f32.mrf.mxu0
      %v577 = vadd.f32 %v463, %v576
      %v578 = vpop.f32.mrf.mxu0
      %579 = vmatprep.mubr.f32.mxu0 0.0
      %580 = vmatmul.mubr.f32.gmra.mxu0 %v482
      %v581 = vpop.f32.mrf.mxu0
      %v582 = vadd.f32 %v463, %v581
      %v583 = vpop.f32.mrf.mxu0
      %584 = vmatprep.mubr.f32.mxu0 0.0
      %585 = vmatmul.mubr.f32.gmra.mxu0 %v485
      %v586 = vpop.f32.mrf.mxu0
      %v587 = vadd.f32 %v463, %v586
      %v588 = vpop.f32.mrf.mxu0
      %589 = vmatprep.mubr.f32.mxu0 0.0
      %590 = vmatmul.mubr.f32.gmra.mxu0 %v488
      %v591 = vpop.f32.mrf.mxu0
      %v592 = vadd.f32 %v463, %v591
      %v593 = vpop.f32.mrf.mxu0
      %594 = vdwg.mxu0
      %595 = vst [vmem:[#allocation2] sm:$0xff] %v557
      %596 = vst [vmem:[#allocation2 + $0x8] sm:$0xff] %v562
      %597 = vst [vmem:[#allocation2 + $0x10] sm:$0xff] %v567
      %598 = vst [vmem:[#allocation2 + $0x18] sm:$0xff] %v572
      %599 = vst [vmem:[#allocation2 + $0x20] sm:$0xff] %v577
      %600 = vst [vmem:[#allocation2 + $0x28] sm:$0xff] %v582
      %601 = vst [vmem:[#allocation2 + $0x30] sm:$0xff] %v587
      %602 = vst [vmem:[#allocation2 + $0x38] sm:$0xff] %v592
      %v603 = vld [vmem:[%s3] sm:$0xff]
      %v604 = vld [vmem:[%s3 + $0x8] sm:$0xff]
      %v605 = vld [vmem:[%s3 + $0x10] sm:$0xff]
      %v606 = vld [vmem:[%s3 + $0x18] sm:$0xff]
      %v607 = vlaneseq
      %v608 = vand.u32 %v607, 127
      %vm609 = vcmp.ge.s32.totalorder %v608, 64
      %vm610 = vcmp.lt.s32.totalorder %v608, 96
      %vm611 = vmand %vm609, %vm610
      %v612 = vld [vmem:[%s425] sm:$0xff]
      %v613 = vld [vmem:[%s429] sm:$0xff]
      %v614 = vld [vmem:[#allocation2] sm:$0xff]
      %vm615 = vcmask 261120
      %v617 = vsel %vm615, %v612, 0
      %619 = vmatprep.subr.mxu0 0.0
      %620 = vmatpush1.msra.mxu0 0.0
      %621 = vmatprep.subr.mxu0 0.0
      %622 = vmatpush1.msra.mxu0 0.0
      %623 = vmatprep.subr.mxu0 0.0
      %624 = vmatpush1.msra.mxu0 0.0
      %625 = vmatprep.subr.mxu0 0.0
      %626 = vmatpush1.msra.mxu0 0.0
      %627 = vmatprep.subr.mxu0 0.0
      %628 = vmatpush1.msra.mxu0 0.0
      %629 = vmatprep.subr.mxu0 0.0
      %630 = vmatpush1.msra.mxu0 0.0
      %631 = vmatprep.subr.mxu0 0.0
      %632 = vmatpush1.msra.mxu0 0.0
      %633 = vmatprep.subr.mxu0 0.0
      %634 = vmatpush1.msra.mxu0 0.0
      %635 = vmatprep.subr.mxu0 0.0
      %636 = vmatpush1.msra.mxu0 0.0
      %637 = vmatprep.subr.mxu0 0.0
      %638 = vmatpush1.msra.mxu0 0.0
      %639 = vmatprep.subr.mxu0 0.0
      %640 = vmatpush1.msra.mxu0 0.0
      %641 = vmatprep.subr.mxu0 0.0
      %642 = vmatpush1.msra.mxu0 0.0
      %643 = vmatprep.subr.mxu0 0.0
      %644 = vmatpush1.msra.mxu0 %v606
      %645 = vmatprep.subr.mxu0 0.0
      %646 = vmatpush1.msra.mxu0 %v605
      %647 = vmatprep.subr.mxu0 0.0
      %648 = vmatpush1.msra.mxu0 %v604
      %649 = vmatprep.subr.mxu0 0.0
      %650 = vmatpush1.msra.mxu0 %v603
      %651 = vmatprep.subr.mxu0 0.0
      %652 = vmatpush2.msra.mxu0 0.0
      %653 = vmatprep.subr.mxu0 0.0
      %654 = vmatpush2.msra.mxu0 0.0
      %655 = vmatprep.subr.mxu0 0.0
      %656 = vmatpush2.msra.mxu0 0.0
      %657 = vmatprep.subr.mxu0 0.0
      %658 = vmatpush2.msra.mxu0 0.0
      %659 = vmatprep.subr.mxu0 0.0
      %660 = vmatpush2.msra.mxu0 0.0
      %661 = vmatprep.subr.mxu0 0.0
      %662 = vmatpush2.msra.mxu0 0.0
      %663 = vmatprep.subr.mxu0 0.0
      %664 = vmatpush2.msra.mxu0 0.0
      %665 = vmatprep.subr.mxu0 0.0
      %666 = vmatpush2.msra.mxu0 0.0
      %667 = vmatprep.subr.mxu0 0.0
      %668 = vmatpush2.msra.mxu0 0.0
      %669 = vmatprep.subr.mxu0 0.0
      %670 = vmatpush2.msra.mxu0 0.0
      %671 = vmatprep.subr.mxu0 0.0
      %672 = vmatpush2.msra.mxu0 0.0
      %673 = vmatprep.subr.mxu0 0.0
      %674 = vmatpush2.msra.mxu0 0.0
      %675 = vmatprep.subr.mxu0 0.0
      %676 = vmatpush2.msra.mxu0 0.0
      %677 = vmatprep.subr.mxu0 0.0
      %678 = vmatpush2.msra.mxu0 0.0
      %679 = vmatprep.subr.mxu0 0.0
      %680 = vmatpush2.msra.mxu0 0.0
      %681 = vmatprep.subr.mxu0 0.0
      %682 = vmatpush2.msra.mxu0 0.0
      %683 = vmatprep.mubr.f32.mxu0 0.0
      %684 = vmatmul.mubr.f32.gmra.mxu0 %v617
      %v685 = vpop.f32.mrf.mxu0
      %v686 = vadd.f32 %v614, %v685
      %v687 = vpop.f32.mrf.mxu0
      %688 = vdwg.mxu0
      %v689 = vtanh.pop %v686
      %v690 = vxor.u32 %v686, 2147483648
      %v691 = vmul.f32 %v690, 1.442695
      %v692 = vpow.pop %v691
      %v693 = vadd.f32 %v692, 1.0
      %v694 = vrcp.pop %v693
      %v695 = vmul.f32 1.0, %v694
      %v696 = vsel %vm611, %v689, %v695
      %698 = vrot.lane.b32.xlu0 %v613, 32
      %v699 = vpop.permute.xlu0 %698
      %v701 = vmul.f32 %v696, %v699
      %703 = vrot.lane.b32.xlu0 %v696, 64
      %v704 = vpop.permute.xlu0 %703
      %v706 = vmul.f32 %v696, %v704
      %708 = vrot.lane.b32.xlu0 %v706, 32
      %v709 = vpop.permute.xlu0 %708
      %v711 = vadd.f32 %v701, %v709
      %v712 = vtanh.pop %v711
      %714 = vrot.lane.b32.xlu0 %v712, 64
      %v715 = vpop.permute.xlu0 %714
      %v717 = vmul.f32 %v696, %v715
      %719 = vrot.lane.b32.xlu0 %v717, 32
      %v720 = vpop.permute.xlu0 %719
      %vm722 = vcmask 130048
      %723 = vst.msk [vmem:[#allocation3] sm:$0xff] %vm722, %v720
      %s724 = scalar_lea.vmem [#allocation3], 56
      %vm725 = vcmask 261248
      %726 = vst.msk [vmem:[%s724] sm:$0xff] %vm725, %v720
      %s727 = scalar_lea.vmem [#allocation2], 8
      %v728 = vld [vmem:[%s727] sm:$0xff]
      %v729 = vsel %vm615, %v720, 0
      %731 = vmatprep.subr.mxu0 0.0
      %732 = vmatpush1.msra.mxu0 0.0
      %733 = vmatprep.subr.mxu0 0.0
      %734 = vmatpush1.msra.mxu0 0.0
      %735 = vmatprep.subr.mxu0 0.0
      %736 = vmatpush1.msra.mxu0 0.0
      %737 = vmatprep.subr.mxu0 0.0
      %738 = vmatpush1.msra.mxu0 0.0
      %739 = vmatprep.subr.mxu0 0.0
      %740 = vmatpush1.msra.mxu0 0.0
      %741 = vmatprep.subr.mxu0 0.0
      %742 = vmatpush1.msra.mxu0 0.0
      %743 = vmatprep.subr.mxu0 0.0
      %744 = vmatpush1.msra.mxu0 0.0
      %745 = vmatprep.subr.mxu0 0.0
      %746 = vmatpush1.msra.mxu0 0.0
      %747 = vmatprep.subr.mxu0 0.0
      %748 = vmatpush1.msra.mxu0 0.0
      %749 = vmatprep.subr.mxu0 0.0
      %750 = vmatpush1.msra.mxu0 0.0
      %751 = vmatprep.subr.mxu0 0.0
      %752 = vmatpush1.msra.mxu0 0.0
      %753 = vmatprep.subr.mxu0 0.0
      %754 = vmatpush1.msra.mxu0 0.0
      %755 = vmatprep.subr.mxu0 0.0
      %756 = vmatpush1.msra.mxu0 %v606
      %757 = vmatprep.subr.mxu0 0.0
      %758 = vmatpush1.msra.mxu0 %v605
      %759 = vmatprep.subr.mxu0 0.0
      %760 = vmatpush1.msra.mxu0 %v604
      %761 = vmatprep.subr.mxu0 0.0
      %762 = vmatpush1.msra.mxu0 %v603
      %763 = vmatprep.subr.mxu0 0.0
      %764 = vmatpush2.msra.mxu0 0.0
      %765 = vmatprep.subr.mxu0 0.0
      %766 = vmatpush2.msra.mxu0 0.0
      %767 = vmatprep.subr.mxu0 0.0
      %768 = vmatpush2.msra.mxu0 0.0
      %769 = vmatprep.subr.mxu0 0.0
      %770 = vmatpush2.msra.mxu0 0.0
      %771 = vmatprep.subr.mxu0 0.0
      %772 = vmatpush2.msra.mxu0 0.0
      %773 = vmatprep.subr.mxu0 0.0
      %774 = vmatpush2.msra.mxu0 0.0
      %775 = vmatprep.subr.mxu0 0.0
      %776 = vmatpush2.msra.mxu0 0.0
      %777 = vmatprep.subr.mxu0 0.0
      %778 = vmatpush2.msra.mxu0 0.0
      %779 = vmatprep.subr.mxu0 0.0
      %780 = vmatpush2.msra.mxu0 0.0
      %781 = vmatprep.subr.mxu0 0.0
      %782 = vmatpush2.msra.mxu0 0.0
      %783 = vmatprep.subr.mxu0 0.0
      %784 = vmatpush2.msra.mxu0 0.0
      %785 = vmatprep.subr.mxu0 0.0
      %786 = vmatpush2.msra.mxu0 0.0
      %787 = vmatprep.subr.mxu0 0.0
      %788 = vmatpush2.msra.mxu0 0.0
      %789 = vmatprep.subr.mxu0 0.0
      %790 = vmatpush2.msra.mxu0 0.0
      %791 = vmatprep.subr.mxu0 0.0
      %792 = vmatpush2.msra.mxu0 0.0
      %793 = vmatprep.subr.mxu0 0.0
      %794 = vmatpush2.msra.mxu0 0.0
      %795 = vmatprep.mubr.f32.mxu0 0.0
      %796 = vmatmul.mubr.f32.gmra.mxu0 %v729
      %v797 = vpop.f32.mrf.mxu0
      %v798 = vadd.f32 %v728, %v797
      %v799 = vpop.f32.mrf.mxu0
      %800 = vdwg.mxu0
      %v801 = vtanh.pop %v798
      %v802 = vxor.u32 %v798, 2147483648
      %v803 = vmul.f32 %v802, 1.442695
      %v804 = vpow.pop %v803
      %v805 = vadd.f32 %v804, 1.0
      %v806 = vrcp.pop %v805
      %v807 = vmul.f32 1.0, %v806
      %v808 = vsel %vm611, %v801, %v807
      %v809 = vmul.f32 %v808, %v711
      %811 = vrot.lane.b32.xlu0 %v808, 64
      %v812 = vpop.permute.xlu0 %811
      %v814 = vmul.f32 %v808, %v812
      %816 = vrot.lane.b32.xlu0 %v814, 32
      %v817 = vpop.permute.xlu0 %816
      %v819 = vadd.f32 %v809, %v817
      %v820 = vtanh.pop %v819
      %822 = vrot.lane.b32.xlu0 %v820, 64
      %v823 = vpop.permute.xlu0 %822
      %v825 = vmul.f32 %v808, %v823
      %827 = vrot.lane.b32.xlu0 %v825, 32
      %v828 = vpop.permute.xlu0 %827
      %s830 = scalar_lea.vmem [#allocation3], 8
      %831 = vst.msk [vmem:[%s830] sm:$0xff] %vm722, %v828
      %s832 = scalar_lea.vmem [#allocation3], 48
      %833 = vst.msk [vmem:[%s832] sm:$0xff] %vm725, %v828
      %s834 = scalar_lea.vmem [#allocation2], 16
      %v835 = vld [vmem:[%s834] sm:$0xff]
      %v836 = vsel %vm615, %v828, 0
      %838 = vmatprep.subr.mxu0 0.0
      %839 = vmatpush1.msra.mxu0 0.0
      %840 = vmatprep.subr.mxu0 0.0
      %841 = vmatpush1.msra.mxu0 0.0
      %842 = vmatprep.subr.mxu0 0.0
      %843 = vmatpush1.msra.mxu0 0.0
      %844 = vmatprep.subr.mxu0 0.0
      %845 = vmatpush1.msra.mxu0 0.0
      %846 = vmatprep.subr.mxu0 0.0
      %847 = vmatpush1.msra.mxu0 0.0
      %848 = vmatprep.subr.mxu0 0.0
      %849 = vmatpush1.msra.mxu0 0.0
      %850 = vmatprep.subr.mxu0 0.0
      %851 = vmatpush1.msra.mxu0 0.0
      %852 = vmatprep.subr.mxu0 0.0
      %853 = vmatpush1.msra.mxu0 0.0
      %854 = vmatprep.subr.mxu0 0.0
      %855 = vmatpush1.msra.mxu0 0.0
      %856 = vmatprep.subr.mxu0 0.0
      %857 = vmatpush1.msra.mxu0 0.0
      %858 = vmatprep.subr.mxu0 0.0
      %859 = vmatpush1.msra.mxu0 0.0
      %860 = vmatprep.subr.mxu0 0.0
      %861 = vmatpush1.msra.mxu0 0.0
      %862 = vmatprep.subr.mxu0 0.0
      %863 = vmatpush1.msra.mxu0 %v606
      %864 = vmatprep.subr.mxu0 0.0
      %865 = vmatpush1.msra.mxu0 %v605
      %866 = vmatprep.subr.mxu0 0.0
      %867 = vmatpush1.msra.mxu0 %v604
      %868 = vmatprep.subr.mxu0 0.0
      %869 = vmatpush1.msra.mxu0 %v603
      %870 = vmatprep.subr.mxu0 0.0
      %871 = vmatpush2.msra.mxu0 0.0
      %872 = vmatprep.subr.mxu0 0.0
      %873 = vmatpush2.msra.mxu0 0.0
      %874 = vmatprep.subr.mxu0 0.0
      %875 = vmatpush2.msra.mxu0 0.0
      %876 = vmatprep.subr.mxu0 0.0
      %877 = vmatpush2.msra.mxu0 0.0
      %878 = vmatprep.subr.mxu0 0.0
      %879 = vmatpush2.msra.mxu0 0.0
      %880 = vmatprep.subr.mxu0 0.0
      %881 = vmatpush2.msra.mxu0 0.0
      %882 = vmatprep.subr.mxu0 0.0
      %883 = vmatpush2.msra.mxu0 0.0
      %884 = vmatprep.subr.mxu0 0.0
      %885 = vmatpush2.msra.mxu0 0.0
      %886 = vmatprep.subr.mxu0 0.0
      %887 = vmatpush2.msra.mxu0 0.0
      %888 = vmatprep.subr.mxu0 0.0
      %889 = vmatpush2.msra.mxu0 0.0
      %890 = vmatprep.subr.mxu0 0.0
      %891 = vmatpush2.msra.mxu0 0.0
      %892 = vmatprep.subr.mxu0 0.0
      %893 = vmatpush2.msra.mxu0 0.0
      %894 = vmatprep.subr.mxu0 0.0
      %895 = vmatpush2.msra.mxu0 0.0
      %896 = vmatprep.subr.mxu0 0.0
      %897 = vmatpush2.msra.mxu0 0.0
      %898 = vmatprep.subr.mxu0 0.0
      %899 = vmatpush2.msra.mxu0 0.0
      %900 = vmatprep.subr.mxu0 0.0
      %901 = vmatpush2.msra.mxu0 0.0
      %902 = vmatprep.mubr.f32.mxu0 0.0
      %903 = vmatmul.mubr.f32.gmra.mxu0 %v836
      %v904 = vpop.f32.mrf.mxu0
      %v905 = vadd.f32 %v835, %v904
      %v906 = vpop.f32.mrf.mxu0
      %907 = vdwg.mxu0
      %v908 = vtanh.pop %v905
      %v909 = vxor.u32 %v905, 2147483648
      %v910 = vmul.f32 %v909, 1.442695
      %v911 = vpow.pop %v910
      %v912 = vadd.f32 %v911, 1.0
      %v913 = vrcp.pop %v912
      %v914 = vmul.f32 1.0, %v913
      %v915 = vsel %vm611, %v908, %v914
      %v916 = vmul.f32 %v915, %v819
      %918 = vrot.lane.b32.xlu0 %v915, 64
      %v919 = vpop.permute.xlu0 %918
      %v921 = vmul.f32 %v915, %v919
      %923 = vrot.lane.b32.xlu0 %v921, 32
      %v924 = vpop.permute.xlu0 %923
      %v926 = vadd.f32 %v916, %v924
      %v927 = vtanh.pop %v926
      %929 = vrot.lane.b32.xlu0 %v927, 64
      %v930 = vpop.permute.xlu0 %929
      %v932 = vmul.f32 %v915, %v930
      %934 = vrot.lane.b32.xlu0 %v932, 32
      %v935 = vpop.permute.xlu0 %934
      %s937 = scalar_lea.vmem [#allocation3], 16
      %938 = vst.msk [vmem:[%s937] sm:$0xff] %vm722, %v935
      %s939 = scalar_lea.vmem [#allocation3], 40
      %940 = vst.msk [vmem:[%s939] sm:$0xff] %vm725, %v935
      %s941 = scalar_lea.vmem [#allocation2], 24
      %v942 = vld [vmem:[%s941] sm:$0xff]
      %v943 = vsel %vm615, %v935, 0
      %945 = vmatprep.subr.mxu0 0.0
      %946 = vmatpush1.msra.mxu0 0.0
      %947 = vmatprep.subr.mxu0 0.0
      %948 = vmatpush1.msra.mxu0 0.0
      %949 = vmatprep.subr.mxu0 0.0
      %950 = vmatpush1.msra.mxu0 0.0
      %951 = vmatprep.subr.mxu0 0.0
      %952 = vmatpush1.msra.mxu0 0.0
      %953 = vmatprep.subr.mxu0 0.0
      %954 = vmatpush1.msra.mxu0 0.0
      %955 = vmatprep.subr.mxu0 0.0
      %956 = vmatpush1.msra.mxu0 0.0
      %957 = vmatprep.subr.mxu0 0.0
      %958 = vmatpush1.msra.mxu0 0.0
      %959 = vmatprep.subr.mxu0 0.0
      %960 = vmatpush1.msra.mxu0 0.0
      %961 = vmatprep.subr.mxu0 0.0
      %962 = vmatpush1.msra.mxu0 0.0
      %963 = vmatprep.subr.mxu0 0.0
      %964 = vmatpush1.msra.mxu0 0.0
      %965 = vmatprep.subr.mxu0 0.0
      %966 = vmatpush1.msra.mxu0 0.0
      %967 = vmatprep.subr.mxu0 0.0
      %968 = vmatpush1.msra.mxu0 0.0
      %969 = vmatprep.subr.mxu0 0.0
      %970 = vmatpush1.msra.mxu0 %v606
      %971 = vmatprep.subr.mxu0 0.0
      %972 = vmatpush1.msra.mxu0 %v605
      %973 = vmatprep.subr.mxu0 0.0
      %974 = vmatpush1.msra.mxu0 %v604
      %975 = vmatprep.subr.mxu0 0.0
      %976 = vmatpush1.msra.mxu0 %v603
      %977 = vmatprep.subr.mxu0 0.0
      %978 = vmatpush2.msra.mxu0 0.0
      %979 = vmatprep.subr.mxu0 0.0
      %980 = vmatpush2.msra.mxu0 0.0
      %981 = vmatprep.subr.mxu0 0.0
      %982 = vmatpush2.msra.mxu0 0.0
      %983 = vmatprep.subr.mxu0 0.0
      %984 = vmatpush2.msra.mxu0 0.0
      %985 = vmatprep.subr.mxu0 0.0
      %986 = vmatpush2.msra.mxu0 0.0
      %987 = vmatprep.subr.mxu0 0.0
      %988 = vmatpush2.msra.mxu0 0.0
      %989 = vmatprep.subr.mxu0 0.0
      %990 = vmatpush2.msra.mxu0 0.0
      %991 = vmatprep.subr.mxu0 0.0
      %992 = vmatpush2.msra.mxu0 0.0
      %993 = vmatprep.subr.mxu0 0.0
      %994 = vmatpush2.msra.mxu0 0.0
      %995 = vmatprep.subr.mxu0 0.0
      %996 = vmatpush2.msra.mxu0 0.0
      %997 = vmatprep.subr.mxu0 0.0
      %998 = vmatpush2.msra.mxu0 0.0
      %999 = vmatprep.subr.mxu0 0.0
      %1000 = vmatpush2.msra.mxu0 0.0
      %1001 = vmatprep.subr.mxu0 0.0
      %1002 = vmatpush2.msra.mxu0 0.0
      %1003 = vmatprep.subr.mxu0 0.0
      %1004 = vmatpush2.msra.mxu0 0.0
      %1005 = vmatprep.subr.mxu0 0.0
      %1006 = vmatpush2.msra.mxu0 0.0
      %1007 = vmatprep.subr.mxu0 0.0
      %1008 = vmatpush2.msra.mxu0 0.0
      %1009 = vmatprep.mubr.f32.mxu0 0.0
      %1010 = vmatmul.mubr.f32.gmra.mxu0 %v943
      %v1011 = vpop.f32.mrf.mxu0
      %v1012 = vadd.f32 %v942, %v1011
      %v1013 = vpop.f32.mrf.mxu0
      %1014 = vdwg.mxu0
      %v1015 = vtanh.pop %v1012
      %v1016 = vxor.u32 %v1012, 2147483648
      %v1017 = vmul.f32 %v1016, 1.442695
      %v1018 = vpow.pop %v1017
      %v1019 = vadd.f32 %v1018, 1.0
      %v1020 = vrcp.pop %v1019
      %v1021 = vmul.f32 1.0, %v1020
      %v1022 = vsel %vm611, %v1015, %v1021
      %v1023 = vmul.f32 %v1022, %v926
      %1025 = vrot.lane.b32.xlu0 %v1022, 64
      %v1026 = vpop.permute.xlu0 %1025
      %v1028 = vmul.f32 %v1022, %v1026
      %1030 = vrot.lane.b32.xlu0 %v1028, 32
      %v1031 = vpop.permute.xlu0 %1030
      %v1033 = vadd.f32 %v1023, %v1031
      %v1034 = vtanh.pop %v1033
      %1036 = vrot.lane.b32.xlu0 %v1034, 64
      %v1037 = vpop.permute.xlu0 %1036
      %v1039 = vmul.f32 %v1022, %v1037
      %1041 = vrot.lane.b32.xlu0 %v1039, 32
      %v1042 = vpop.permute.xlu0 %1041
      %s1044 = scalar_lea.vmem [#allocation3], 24
      %1045 = vst.msk [vmem:[%s1044] sm:$0xff] %vm722, %v1042
      %s1046 = scalar_lea.vmem [#allocation3], 32
      %1047 = vst.msk [vmem:[%s1046] sm:$0xff] %vm725, %v1042
      %s1048 = scalar_lea.vmem [#allocation2], 32
      %v1049 = vld [vmem:[%s1048] sm:$0xff]
      %v1050 = vsel %vm615, %v1042, 0
      %1052 = vmatprep.subr.mxu0 0.0
      %1053 = vmatpush1.msra.mxu0 0.0
      %1054 = vmatprep.subr.mxu0 0.0
      %1055 = vmatpush1.msra.mxu0 0.0
      %1056 = vmatprep.subr.mxu0 0.0
      %1057 = vmatpush1.msra.mxu0 0.0
      %1058 = vmatprep.subr.mxu0 0.0
      %1059 = vmatpush1.msra.mxu0 0.0
      %1060 = vmatprep.subr.mxu0 0.0
      %1061 = vmatpush1.msra.mxu0 0.0
      %1062 = vmatprep.subr.mxu0 0.0
      %1063 = vmatpush1.msra.mxu0 0.0
      %1064 = vmatprep.subr.mxu0 0.0
      %1065 = vmatpush1.msra.mxu0 0.0
      %1066 = vmatprep.subr.mxu0 0.0
      %1067 = vmatpush1.msra.mxu0 0.0
      %1068 = vmatprep.subr.mxu0 0.0
      %1069 = vmatpush1.msra.mxu0 0.0
      %1070 = vmatprep.subr.mxu0 0.0
      %1071 = vmatpush1.msra.mxu0 0.0
      %1072 = vmatprep.subr.mxu0 0.0
      %1073 = vmatpush1.msra.mxu0 0.0
      %1074 = vmatprep.subr.mxu0 0.0
      %1075 = vmatpush1.msra.mxu0 0.0
      %1076 = vmatprep.subr.mxu0 0.0
      %1077 = vmatpush1.msra.mxu0 %v606
      %1078 = vmatprep.subr.mxu0 0.0
      %1079 = vmatpush1.msra.mxu0 %v605
      %1080 = vmatprep.subr.mxu0 0.0
      %1081 = vmatpush1.msra.mxu0 %v604
      %1082 = vmatprep.subr.mxu0 0.0
      %1083 = vmatpush1.msra.mxu0 %v603
      %1084 = vmatprep.subr.mxu0 0.0
      %1085 = vmatpush2.msra.mxu0 0.0
      %1086 = vmatprep.subr.mxu0 0.0
      %1087 = vmatpush2.msra.mxu0 0.0
      %1088 = vmatprep.subr.mxu0 0.0
      %1089 = vmatpush2.msra.mxu0 0.0
      %1090 = vmatprep.subr.mxu0 0.0
      %1091 = vmatpush2.msra.mxu0 0.0
      %1092 = vmatprep.subr.mxu0 0.0
      %1093 = vmatpush2.msra.mxu0 0.0
      %1094 = vmatprep.subr.mxu0 0.0
      %1095 = vmatpush2.msra.mxu0 0.0
      %1096 = vmatprep.subr.mxu0 0.0
      %1097 = vmatpush2.msra.mxu0 0.0
      %1098 = vmatprep.subr.mxu0 0.0
      %1099 = vmatpush2.msra.mxu0 0.0
      %1100 = vmatprep.subr.mxu0 0.0
      %1101 = vmatpush2.msra.mxu0 0.0
      %1102 = vmatprep.subr.mxu0 0.0
      %1103 = vmatpush2.msra.mxu0 0.0
      %1104 = vmatprep.subr.mxu0 0.0
      %1105 = vmatpush2.msra.mxu0 0.0
      %1106 = vmatprep.subr.mxu0 0.0
      %1107 = vmatpush2.msra.mxu0 0.0
      %1108 = vmatprep.subr.mxu0 0.0
      %1109 = vmatpush2.msra.mxu0 0.0
      %1110 = vmatprep.subr.mxu0 0.0
      %1111 = vmatpush2.msra.mxu0 0.0
      %1112 = vmatprep.subr.mxu0 0.0
      %1113 = vmatpush2.msra.mxu0 0.0
      %1114 = vmatprep.subr.mxu0 0.0
      %1115 = vmatpush2.msra.mxu0 0.0
      %1116 = vmatprep.mubr.f32.mxu0 0.0
      %1117 = vmatmul.mubr.f32.gmra.mxu0 %v1050
      %v1118 = vpop.f32.mrf.mxu0
      %v1119 = vadd.f32 %v1049, %v1118
      %v1120 = vpop.f32.mrf.mxu0
      %1121 = vdwg.mxu0
      %v1122 = vtanh.pop %v1119
      %v1123 = vxor.u32 %v1119, 2147483648
      %v1124 = vmul.f32 %v1123, 1.442695
      %v1125 = vpow.pop %v1124
      %v1126 = vadd.f32 %v1125, 1.0
      %v1127 = vrcp.pop %v1126
      %v1128 = vmul.f32 1.0, %v1127
      %v1129 = vsel %vm611, %v1122, %v1128
      %v1130 = vmul.f32 %v1129, %v1033
      %1132 = vrot.lane.b32.xlu0 %v1129, 64
      %v1133 = vpop.permute.xlu0 %1132
      %v1135 = vmul.f32 %v1129, %v1133
      %1137 = vrot.lane.b32.xlu0 %v1135, 32
      %v1138 = vpop.permute.xlu0 %1137
      %v1140 = vadd.f32 %v1130, %v1138
      %v1141 = vtanh.pop %v1140
      %1143 = vrot.lane.b32.xlu0 %v1141, 64
      %v1144 = vpop.permute.xlu0 %1143
      %v1146 = vmul.f32 %v1129, %v1144
      %1148 = vrot.lane.b32.xlu0 %v1146, 32
      %v1149 = vpop.permute.xlu0 %1148
      %1151 = vst.msk [vmem:[%s1046] sm:$0xff] %vm722, %v1149
      %1152 = vst.msk [vmem:[%s1044] sm:$0xff] %vm725, %v1149
      %s1153 = scalar_lea.vmem [#allocation2], 40
      %v1154 = vld [vmem:[%s1153] sm:$0xff]
      %v1155 = vsel %vm615, %v1149, 0
      %1157 = vmatprep.subr.mxu0 0.0
      %1158 = vmatpush1.msra.mxu0 0.0
      %1159 = vmatprep.subr.mxu0 0.0
      %1160 = vmatpush1.msra.mxu0 0.0
      %1161 = vmatprep.subr.mxu0 0.0
      %1162 = vmatpush1.msra.mxu0 0.0
      %1163 = vmatprep.subr.mxu0 0.0
      %1164 = vmatpush1.msra.mxu0 0.0
      %1165 = vmatprep.subr.mxu0 0.0
      %1166 = vmatpush1.msra.mxu0 0.0
      %1167 = vmatprep.subr.mxu0 0.0
      %1168 = vmatpush1.msra.mxu0 0.0
      %1169 = vmatprep.subr.mxu0 0.0
      %1170 = vmatpush1.msra.mxu0 0.0
      %1171 = vmatprep.subr.mxu0 0.0
      %1172 = vmatpush1.msra.mxu0 0.0
      %1173 = vmatprep.subr.mxu0 0.0
      %1174 = vmatpush1.msra.mxu0 0.0
      %1175 = vmatprep.subr.mxu0 0.0
      %1176 = vmatpush1.msra.mxu0 0.0
      %1177 = vmatprep.subr.mxu0 0.0
      %1178 = vmatpush1.msra.mxu0 0.0
      %1179 = vmatprep.subr.mxu0 0.0
      %1180 = vmatpush1.msra.mxu0 0.0
      %1181 = vmatprep.subr.mxu0 0.0
      %1182 = vmatpush1.msra.mxu0 %v606
      %1183 = vmatprep.subr.mxu0 0.0
      %1184 = vmatpush1.msra.mxu0 %v605
      %1185 = vmatprep.subr.mxu0 0.0
      %1186 = vmatpush1.msra.mxu0 %v604
      %1187 = vmatprep.subr.mxu0 0.0
      %1188 = vmatpush1.msra.mxu0 %v603
      %1189 = vmatprep.subr.mxu0 0.0
      %1190 = vmatpush2.msra.mxu0 0.0
      %1191 = vmatprep.subr.mxu0 0.0
      %1192 = vmatpush2.msra.mxu0 0.0
      %1193 = vmatprep.subr.mxu0 0.0
      %1194 = vmatpush2.msra.mxu0 0.0
      %1195 = vmatprep.subr.mxu0 0.0
      %1196 = vmatpush2.msra.mxu0 0.0
      %1197 = vmatprep.subr.mxu0 0.0
      %1198 = vmatpush2.msra.mxu0 0.0
      %1199 = vmatprep.subr.mxu0 0.0
      %1200 = vmatpush2.msra.mxu0 0.0
      %1201 = vmatprep.subr.mxu0 0.0
      %1202 = vmatpush2.msra.mxu0 0.0
      %1203 = vmatprep.subr.mxu0 0.0
      %1204 = vmatpush2.msra.mxu0 0.0
      %1205 = vmatprep.subr.mxu0 0.0
      %1206 = vmatpush2.msra.mxu0 0.0
      %1207 = vmatprep.subr.mxu0 0.0
      %1208 = vmatpush2.msra.mxu0 0.0
      %1209 = vmatprep.subr.mxu0 0.0
      %1210 = vmatpush2.msra.mxu0 0.0
      %1211 = vmatprep.subr.mxu0 0.0
      %1212 = vmatpush2.msra.mxu0 0.0
      %1213 = vmatprep.subr.mxu0 0.0
      %1214 = vmatpush2.msra.mxu0 0.0
      %1215 = vmatprep.subr.mxu0 0.0
      %1216 = vmatpush2.msra.mxu0 0.0
      %1217 = vmatprep.subr.mxu0 0.0
      %1218 = vmatpush2.msra.mxu0 0.0
      %1219 = vmatprep.subr.mxu0 0.0
      %1220 = vmatpush2.msra.mxu0 0.0
      %1221 = vmatprep.mubr.f32.mxu0 0.0
      %1222 = vmatmul.mubr.f32.gmra.mxu0 %v1155
      %v1223 = vpop.f32.mrf.mxu0
      %v1224 = vadd.f32 %v1154, %v1223
      %v1225 = vpop.f32.mrf.mxu0
      %1226 = vdwg.mxu0
      %v1227 = vtanh.pop %v1224
      %v1228 = vxor.u32 %v1224, 2147483648
      %v1229 = vmul.f32 %v1228, 1.442695
      %v1230 = vpow.pop %v1229
      %v1231 = vadd.f32 %v1230, 1.0
      %v1232 = vrcp.pop %v1231
      %v1233 = vmul.f32 1.0, %v1232
      %v1234 = vsel %vm611, %v1227, %v1233
      %v1235 = vmul.f32 %v1234, %v1140
      %1237 = vrot.lane.b32.xlu0 %v1234, 64
      %v1238 = vpop.permute.xlu0 %1237
      %v1240 = vmul.f32 %v1234, %v1238
      %1242 = vrot.lane.b32.xlu0 %v1240, 32
      %v1243 = vpop.permute.xlu0 %1242
      %v1245 = vadd.f32 %v1235, %v1243
      %v1246 = vtanh.pop %v1245
      %1248 = vrot.lane.b32.xlu0 %v1246, 64
      %v1249 = vpop.permute.xlu0 %1248
      %v1251 = vmul.f32 %v1234, %v1249
      %1253 = vrot.lane.b32.xlu0 %v1251, 32
      %v1254 = vpop.permute.xlu0 %1253
      %1256 = vst.msk [vmem:[%s939] sm:$0xff] %vm722, %v1254
      %1257 = vst.msk [vmem:[%s937] sm:$0xff] %vm725, %v1254
      %s1258 = scalar_lea.vmem [#allocation2], 48
      %v1259 = vld [vmem:[%s1258] sm:$0xff]
      %v1260 = vsel %vm615, %v1254, 0
      %1262 = vmatprep.subr.mxu0 0.0
      %1263 = vmatpush1.msra.mxu0 0.0
      %1264 = vmatprep.subr.mxu0 0.0
      %1265 = vmatpush1.msra.mxu0 0.0
      %1266 = vmatprep.subr.mxu0 0.0
      %1267 = vmatpush1.msra.mxu0 0.0
      %1268 = vmatprep.subr.mxu0 0.0
      %1269 = vmatpush1.msra.mxu0 0.0
      %1270 = vmatprep.subr.mxu0 0.0
      %1271 = vmatpush1.msra.mxu0 0.0
      %1272 = vmatprep.subr.mxu0 0.0
      %1273 = vmatpush1.msra.mxu0 0.0
      %1274 = vmatprep.subr.mxu0 0.0
      %1275 = vmatpush1.msra.mxu0 0.0
      %1276 = vmatprep.subr.mxu0 0.0
      %1277 = vmatpush1.msra.mxu0 0.0
      %1278 = vmatprep.subr.mxu0 0.0
      %1279 = vmatpush1.msra.mxu0 0.0
      %1280 = vmatprep.subr.mxu0 0.0
      %1281 = vmatpush1.msra.mxu0 0.0
      %1282 = vmatprep.subr.mxu0 0.0
      %1283 = vmatpush1.msra.mxu0 0.0
      %1284 = vmatprep.subr.mxu0 0.0
      %1285 = vmatpush1.msra.mxu0 0.0
      %1286 = vmatprep.subr.mxu0 0.0
      %1287 = vmatpush1.msra.mxu0 %v606
      %1288 = vmatprep.subr.mxu0 0.0
      %1289 = vmatpush1.msra.mxu0 %v605
      %1290 = vmatprep.subr.mxu0 0.0
      %1291 = vmatpush1.msra.mxu0 %v604
      %1292 = vmatprep.subr.mxu0 0.0
      %1293 = vmatpush1.msra.mxu0 %v603
      %1294 = vmatprep.subr.mxu0 0.0
      %1295 = vmatpush2.msra.mxu0 0.0
      %1296 = vmatprep.subr.mxu0 0.0
      %1297 = vmatpush2.msra.mxu0 0.0
      %1298 = vmatprep.subr.mxu0 0.0
      %1299 = vmatpush2.msra.mxu0 0.0
      %1300 = vmatprep.subr.mxu0 0.0
      %1301 = vmatpush2.msra.mxu0 0.0
      %1302 = vmatprep.subr.mxu0 0.0
      %1303 = vmatpush2.msra.mxu0 0.0
      %1304 = vmatprep.subr.mxu0 0.0
      %1305 = vmatpush2.msra.mxu0 0.0
      %1306 = vmatprep.subr.mxu0 0.0
      %1307 = vmatpush2.msra.mxu0 0.0
      %1308 = vmatprep.subr.mxu0 0.0
      %1309 = vmatpush2.msra.mxu0 0.0
      %1310 = vmatprep.subr.mxu0 0.0
      %1311 = vmatpush2.msra.mxu0 0.0
      %1312 = vmatprep.subr.mxu0 0.0
      %1313 = vmatpush2.msra.mxu0 0.0
      %1314 = vmatprep.subr.mxu0 0.0
      %1315 = vmatpush2.msra.mxu0 0.0
      %1316 = vmatprep.subr.mxu0 0.0
      %1317 = vmatpush2.msra.mxu0 0.0
      %1318 = vmatprep.subr.mxu0 0.0
      %1319 = vmatpush2.msra.mxu0 0.0
      %1320 = vmatprep.subr.mxu0 0.0
      %1321 = vmatpush2.msra.mxu0 0.0
      %1322 = vmatprep.subr.mxu0 0.0
      %1323 = vmatpush2.msra.mxu0 0.0
      %1324 = vmatprep.subr.mxu0 0.0
      %1325 = vmatpush2.msra.mxu0 0.0
      %1326 = vmatprep.mubr.f32.mxu0 0.0
      %1327 = vmatmul.mubr.f32.gmra.mxu0 %v1260
      %v1328 = vpop.f32.mrf.mxu0
      %v1329 = vadd.f32 %v1259, %v1328
      %v1330 = vpop.f32.mrf.mxu0
      %1331 = vdwg.mxu0
      %v1332 = vtanh.pop %v1329
      %v1333 = vxor.u32 %v1329, 2147483648
      %v1334 = vmul.f32 %v1333, 1.442695
      %v1335 = vpow.pop %v1334
      %v1336 = vadd.f32 %v1335, 1.0
      %v1337 = vrcp.pop %v1336
      %v1338 = vmul.f32 1.0, %v1337
      %v1339 = vsel %vm611, %v1332, %v1338
      %v1340 = vmul.f32 %v1339, %v1245
      %1342 = vrot.lane.b32.xlu0 %v1339, 64
      %v1343 = vpop.permute.xlu0 %1342
      %v1345 = vmul.f32 %v1339, %v1343
      %1347 = vrot.lane.b32.xlu0 %v1345, 32
      %v1348 = vpop.permute.xlu0 %1347
      %v1350 = vadd.f32 %v1340, %v1348
      %v1351 = vtanh.pop %v1350
      %1353 = vrot.lane.b32.xlu0 %v1351, 64
      %v1354 = vpop.permute.xlu0 %1353
      %v1356 = vmul.f32 %v1339, %v1354
      %1358 = vrot.lane.b32.xlu0 %v1356, 32
      %v1359 = vpop.permute.xlu0 %1358
      %1361 = vst.msk [vmem:[%s832] sm:$0xff] %vm722, %v1359
      %1362 = vst.msk [vmem:[%s830] sm:$0xff] %vm725, %v1359
      %s1363 = scalar_lea.vmem [#allocation2], 56
      %v1364 = vld [vmem:[%s1363] sm:$0xff]
      %v1365 = vsel %vm615, %v1359, 0
      %1367 = vmatprep.subr.mxu0 0.0
      %1368 = vmatpush1.msra.mxu0 0.0
      %1369 = vmatprep.subr.mxu0 0.0
      %1370 = vmatpush1.msra.mxu0 0.0
      %1371 = vmatprep.subr.mxu0 0.0
      %1372 = vmatpush1.msra.mxu0 0.0
      %1373 = vmatprep.subr.mxu0 0.0
      %1374 = vmatpush1.msra.mxu0 0.0
      %1375 = vmatprep.subr.mxu0 0.0
      %1376 = vmatpush1.msra.mxu0 0.0
      %1377 = vmatprep.subr.mxu0 0.0
      %1378 = vmatpush1.msra.mxu0 0.0
      %1379 = vmatprep.subr.mxu0 0.0
      %1380 = vmatpush1.msra.mxu0 0.0
      %1381 = vmatprep.subr.mxu0 0.0
      %1382 = vmatpush1.msra.mxu0 0.0
      %1383 = vmatprep.subr.mxu0 0.0
      %1384 = vmatpush1.msra.mxu0 0.0
      %1385 = vmatprep.subr.mxu0 0.0
      %1386 = vmatpush1.msra.mxu0 0.0
      %1387 = vmatprep.subr.mxu0 0.0
      %1388 = vmatpush1.msra.mxu0 0.0
      %1389 = vmatprep.subr.mxu0 0.0
      %1390 = vmatpush1.msra.mxu0 0.0
      %1391 = vmatprep.subr.mxu0 0.0
      %1392 = vmatpush1.msra.mxu0 %v606
      %1393 = vmatprep.subr.mxu0 0.0
      %1394 = vmatpush1.msra.mxu0 %v605
      %1395 = vmatprep.subr.mxu0 0.0
      %1396 = vmatpush1.msra.mxu0 %v604
      %1397 = vmatprep.subr.mxu0 0.0
      %1398 = vmatpush1.msra.mxu0 %v603
      %1399 = vmatprep.subr.mxu0 0.0
      %1400 = vmatpush2.msra.mxu0 0.0
      %1401 = vmatprep.subr.mxu0 0.0
      %1402 = vmatpush2.msra.mxu0 0.0
      %1403 = vmatprep.subr.mxu0 0.0
      %1404 = vmatpush2.msra.mxu0 0.0
      %1405 = vmatprep.subr.mxu0 0.0
      %1406 = vmatpush2.msra.mxu0 0.0
      %1407 = vmatprep.subr.mxu0 0.0
      %1408 = vmatpush2.msra.mxu0 0.0
      %1409 = vmatprep.subr.mxu0 0.0
      %1410 = vmatpush2.msra.mxu0 0.0
      %1411 = vmatprep.subr.mxu0 0.0
      %1412 = vmatpush2.msra.mxu0 0.0
      %1413 = vmatprep.subr.mxu0 0.0
      %1414 = vmatpush2.msra.mxu0 0.0
      %1415 = vmatprep.subr.mxu0 0.0
      %1416 = vmatpush2.msra.mxu0 0.0
      %1417 = vmatprep.subr.mxu0 0.0
      %1418 = vmatpush2.msra.mxu0 0.0
      %1419 = vmatprep.subr.mxu0 0.0
      %1420 = vmatpush2.msra.mxu0 0.0
      %1421 = vmatprep.subr.mxu0 0.0
      %1422 = vmatpush2.msra.mxu0 0.0
      %1423 = vmatprep.subr.mxu0 0.0
      %1424 = vmatpush2.msra.mxu0 0.0
      %1425 = vmatprep.subr.mxu0 0.0
      %1426 = vmatpush2.msra.mxu0 0.0
      %1427 = vmatprep.subr.mxu0 0.0
      %1428 = vmatpush2.msra.mxu0 0.0
      %1429 = vmatprep.subr.mxu0 0.0
      %1430 = vmatpush2.msra.mxu0 0.0
      %1431 = vmatprep.mubr.f32.mxu0 0.0
      %1432 = vmatmul.mubr.f32.gmra.mxu0 %v1365
      %v1433 = vpop.f32.mrf.mxu0
      %v1434 = vadd.f32 %v1364, %v1433
      %v1435 = vpop.f32.mrf.mxu0
      %1436 = vdwg.mxu0
      %v1437 = vtanh.pop %v1434
      %v1438 = vxor.u32 %v1434, 2147483648
      %v1439 = vmul.f32 %v1438, 1.442695
      %v1440 = vpow.pop %v1439
      %v1441 = vadd.f32 %v1440, 1.0
      %v1442 = vrcp.pop %v1441
      %v1443 = vmul.f32 1.0, %v1442
      %v1444 = vsel %vm611, %v1437, %v1443
      %v1445 = vmul.f32 %v1444, %v1350
      %1447 = vrot.lane.b32.xlu0 %v1444, 64
      %v1448 = vpop.permute.xlu0 %1447
      %v1450 = vmul.f32 %v1444, %v1448
      %1452 = vrot.lane.b32.xlu0 %v1450, 32
      %v1453 = vpop.permute.xlu0 %1452
      %v1455 = vadd.f32 %v1445, %v1453
      %v1456 = vtanh.pop %v1455
      %1458 = vrot.lane.b32.xlu0 %v1456, 64
      %v1459 = vpop.permute.xlu0 %1458
      %v1461 = vmul.f32 %v1444, %v1459
      %1463 = vrot.lane.b32.xlu0 %v1461, 32
      %v1464 = vpop.permute.xlu0 %1463
      %1466 = vst.msk [vmem:[%s724] sm:$0xff] %vm722, %v1464
      %1467 = vst.msk [vmem:[#allocation3] sm:$0xff] %vm725, %v1464
      %v1468 = vld [vmem:[#allocation3] sm:$0xff]
      %v1469 = vld [vmem:[#allocation3 + $0x8] sm:$0xff]
      %v1470 = vld [vmem:[#allocation3 + $0x10] sm:$0xff]
      %v1471 = vld [vmem:[#allocation3 + $0x18] sm:$0xff]
      %v1472 = vld [vmem:[#allocation3 + $0x20] sm:$0xff]
      %v1473 = vld [vmem:[#allocation3 + $0x28] sm:$0xff]
      %v1474 = vld [vmem:[#allocation3 + $0x30] sm:$0xff]
      %v1475 = vld [vmem:[#allocation3 + $0x38] sm:$0xff]
      %v1476 = vld [vmem:[%s6] sm:$0xff]
      %v1477 = vld [vmem:[%s6 + $0x8] sm:$0xff]
      %v1478 = vld [vmem:[%s6 + $0x10] sm:$0xff]
      %v1479 = vld [vmem:[%s6 + $0x18] sm:$0xff]
      %v1480 = vld [vmem:[%s7] sm:$0x1]
      %v1482 = vlaneseq
      %v1483 = vshrl.u32 %v1482, 7
      %v1484 = vsub.s32 0, %v1483
      %v1485 = vrot.slane %v1480, %v1484
      %v1488 = vsel %vm615, %v1468, 0
      %v1491 = vsel %vm615, %v1469, 0
      %v1494 = vsel %vm615, %v1470, 0
      %v1497 = vsel %vm615, %v1471, 0
      %v1500 = vsel %vm615, %v1472, 0
      %v1503 = vsel %vm615, %v1473, 0
      %v1506 = vsel %vm615, %v1474, 0
      %v1509 = vsel %vm615, %v1475, 0
      %1511 = vmatprep.subr.mxu0 0.0
      %1512 = vmatpush1.msra.mxu0 0.0
      %1513 = vmatprep.subr.mxu0 0.0
      %1514 = vmatpush1.msra.mxu0 0.0
      %1515 = vmatprep.subr.mxu0 0.0
      %1516 = vmatpush1.msra.mxu0 0.0
      %1517 = vmatprep.subr.mxu0 0.0
      %1518 = vmatpush1.msra.mxu0 0.0
      %1519 = vmatprep.subr.mxu0 0.0
      %1520 = vmatpush1.msra.mxu0 0.0
      %1521 = vmatprep.subr.mxu0 0.0
      %1522 = vmatpush1.msra.mxu0 0.0
      %1523 = vmatprep.subr.mxu0 0.0
      %1524 = vmatpush1.msra.mxu0 0.0
      %1525 = vmatprep.subr.mxu0 0.0
      %1526 = vmatpush1.msra.mxu0 0.0
      %1527 = vmatprep.subr.mxu0 0.0
      %1528 = vmatpush1.msra.mxu0 0.0
      %1529 = vmatprep.subr.mxu0 0.0
      %1530 = vmatpush1.msra.mxu0 0.0
      %1531 = vmatprep.subr.mxu0 0.0
      %1532 = vmatpush1.msra.mxu0 0.0
      %1533 = vmatprep.subr.mxu0 0.0
      %1534 = vmatpush1.msra.mxu0 0.0
      %1535 = vmatprep.subr.mxu0 0.0
      %1536 = vmatpush1.msra.mxu0 %v1479
      %1537 = vmatprep.subr.mxu0 0.0
      %1538 = vmatpush1.msra.mxu0 %v1478
      %1539 = vmatprep.subr.mxu0 0.0
      %1540 = vmatpush1.msra.mxu0 %v1477
      %1541 = vmatprep.subr.mxu0 0.0
      %1542 = vmatpush1.msra.mxu0 %v1476
      %1543 = vmatprep.subr.mxu0 0.0
      %1544 = vmatpush2.msra.mxu0 0.0
      %1545 = vmatprep.subr.mxu0 0.0
      %1546 = vmatpush2.msra.mxu0 0.0
      %1547 = vmatprep.subr.mxu0 0.0
      %1548 = vmatpush2.msra.mxu0 0.0
      %1549 = vmatprep.subr.mxu0 0.0
      %1550 = vmatpush2.msra.mxu0 0.0
      %1551 = vmatprep.subr.mxu0 0.0
      %1552 = vmatpush2.msra.mxu0 0.0
      %1553 = vmatprep.subr.mxu0 0.0
      %1554 = vmatpush2.msra.mxu0 0.0
      %1555 = vmatprep.subr.mxu0 0.0
      %1556 = vmatpush2.msra.mxu0 0.0
      %1557 = vmatprep.subr.mxu0 0.0
      %1558 = vmatpush2.msra.mxu0 0.0
      %1559 = vmatprep.subr.mxu0 0.0
      %1560 = vmatpush2.msra.mxu0 0.0
      %1561 = vmatprep.subr.mxu0 0.0
      %1562 = vmatpush2.msra.mxu0 0.0
      %1563 = vmatprep.subr.mxu0 0.0
      %1564 = vmatpush2.msra.mxu0 0.0
      %1565 = vmatprep.subr.mxu0 0.0
      %1566 = vmatpush2.msra.mxu0 0.0
      %1567 = vmatprep.subr.mxu0 0.0
      %1568 = vmatpush2.msra.mxu0 0.0
      %1569 = vmatprep.subr.mxu0 0.0
      %1570 = vmatpush2.msra.mxu0 0.0
      %1571 = vmatprep.subr.mxu0 0.0
      %1572 = vmatpush2.msra.mxu0 0.0
      %1573 = vmatprep.subr.mxu0 0.0
      %1574 = vmatpush2.msra.mxu0 0.0
      %1575 = vmatprep.mubr.f32.mxu0 0.0
      %1576 = vmatmul.mubr.f32.gmra.mxu0 %v1488
      %v1577 = vpop.f32.mrf.mxu0
      %v1578 = vadd.f32 %v1485, %v1577
      %v1579 = vpop.f32.mrf.mxu0
      %1580 = vmatprep.mubr.f32.mxu0 0.0
      %1581 = vmatmul.mubr.f32.gmra.mxu0 %v1491
      %v1582 = vpop.f32.mrf.mxu0
      %v1583 = vadd.f32 %v1485, %v1582
      %v1584 = vpop.f32.mrf.mxu0
      %1585 = vmatprep.mubr.f32.mxu0 0.0
      %1586 = vmatmul.mubr.f32.gmra.mxu0 %v1494
      %v1587 = vpop.f32.mrf.mxu0
      %v1588 = vadd.f32 %v1485, %v1587
      %v1589 = vpop.f32.mrf.mxu0
      %1590 = vmatprep.mubr.f32.mxu0 0.0
      %1591 = vmatmul.mubr.f32.gmra.mxu0 %v1497
      %v1592 = vpop.f32.mrf.mxu0
      %v1593 = vadd.f32 %v1485, %v1592
      %v1594 = vpop.f32.mrf.mxu0
      %1595 = vmatprep.mubr.f32.mxu0 0.0
      %1596 = vmatmul.mubr.f32.gmra.mxu0 %v1500
      %v1597 = vpop.f32.mrf.mxu0
      %v1598 = vadd.f32 %v1485, %v1597
      %v1599 = vpop.f32.mrf.mxu0
      %1600 = vmatprep.mubr.f32.mxu0 0.0
      %1601 = vmatmul.mubr.f32.gmra.mxu0 %v1503
      %v1602 = vpop.f32.mrf.mxu0
      %v1603 = vadd.f32 %v1485, %v1602
      %v1604 = vpop.f32.mrf.mxu0
      %1605 = vmatprep.mubr.f32.mxu0 0.0
      %1606 = vmatmul.mubr.f32.gmra.mxu0 %v1506
      %v1607 = vpop.f32.mrf.mxu0
      %v1608 = vadd.f32 %v1485, %v1607
      %v1609 = vpop.f32.mrf.mxu0
      %1610 = vmatprep.mubr.f32.mxu0 0.0
      %1611 = vmatmul.mubr.f32.gmra.mxu0 %v1509
      %v1612 = vpop.f32.mrf.mxu0
      %v1613 = vadd.f32 %v1485, %v1612
      %v1614 = vpop.f32.mrf.mxu0
      %1615 = vdwg.mxu0
      %vm1616 = vcmask 39936
      %1617 = vst.msk [vmem:[#allocation4] sm:$0xff] %vm1616, %v1578
      %1618 = vst.msk [vmem:[#allocation4 + $0x8] sm:$0xff] %vm1616, %v1583
      %1619 = vst.msk [vmem:[#allocation4 + $0x10] sm:$0xff] %vm1616, %v1588
      %1620 = vst.msk [vmem:[#allocation4 + $0x18] sm:$0xff] %vm1616, %v1593
      %1621 = vst.msk [vmem:[#allocation4 + $0x20] sm:$0xff] %vm1616, %v1598
      %1622 = vst.msk [vmem:[#allocation4 + $0x28] sm:$0xff] %vm1616, %v1603
      %1623 = vst.msk [vmem:[#allocation4 + $0x30] sm:$0xff] %vm1616, %v1608
      %1624 = vst.msk [vmem:[#allocation4 + $0x38] sm:$0xff] %vm1616, %v1613
      %v1625 = vld [vmem:[%s8] sm:$0x1f]
      %vm1626 = vcmp.eq.s32.totalorder %v608, 3
      %v1627 = vsel %vm1626, 0.0, -10000.0
      %v1628 = vld [vmem:[#allocation4] sm:$0xff]
      %v1629 = vlaneseq
      %v1630 = vshrl.u32 %v1629, 7
      %v1631 = vsub.s32 0, %v1630
      %v1632 = vrot.slane %v1625, %v1631
      %v1633 = vadd.f32 %v1627, %v1632
      %v1634 = vsel %vm1616, %v1633, -inf
      %1635 = vmax.xlane.f32.xlu0 %v1634
      %v1636 = vpop.xlane.xlu0 %1635
      %vm1637 = vcmp.eq.f32.partialorder %v1633, %v1636
      %v1638 = vsel %vm1637, %v608, 5
      %v1639 = vsel %vm1616, %v1638, 2147483647
      %v1640 = vand.u32 %v1639, 65535
      %v1641 = vshra.s32 %v1639, 16
      %v1642 = vcvt.s32.f32 %v1640
      %v1643 = vcvt.s32.f32 %v1641
      %1644 = vmin.xlane.f32.xlu0 %v1643
      %v1645 = vpop.xlane.xlu0 %1644
      %vm1646 = vcmp.eq.f32.partialorder %v1643, %v1645
      %v1647 = vsel %vm1646, %v1642, inf
      %1648 = vmin.xlane.f32.xlu0 %v1647
      %v1649 = vpop.xlane.xlu0 %1648
      %v1650 = vcvt.f32.s32 %v1649
      %v1651 = vcvt.f32.s32 %v1645
      %v1652 = vshll.u32 %v1651, 16
      %v1653 = vadd.s32 %v1652, %v1650
      %vm1654 = vcmp.eq.s32.totalorder %v608, 0
      %v1655 = vsel %vm1654, %v1636, 0.0
      %v1656 = vsel %vm1654, %v1653, 0
      %v1657 = vlaneseq
      %v1658 = vshrl.u32 %v1657, 7
      %v1659 = vsub.s32 1, %v1658
      %v1660 = vrot.slane %v1625, %v1659
      %v1661 = vadd.f32 %v1627, %v1660
      %v1662 = vsel %vm1616, %v1661, -inf
      %1663 = vmax.xlane.f32.xlu0 %v1662
      %v1664 = vpop.xlane.xlu0 %1663
      %vm1665 = vcmp.eq.f32.partialorder %v1661, %v1664
      %v1666 = vsel %vm1665, %v608, 5
      %v1667 = vsel %vm1616, %v1666, 2147483647
      %v1668 = vand.u32 %v1667, 65535
      %v1669 = vshra.s32 %v1667, 16
      %v1670 = vcvt.s32.f32 %v1668
      %v1671 = vcvt.s32.f32 %v1669
      %1672 = vmin.xlane.f32.xlu0 %v1671
      %v1673 = vpop.xlane.xlu0 %1672
      %vm1674 = vcmp.eq.f32.partialorder %v1671, %v1673
      %v1675 = vsel %vm1674, %v1670, inf
      %1676 = vmin.xlane.f32.xlu0 %v1675
      %v1677 = vpop.xlane.xlu0 %1676
      %v1678 = vcvt.f32.s32 %v1677
      %v1679 = vcvt.f32.s32 %v1673
      %v1680 = vshll.u32 %v1679, 16
      %v1681 = vadd.s32 %v1680, %v1678
      %vm1682 = vcmp.eq.s32.totalorder %v608, 1
      %v1683 = vsel %vm1682, %v1664, %v1655
      %v1684 = vsel %vm1682, %v1681, %v1656
      %v1685 = vlaneseq
      %v1686 = vshrl.u32 %v1685, 7
      %v1687 = vsub.s32 2, %v1686
      %v1688 = vrot.slane %v1625, %v1687
      %v1689 = vadd.f32 %v1627, %v1688
      %v1690 = vsel %vm1616, %v1689, -inf
      %1691 = vmax.xlane.f32.xlu0 %v1690
      %v1692 = vpop.xlane.xlu0 %1691
      %vm1693 = vcmp.eq.f32.partialorder %v1689, %v1692
      %v1694 = vsel %vm1693, %v608, 5
      %v1695 = vsel %vm1616, %v1694, 2147483647
      %v1696 = vand.u32 %v1695, 65535
      %v1697 = vshra.s32 %v1695, 16
      %v1698 = vcvt.s32.f32 %v1696
      %v1699 = vcvt.s32.f32 %v1697
      %1700 = vmin.xlane.f32.xlu0 %v1699
      %v1701 = vpop.xlane.xlu0 %1700
      %vm1702 = vcmp.eq.f32.partialorder %v1699, %v1701
      %v1703 = vsel %vm1702, %v1698, inf
      %1704 = vmin.xlane.f32.xlu0 %v1703
      %v1705 = vpop.xlane.xlu0 %1704
      %v1706 = vcvt.f32.s32 %v1705
      %v1707 = vcvt.f32.s32 %v1701
      %v1708 = vshll.u32 %v1707, 16
      %v1709 = vadd.s32 %v1708, %v1706
      %vm1710 = vcmp.eq.s32.totalorder %v608, 2
      %v1711 = vsel %vm1710, %v1692, %v1683
      %v1712 = vsel %vm1710, %v1709, %v1684
      %v1713 = vlaneseq
      %v1714 = vshrl.u32 %v1713, 7
      %v1715 = vsub.s32 3, %v1714
      %v1716 = vrot.slane %v1625, %v1715
      %v1717 = vadd.f32 %v1627, %v1716
      %v1718 = vsel %vm1616, %v1717, -inf
      %1719 = vmax.xlane.f32.xlu0 %v1718
      %v1720 = vpop.xlane.xlu0 %1719
      %vm1721 = vcmp.eq.f32.partialorder %v1717, %v1720
      %v1722 = vsel %vm1721, %v608, 5
      %v1723 = vsel %vm1616, %v1722, 2147483647
      %v1724 = vand.u32 %v1723, 65535
      %v1725 = vshra.s32 %v1723, 16
      %v1726 = vcvt.s32.f32 %v1724
      %v1727 = vcvt.s32.f32 %v1725
      %1728 = vmin.xlane.f32.xlu0 %v1727
      %v1729 = vpop.xlane.xlu0 %1728
      %vm1730 = vcmp.eq.f32.partialorder %v1727, %v1729
      %v1731 = vsel %vm1730, %v1726, inf
      %1732 = vmin.xlane.f32.xlu0 %v1731
      %v1733 = vpop.xlane.xlu0 %1732
      %v1734 = vcvt.f32.s32 %v1733
      %v1735 = vcvt.f32.s32 %v1729
      %v1736 = vshll.u32 %v1735, 16
      %v1737 = vadd.s32 %v1736, %v1734
      %v1738 = vsel %vm1626, %v1720, %v1711
      %v1739 = vsel %vm1626, %v1737, %v1712
      %v1740 = vlaneseq
      %v1741 = vshrl.u32 %v1740, 7
      %v1742 = vsub.s32 4, %v1741
      %v1743 = vrot.slane %v1625, %v1742
      %v1744 = vadd.f32 %v1627, %v1743
      %v1745 = vsel %vm1616, %v1744, -inf
      %1746 = vmax.xlane.f32.xlu0 %v1745
      %v1747 = vpop.xlane.xlu0 %1746
      %vm1748 = vcmp.eq.f32.partialorder %v1744, %v1747
      %v1749 = vsel %vm1748, %v608, 5
      %v1750 = vsel %vm1616, %v1749, 2147483647
      %v1751 = vand.u32 %v1750, 65535
      %v1752 = vshra.s32 %v1750, 16
      %v1753 = vcvt.s32.f32 %v1751
      %v1754 = vcvt.s32.f32 %v1752
      %1755 = vmin.xlane.f32.xlu0 %v1754
      %v1756 = vpop.xlane.xlu0 %1755
      %vm1757 = vcmp.eq.f32.partialorder %v1754, %v1756
      %v1758 = vsel %vm1757, %v1753, inf
      %1759 = vmin.xlane.f32.xlu0 %v1758
      %v1760 = vpop.xlane.xlu0 %1759
      %v1761 = vcvt.f32.s32 %v1760
      %v1762 = vcvt.f32.s32 %v1756
      %v1763 = vshll.u32 %v1762, 16
      %v1764 = vadd.s32 %v1763, %v1761
      %vm1765 = vcmp.eq.s32.totalorder %v608, 4
      %v1766 = vsel %vm1765, %v1747, %v1738
      %v1767 = vsel %vm1765, %v1764, %v1739
      %1768 = vst.msk [vmem:[#allocation5] sm:$0xff] %vm1616, %v1767
      %v1769 = vadd.f32 %v1766, %v1628
      %s1770 = scalar_lea.vmem [#allocation4], 8
      %v1771 = vld [vmem:[%s1770] sm:$0xff]
      %v1772 = vadd.f32 %v1769, %v1632
      %v1773 = vsel %vm1616, %v1772, -inf
      %1774 = vmax.xlane.f32.xlu0 %v1773
      %v1775 = vpop.xlane.xlu0 %1774
      %vm1776 = vcmp.eq.f32.partialorder %v1772, %v1775
      %v1777 = vsel %vm1776, %v608, 5
      %v1778 = vsel %vm1616, %v1777, 2147483647
      %v1779 = vand.u32 %v1778, 65535
      %v1780 = vshra.s32 %v1778, 16
      %v1781 = vcvt.s32.f32 %v1779
      %v1782 = vcvt.s32.f32 %v1780
      %1783 = vmin.xlane.f32.xlu0 %v1782
      %v1784 = vpop.xlane.xlu0 %1783
      %vm1785 = vcmp.eq.f32.partialorder %v1782, %v1784
      %v1786 = vsel %vm1785, %v1781, inf
      %1787 = vmin.xlane.f32.xlu0 %v1786
      %v1788 = vpop.xlane.xlu0 %1787
      %v1789 = vcvt.f32.s32 %v1788
      %v1790 = vcvt.f32.s32 %v1784
      %v1791 = vshll.u32 %v1790, 16
      %v1792 = vadd.s32 %v1791, %v1789
      %v1793 = vsel %vm1654, %v1775, 0.0
      %v1794 = vsel %vm1654, %v1792, 0
      %v1795 = vadd.f32 %v1769, %v1660
      %v1796 = vsel %vm1616, %v1795, -inf
      %1797 = vmax.xlane.f32.xlu0 %v1796
      %v1798 = vpop.xlane.xlu0 %1797
      %vm1799 = vcmp.eq.f32.partialorder %v1795, %v1798
      %v1800 = vsel %vm1799, %v608, 5
      %v1801 = vsel %vm1616, %v1800, 2147483647
      %v1802 = vand.u32 %v1801, 65535
      %v1803 = vshra.s32 %v1801, 16
      %v1804 = vcvt.s32.f32 %v1802
      %v1805 = vcvt.s32.f32 %v1803
      %1806 = vmin.xlane.f32.xlu0 %v1805
      %v1807 = vpop.xlane.xlu0 %1806
      %vm1808 = vcmp.eq.f32.partialorder %v1805, %v1807
      %v1809 = vsel %vm1808, %v1804, inf
      %1810 = vmin.xlane.f32.xlu0 %v1809
      %v1811 = vpop.xlane.xlu0 %1810
      %v1812 = vcvt.f32.s32 %v1811
      %v1813 = vcvt.f32.s32 %v1807
      %v1814 = vshll.u32 %v1813, 16
      %v1815 = vadd.s32 %v1814, %v1812
      %v1816 = vsel %vm1682, %v1798, %v1793
      %v1817 = vsel %vm1682, %v1815, %v1794
      %v1818 = vadd.f32 %v1769, %v1688
      %v1819 = vsel %vm1616, %v1818, -inf
      %1820 = vmax.xlane.f32.xlu0 %v1819
      %v1821 = vpop.xlane.xlu0 %1820
      %vm1822 = vcmp.eq.f32.partialorder %v1818, %v1821
      %v1823 = vsel %vm1822, %v608, 5
      %v1824 = vsel %vm1616, %v1823, 2147483647
      %v1825 = vand.u32 %v1824, 65535
      %v1826 = vshra.s32 %v1824, 16
      %v1827 = vcvt.s32.f32 %v1825
      %v1828 = vcvt.s32.f32 %v1826
      %1829 = vmin.xlane.f32.xlu0 %v1828
      %v1830 = vpop.xlane.xlu0 %1829
      %vm1831 = vcmp.eq.f32.partialorder %v1828, %v1830
      %v1832 = vsel %vm1831, %v1827, inf
      %1833 = vmin.xlane.f32.xlu0 %v1832
      %v1834 = vpop.xlane.xlu0 %1833
      %v1835 = vcvt.f32.s32 %v1834
      %v1836 = vcvt.f32.s32 %v1830
      %v1837 = vshll.u32 %v1836, 16
      %v1838 = vadd.s32 %v1837, %v1835
      %v1839 = vsel %vm1710, %v1821, %v1816
      %v1840 = vsel %vm1710, %v1838, %v1817
      %v1841 = vadd.f32 %v1769, %v1716
      %v1842 = vsel %vm1616, %v1841, -inf
      %1843 = vmax.xlane.f32.xlu0 %v1842
      %v1844 = vpop.xlane.xlu0 %1843
      %vm1845 = vcmp.eq.f32.partialorder %v1841, %v1844
      %v1846 = vsel %vm1845, %v608, 5
      %v1847 = vsel %vm1616, %v1846, 2147483647
      %v1848 = vand.u32 %v1847, 65535
      %v1849 = vshra.s32 %v1847, 16
      %v1850 = vcvt.s32.f32 %v1848
      %v1851 = vcvt.s32.f32 %v1849
      %1852 = vmin.xlane.f32.xlu0 %v1851
      %v1853 = vpop.xlane.xlu0 %1852
      %vm1854 = vcmp.eq.f32.partialorder %v1851, %v1853
      %v1855 = vsel %vm1854, %v1850, inf
      %1856 = vmin.xlane.f32.xlu0 %v1855
      %v1857 = vpop.xlane.xlu0 %1856
      %v1858 = vcvt.f32.s32 %v1857
      %v1859 = vcvt.f32.s32 %v1853
      %v1860 = vshll.u32 %v1859, 16
      %v1861 = vadd.s32 %v1860, %v1858
      %v1862 = vsel %vm1626, %v1844, %v1839
      %v1863 = vsel %vm1626, %v1861, %v1840
      %v1864 = vadd.f32 %v1769, %v1743
      %v1865 = vsel %vm1616, %v1864, -inf
      %1866 = vmax.xlane.f32.xlu0 %v1865
      %v1867 = vpop.xlane.xlu0 %1866
      %vm1868 = vcmp.eq.f32.partialorder %v1864, %v1867
      %v1869 = vsel %vm1868, %v608, 5
      %v1870 = vsel %vm1616, %v1869, 2147483647
      %v1871 = vand.u32 %v1870, 65535
      %v1872 = vshra.s32 %v1870, 16
      %v1873 = vcvt.s32.f32 %v1871
      %v1874 = vcvt.s32.f32 %v1872
      %1875 = vmin.xlane.f32.xlu0 %v1874
      %v1876 = vpop.xlane.xlu0 %1875
      %vm1877 = vcmp.eq.f32.partialorder %v1874, %v1876
      %v1878 = vsel %vm1877, %v1873, inf
      %1879 = vmin.xlane.f32.xlu0 %v1878
      %v1880 = vpop.xlane.xlu0 %1879
      %v1881 = vcvt.f32.s32 %v1880
      %v1882 = vcvt.f32.s32 %v1876
      %v1883 = vshll.u32 %v1882, 16
      %v1884 = vadd.s32 %v1883, %v1881
      %v1885 = vsel %vm1765, %v1867, %v1862
      %v1886 = vsel %vm1765, %v1884, %v1863
      %s1887 = scalar_lea.vmem [#allocation5], 8
      %1888 = vst.msk [vmem:[%s1887] sm:$0xff] %vm1616, %v1886
      %v1889 = vadd.f32 %v1885, %v1771
      %s1890 = scalar_lea.vmem [#allocation4], 16
      %v1891 = vld [vmem:[%s1890] sm:$0xff]
      %v1892 = vadd.f32 %v1889, %v1632
      %v1893 = vsel %vm1616, %v1892, -inf
      %1894 = vmax.xlane.f32.xlu0 %v1893
      %v1895 = vpop.xlane.xlu0 %1894
      %vm1896 = vcmp.eq.f32.partialorder %v1892, %v1895
      %v1897 = vsel %vm1896, %v608, 5
      %v1898 = vsel %vm1616, %v1897, 2147483647
      %v1899 = vand.u32 %v1898, 65535
      %v1900 = vshra.s32 %v1898, 16
      %v1901 = vcvt.s32.f32 %v1899
      %v1902 = vcvt.s32.f32 %v1900
      %1903 = vmin.xlane.f32.xlu0 %v1902
      %v1904 = vpop.xlane.xlu0 %1903
      %vm1905 = vcmp.eq.f32.partialorder %v1902, %v1904
      %v1906 = vsel %vm1905, %v1901, inf
      %1907 = vmin.xlane.f32.xlu0 %v1906
      %v1908 = vpop.xlane.xlu0 %1907
      %v1909 = vcvt.f32.s32 %v1908
      %v1910 = vcvt.f32.s32 %v1904
      %v1911 = vshll.u32 %v1910, 16
      %v1912 = vadd.s32 %v1911, %v1909
      %v1913 = vsel %vm1654, %v1895, 0.0
      %v1914 = vsel %vm1654, %v1912, 0
      %v1915 = vadd.f32 %v1889, %v1660
      %v1916 = vsel %vm1616, %v1915, -inf
      %1917 = vmax.xlane.f32.xlu0 %v1916
      %v1918 = vpop.xlane.xlu0 %1917
      %vm1919 = vcmp.eq.f32.partialorder %v1915, %v1918
      %v1920 = vsel %vm1919, %v608, 5
      %v1921 = vsel %vm1616, %v1920, 2147483647
      %v1922 = vand.u32 %v1921, 65535
      %v1923 = vshra.s32 %v1921, 16
      %v1924 = vcvt.s32.f32 %v1922
      %v1925 = vcvt.s32.f32 %v1923
      %1926 = vmin.xlane.f32.xlu0 %v1925
      %v1927 = vpop.xlane.xlu0 %1926
      %vm1928 = vcmp.eq.f32.partialorder %v1925, %v1927
      %v1929 = vsel %vm1928, %v1924, inf
      %1930 = vmin.xlane.f32.xlu0 %v1929
      %v1931 = vpop.xlane.xlu0 %1930
      %v1932 = vcvt.f32.s32 %v1931
      %v1933 = vcvt.f32.s32 %v1927
      %v1934 = vshll.u32 %v1933, 16
      %v1935 = vadd.s32 %v1934, %v1932
      %v1936 = vsel %vm1682, %v1918, %v1913
      %v1937 = vsel %vm1682, %v1935, %v1914
      %v1938 = vadd.f32 %v1889, %v1688
      %v1939 = vsel %vm1616, %v1938, -inf
      %1940 = vmax.xlane.f32.xlu0 %v1939
      %v1941 = vpop.xlane.xlu0 %1940
      %vm1942 = vcmp.eq.f32.partialorder %v1938, %v1941
      %v1943 = vsel %vm1942, %v608, 5
      %v1944 = vsel %vm1616, %v1943, 2147483647
      %v1945 = vand.u32 %v1944, 65535
      %v1946 = vshra.s32 %v1944, 16
      %v1947 = vcvt.s32.f32 %v1945
      %v1948 = vcvt.s32.f32 %v1946
      %1949 = vmin.xlane.f32.xlu0 %v1948
      %v1950 = vpop.xlane.xlu0 %1949
      %vm1951 = vcmp.eq.f32.partialorder %v1948, %v1950
      %v1952 = vsel %vm1951, %v1947, inf
      %1953 = vmin.xlane.f32.xlu0 %v1952
      %v1954 = vpop.xlane.xlu0 %1953
      %v1955 = vcvt.f32.s32 %v1954
      %v1956 = vcvt.f32.s32 %v1950
      %v1957 = vshll.u32 %v1956, 16
      %v1958 = vadd.s32 %v1957, %v1955
      %v1959 = vsel %vm1710, %v1941, %v1936
      %v1960 = vsel %vm1710, %v1958, %v1937
      %v1961 = vadd.f32 %v1889, %v1716
      %v1962 = vsel %vm1616, %v1961, -inf
      %1963 = vmax.xlane.f32.xlu0 %v1962
      %v1964 = vpop.xlane.xlu0 %1963
      %vm1965 = vcmp.eq.f32.partialorder %v1961, %v1964
      %v1966 = vsel %vm1965, %v608, 5
      %v1967 = vsel %vm1616, %v1966, 2147483647
      %v1968 = vand.u32 %v1967, 65535
      %v1969 = vshra.s32 %v1967, 16
      %v1970 = vcvt.s32.f32 %v1968
      %v1971 = vcvt.s32.f32 %v1969
      %1972 = vmin.xlane.f32.xlu0 %v1971
      %v1973 = vpop.xlane.xlu0 %1972
      %vm1974 = vcmp.eq.f32.partialorder %v1971, %v1973
      %v1975 = vsel %vm1974, %v1970, inf
      %1976 = vmin.xlane.f32.xlu0 %v1975
      %v1977 = vpop.xlane.xlu0 %1976
      %v1978 = vcvt.f32.s32 %v1977
      %v1979 = vcvt.f32.s32 %v1973
      %v1980 = vshll.u32 %v1979, 16
      %v1981 = vadd.s32 %v1980, %v1978
      %v1982 = vsel %vm1626, %v1964, %v1959
      %v1983 = vsel %vm1626, %v1981, %v1960
      %v1984 = vadd.f32 %v1889, %v1743
      %v1985 = vsel %vm1616, %v1984, -inf
      %1986 = vmax.xlane.f32.xlu0 %v1985
      %v1987 = vpop.xlane.xlu0 %1986
      %vm1988 = vcmp.eq.f32.partialorder %v1984, %v1987
      %v1989 = vsel %vm1988, %v608, 5
      %v1990 = vsel %vm1616, %v1989, 2147483647
      %v1991 = vand.u32 %v1990, 65535
      %v1992 = vshra.s32 %v1990, 16
      %v1993 = vcvt.s32.f32 %v1991
      %v1994 = vcvt.s32.f32 %v1992
      %1995 = vmin.xlane.f32.xlu0 %v1994
      %v1996 = vpop.xlane.xlu0 %1995
      %vm1997 = vcmp.eq.f32.partialorder %v1994, %v1996
      %v1998 = vsel %vm1997, %v1993, inf
      %1999 = vmin.xlane.f32.xlu0 %v1998
      %v2000 = vpop.xlane.xlu0 %1999
      %v2001 = vcvt.f32.s32 %v2000
      %v2002 = vcvt.f32.s32 %v1996
      %v2003 = vshll.u32 %v2002, 16
      %v2004 = vadd.s32 %v2003, %v2001
      %v2005 = vsel %vm1765, %v1987, %v1982
      %v2006 = vsel %vm1765, %v2004, %v1983
      %s2007 = scalar_lea.vmem [#allocation5], 16
      %2008 = vst.msk [vmem:[%s2007] sm:$0xff] %vm1616, %v2006
      %v2009 = vadd.f32 %v2005, %v1891
      %s2010 = scalar_lea.vmem [#allocation4], 24
      %v2011 = vld [vmem:[%s2010] sm:$0xff]
      %v2012 = vadd.f32 %v2009, %v1632
      %v2013 = vsel %vm1616, %v2012, -inf
      %2014 = vmax.xlane.f32.xlu0 %v2013
      %v2015 = vpop.xlane.xlu0 %2014
      %vm2016 = vcmp.eq.f32.partialorder %v2012, %v2015
      %v2017 = vsel %vm2016, %v608, 5
      %v2018 = vsel %vm1616, %v2017, 2147483647
      %v2019 = vand.u32 %v2018, 65535
      %v2020 = vshra.s32 %v2018, 16
      %v2021 = vcvt.s32.f32 %v2019
      %v2022 = vcvt.s32.f32 %v2020
      %2023 = vmin.xlane.f32.xlu0 %v2022
      %v2024 = vpop.xlane.xlu0 %2023
      %vm2025 = vcmp.eq.f32.partialorder %v2022, %v2024
      %v2026 = vsel %vm2025, %v2021, inf
      %2027 = vmin.xlane.f32.xlu0 %v2026
      %v2028 = vpop.xlane.xlu0 %2027
      %v2029 = vcvt.f32.s32 %v2028
      %v2030 = vcvt.f32.s32 %v2024
      %v2031 = vshll.u32 %v2030, 16
      %v2032 = vadd.s32 %v2031, %v2029
      %v2033 = vsel %vm1654, %v2015, 0.0
      %v2034 = vsel %vm1654, %v2032, 0
      %v2035 = vadd.f32 %v2009, %v1660
      %v2036 = vsel %vm1616, %v2035, -inf
      %2037 = vmax.xlane.f32.xlu0 %v2036
      %v2038 = vpop.xlane.xlu0 %2037
      %vm2039 = vcmp.eq.f32.partialorder %v2035, %v2038
      %v2040 = vsel %vm2039, %v608, 5
      %v2041 = vsel %vm1616, %v2040, 2147483647
      %v2042 = vand.u32 %v2041, 65535
      %v2043 = vshra.s32 %v2041, 16
      %v2044 = vcvt.s32.f32 %v2042
      %v2045 = vcvt.s32.f32 %v2043
      %2046 = vmin.xlane.f32.xlu0 %v2045
      %v2047 = vpop.xlane.xlu0 %2046
      %vm2048 = vcmp.eq.f32.partialorder %v2045, %v2047
      %v2049 = vsel %vm2048, %v2044, inf
      %2050 = vmin.xlane.f32.xlu0 %v2049
      %v2051 = vpop.xlane.xlu0 %2050
      %v2052 = vcvt.f32.s32 %v2051
      %v2053 = vcvt.f32.s32 %v2047
      %v2054 = vshll.u32 %v2053, 16
      %v2055 = vadd.s32 %v2054, %v2052
      %v2056 = vsel %vm1682, %v2038, %v2033
      %v2057 = vsel %vm1682, %v2055, %v2034
      %v2058 = vadd.f32 %v2009, %v1688
      %v2059 = vsel %vm1616, %v2058, -inf
      %2060 = vmax.xlane.f32.xlu0 %v2059
      %v2061 = vpop.xlane.xlu0 %2060
      %vm2062 = vcmp.eq.f32.partialorder %v2058, %v2061
      %v2063 = vsel %vm2062, %v608, 5
      %v2064 = vsel %vm1616, %v2063, 2147483647
      %v2065 = vand.u32 %v2064, 65535
      %v2066 = vshra.s32 %v2064, 16
      %v2067 = vcvt.s32.f32 %v2065
      %v2068 = vcvt.s32.f32 %v2066
      %2069 = vmin.xlane.f32.xlu0 %v2068
      %v2070 = vpop.xlane.xlu0 %2069
      %vm2071 = vcmp.eq.f32.partialorder %v2068, %v2070
      %v2072 = vsel %vm2071, %v2067, inf
      %2073 = vmin.xlane.f32.xlu0 %v2072
      %v2074 = vpop.xlane.xlu0 %2073
      %v2075 = vcvt.f32.s32 %v2074
      %v2076 = vcvt.f32.s32 %v2070
      %v2077 = vshll.u32 %v2076, 16
      %v2078 = vadd.s32 %v2077, %v2075
      %v2079 = vsel %vm1710, %v2061, %v2056
      %v2080 = vsel %vm1710, %v2078, %v2057
      %v2081 = vadd.f32 %v2009, %v1716
      %v2082 = vsel %vm1616, %v2081, -inf
      %2083 = vmax.xlane.f32.xlu0 %v2082
      %v2084 = vpop.xlane.xlu0 %2083
      %vm2085 = vcmp.eq.f32.partialorder %v2081, %v2084
      %v2086 = vsel %vm2085, %v608, 5
      %v2087 = vsel %vm1616, %v2086, 2147483647
      %v2088 = vand.u32 %v2087, 65535
      %v2089 = vshra.s32 %v2087, 16
      %v2090 = vcvt.s32.f32 %v2088
      %v2091 = vcvt.s32.f32 %v2089
      %2092 = vmin.xlane.f32.xlu0 %v2091
      %v2093 = vpop.xlane.xlu0 %2092
      %vm2094 = vcmp.eq.f32.partialorder %v2091, %v2093
      %v2095 = vsel %vm2094, %v2090, inf
      %2096 = vmin.xlane.f32.xlu0 %v2095
      %v2097 = vpop.xlane.xlu0 %2096
      %v2098 = vcvt.f32.s32 %v2097
      %v2099 = vcvt.f32.s32 %v2093
      %v2100 = vshll.u32 %v2099, 16
      %v2101 = vadd.s32 %v2100, %v2098
      %v2102 = vsel %vm1626, %v2084, %v2079
      %v2103 = vsel %vm1626, %v2101, %v2080
      %v2104 = vadd.f32 %v2009, %v1743
      %v2105 = vsel %vm1616, %v2104, -inf
      %2106 = vmax.xlane.f32.xlu0 %v2105
      %v2107 = vpop.xlane.xlu0 %2106
      %vm2108 = vcmp.eq.f32.partialorder %v2104, %v2107
      %v2109 = vsel %vm2108, %v608, 5
      %v2110 = vsel %vm1616, %v2109, 2147483647
      %v2111 = vand.u32 %v2110, 65535
      %v2112 = vshra.s32 %v2110, 16
      %v2113 = vcvt.s32.f32 %v2111
      %v2114 = vcvt.s32.f32 %v2112
      %2115 = vmin.xlane.f32.xlu0 %v2114
      %v2116 = vpop.xlane.xlu0 %2115
      %vm2117 = vcmp.eq.f32.partialorder %v2114, %v2116
      %v2118 = vsel %vm2117, %v2113, inf
      %2119 = vmin.xlane.f32.xlu0 %v2118
      %v2120 = vpop.xlane.xlu0 %2119
      %v2121 = vcvt.f32.s32 %v2120
      %v2122 = vcvt.f32.s32 %v2116
      %v2123 = vshll.u32 %v2122, 16
      %v2124 = vadd.s32 %v2123, %v2121
      %v2125 = vsel %vm1765, %v2107, %v2102
      %v2126 = vsel %vm1765, %v2124, %v2103
      %s2127 = scalar_lea.vmem [#allocation5], 24
      %2128 = vst.msk [vmem:[%s2127] sm:$0xff] %vm1616, %v2126
      %v2129 = vadd.f32 %v2125, %v2011
      %s2130 = scalar_lea.vmem [#allocation4], 32
      %v2131 = vld [vmem:[%s2130] sm:$0xff]
      %v2132 = vadd.f32 %v2129, %v1632
      %v2133 = vsel %vm1616, %v2132, -inf
      %2134 = vmax.xlane.f32.xlu0 %v2133
      %v2135 = vpop.xlane.xlu0 %2134
      %vm2136 = vcmp.eq.f32.partialorder %v2132, %v2135
      %v2137 = vsel %vm2136, %v608, 5
      %v2138 = vsel %vm1616, %v2137, 2147483647
      %v2139 = vand.u32 %v2138, 65535
      %v2140 = vshra.s32 %v2138, 16
      %v2141 = vcvt.s32.f32 %v2139
      %v2142 = vcvt.s32.f32 %v2140
      %2143 = vmin.xlane.f32.xlu0 %v2142
      %v2144 = vpop.xlane.xlu0 %2143
      %vm2145 = vcmp.eq.f32.partialorder %v2142, %v2144
      %v2146 = vsel %vm2145, %v2141, inf
      %2147 = vmin.xlane.f32.xlu0 %v2146
      %v2148 = vpop.xlane.xlu0 %2147
      %v2149 = vcvt.f32.s32 %v2148
      %v2150 = vcvt.f32.s32 %v2144
      %v2151 = vshll.u32 %v2150, 16
      %v2152 = vadd.s32 %v2151, %v2149
      %v2153 = vsel %vm1654, %v2135, 0.0
      %v2154 = vsel %vm1654, %v2152, 0
      %v2155 = vadd.f32 %v2129, %v1660
      %v2156 = vsel %vm1616, %v2155, -inf
      %2157 = vmax.xlane.f32.xlu0 %v2156
      %v2158 = vpop.xlane.xlu0 %2157
      %vm2159 = vcmp.eq.f32.partialorder %v2155, %v2158
      %v2160 = vsel %vm2159, %v608, 5
      %v2161 = vsel %vm1616, %v2160, 2147483647
      %v2162 = vand.u32 %v2161, 65535
      %v2163 = vshra.s32 %v2161, 16
      %v2164 = vcvt.s32.f32 %v2162
      %v2165 = vcvt.s32.f32 %v2163
      %2166 = vmin.xlane.f32.xlu0 %v2165
      %v2167 = vpop.xlane.xlu0 %2166
      %vm2168 = vcmp.eq.f32.partialorder %v2165, %v2167
      %v2169 = vsel %vm2168, %v2164, inf
      %2170 = vmin.xlane.f32.xlu0 %v2169
      %v2171 = vpop.xlane.xlu0 %2170
      %v2172 = vcvt.f32.s32 %v2171
      %v2173 = vcvt.f32.s32 %v2167
      %v2174 = vshll.u32 %v2173, 16
      %v2175 = vadd.s32 %v2174, %v2172
      %v2176 = vsel %vm1682, %v2158, %v2153
      %v2177 = vsel %vm1682, %v2175, %v2154
      %v2178 = vadd.f32 %v2129, %v1688
      %v2179 = vsel %vm1616, %v2178, -inf
      %2180 = vmax.xlane.f32.xlu0 %v2179
      %v2181 = vpop.xlane.xlu0 %2180
      %vm2182 = vcmp.eq.f32.partialorder %v2178, %v2181
      %v2183 = vsel %vm2182, %v608, 5
      %v2184 = vsel %vm1616, %v2183, 2147483647
      %v2185 = vand.u32 %v2184, 65535
      %v2186 = vshra.s32 %v2184, 16
      %v2187 = vcvt.s32.f32 %v2185
      %v2188 = vcvt.s32.f32 %v2186
      %2189 = vmin.xlane.f32.xlu0 %v2188
      %v2190 = vpop.xlane.xlu0 %2189
      %vm2191 = vcmp.eq.f32.partialorder %v2188, %v2190
      %v2192 = vsel %vm2191, %v2187, inf
      %2193 = vmin.xlane.f32.xlu0 %v2192
      %v2194 = vpop.xlane.xlu0 %2193
      %v2195 = vcvt.f32.s32 %v2194
      %v2196 = vcvt.f32.s32 %v2190
      %v2197 = vshll.u32 %v2196, 16
      %v2198 = vadd.s32 %v2197, %v2195
      %v2199 = vsel %vm1710, %v2181, %v2176
      %v2200 = vsel %vm1710, %v2198, %v2177
      %v2201 = vadd.f32 %v2129, %v1716
      %v2202 = vsel %vm1616, %v2201, -inf
      %2203 = vmax.xlane.f32.xlu0 %v2202
      %v2204 = vpop.xlane.xlu0 %2203
      %vm2205 = vcmp.eq.f32.partialorder %v2201, %v2204
      %v2206 = vsel %vm2205, %v608, 5
      %v2207 = vsel %vm1616, %v2206, 2147483647
      %v2208 = vand.u32 %v2207, 65535
      %v2209 = vshra.s32 %v2207, 16
      %v2210 = vcvt.s32.f32 %v2208
      %v2211 = vcvt.s32.f32 %v2209
      %2212 = vmin.xlane.f32.xlu0 %v2211
      %v2213 = vpop.xlane.xlu0 %2212
      %vm2214 = vcmp.eq.f32.partialorder %v2211, %v2213
      %v2215 = vsel %vm2214, %v2210, inf
      %2216 = vmin.xlane.f32.xlu0 %v2215
      %v2217 = vpop.xlane.xlu0 %2216
      %v2218 = vcvt.f32.s32 %v2217
      %v2219 = vcvt.f32.s32 %v2213
      %v2220 = vshll.u32 %v2219, 16
      %v2221 = vadd.s32 %v2220, %v2218
      %v2222 = vsel %vm1626, %v2204, %v2199
      %v2223 = vsel %vm1626, %v2221, %v2200
      %v2224 = vadd.f32 %v2129, %v1743
      %v2225 = vsel %vm1616, %v2224, -inf
      %2226 = vmax.xlane.f32.xlu0 %v2225
      %v2227 = vpop.xlane.xlu0 %2226
      %vm2228 = vcmp.eq.f32.partialorder %v2224, %v2227
      %v2229 = vsel %vm2228, %v608, 5
      %v2230 = vsel %vm1616, %v2229, 2147483647
      %v2231 = vand.u32 %v2230, 65535
      %v2232 = vshra.s32 %v2230, 16
      %v2233 = vcvt.s32.f32 %v2231
      %v2234 = vcvt.s32.f32 %v2232
      %2235 = vmin.xlane.f32.xlu0 %v2234
      %v2236 = vpop.xlane.xlu0 %2235
      %vm2237 = vcmp.eq.f32.partialorder %v2234, %v2236
      %v2238 = vsel %vm2237, %v2233, inf
      %2239 = vmin.xlane.f32.xlu0 %v2238
      %v2240 = vpop.xlane.xlu0 %2239
      %v2241 = vcvt.f32.s32 %v2240
      %v2242 = vcvt.f32.s32 %v2236
      %v2243 = vshll.u32 %v2242, 16
      %v2244 = vadd.s32 %v2243, %v2241
      %v2245 = vsel %vm1765, %v2227, %v2222
      %v2246 = vsel %vm1765, %v2244, %v2223
      %s2247 = scalar_lea.vmem [#allocation5], 32
      %2248 = vst.msk [vmem:[%s2247] sm:$0xff] %vm1616, %v2246
      %v2249 = vadd.f32 %v2245, %v2131
      %s2250 = scalar_lea.vmem [#allocation4], 40
      %v2251 = vld [vmem:[%s2250] sm:$0xff]
      %v2252 = vadd.f32 %v2249, %v1632
      %v2253 = vsel %vm1616, %v2252, -inf
      %2254 = vmax.xlane.f32.xlu0 %v2253
      %v2255 = vpop.xlane.xlu0 %2254
      %vm2256 = vcmp.eq.f32.partialorder %v2252, %v2255
      %v2257 = vsel %vm2256, %v608, 5
      %v2258 = vsel %vm1616, %v2257, 2147483647
      %v2259 = vand.u32 %v2258, 65535
      %v2260 = vshra.s32 %v2258, 16
      %v2261 = vcvt.s32.f32 %v2259
      %v2262 = vcvt.s32.f32 %v2260
      %2263 = vmin.xlane.f32.xlu0 %v2262
      %v2264 = vpop.xlane.xlu0 %2263
      %vm2265 = vcmp.eq.f32.partialorder %v2262, %v2264
      %v2266 = vsel %vm2265, %v2261, inf
      %2267 = vmin.xlane.f32.xlu0 %v2266
      %v2268 = vpop.xlane.xlu0 %2267
      %v2269 = vcvt.f32.s32 %v2268
      %v2270 = vcvt.f32.s32 %v2264
      %v2271 = vshll.u32 %v2270, 16
      %v2272 = vadd.s32 %v2271, %v2269
      %v2273 = vsel %vm1654, %v2255, 0.0
      %v2274 = vsel %vm1654, %v2272, 0
      %v2275 = vadd.f32 %v2249, %v1660
      %v2276 = vsel %vm1616, %v2275, -inf
      %2277 = vmax.xlane.f32.xlu0 %v2276
      %v2278 = vpop.xlane.xlu0 %2277
      %vm2279 = vcmp.eq.f32.partialorder %v2275, %v2278
      %v2280 = vsel %vm2279, %v608, 5
      %v2281 = vsel %vm1616, %v2280, 2147483647
      %v2282 = vand.u32 %v2281, 65535
      %v2283 = vshra.s32 %v2281, 16
      %v2284 = vcvt.s32.f32 %v2282
      %v2285 = vcvt.s32.f32 %v2283
      %2286 = vmin.xlane.f32.xlu0 %v2285
      %v2287 = vpop.xlane.xlu0 %2286
      %vm2288 = vcmp.eq.f32.partialorder %v2285, %v2287
      %v2289 = vsel %vm2288, %v2284, inf
      %2290 = vmin.xlane.f32.xlu0 %v2289
      %v2291 = vpop.xlane.xlu0 %2290
      %v2292 = vcvt.f32.s32 %v2291
      %v2293 = vcvt.f32.s32 %v2287
      %v2294 = vshll.u32 %v2293, 16
      %v2295 = vadd.s32 %v2294, %v2292
      %v2296 = vsel %vm1682, %v2278, %v2273
      %v2297 = vsel %vm1682, %v2295, %v2274
      %v2298 = vadd.f32 %v2249, %v1688
      %v2299 = vsel %vm1616, %v2298, -inf
      %2300 = vmax.xlane.f32.xlu0 %v2299
      %v2301 = vpop.xlane.xlu0 %2300
      %vm2302 = vcmp.eq.f32.partialorder %v2298, %v2301
      %v2303 = vsel %vm2302, %v608, 5
      %v2304 = vsel %vm1616, %v2303, 2147483647
      %v2305 = vand.u32 %v2304, 65535
      %v2306 = vshra.s32 %v2304, 16
      %v2307 = vcvt.s32.f32 %v2305
      %v2308 = vcvt.s32.f32 %v2306
      %2309 = vmin.xlane.f32.xlu0 %v2308
      %v2310 = vpop.xlane.xlu0 %2309
      %vm2311 = vcmp.eq.f32.partialorder %v2308, %v2310
      %v2312 = vsel %vm2311, %v2307, inf
      %2313 = vmin.xlane.f32.xlu0 %v2312
      %v2314 = vpop.xlane.xlu0 %2313
      %v2315 = vcvt.f32.s32 %v2314
      %v2316 = vcvt.f32.s32 %v2310
      %v2317 = vshll.u32 %v2316, 16
      %v2318 = vadd.s32 %v2317, %v2315
      %v2319 = vsel %vm1710, %v2301, %v2296
      %v2320 = vsel %vm1710, %v2318, %v2297
      %v2321 = vadd.f32 %v2249, %v1716
      %v2322 = vsel %vm1616, %v2321, -inf
      %2323 = vmax.xlane.f32.xlu0 %v2322
      %v2324 = vpop.xlane.xlu0 %2323
      %vm2325 = vcmp.eq.f32.partialorder %v2321, %v2324
      %v2326 = vsel %vm2325, %v608, 5
      %v2327 = vsel %vm1616, %v2326, 2147483647
      %v2328 = vand.u32 %v2327, 65535
      %v2329 = vshra.s32 %v2327, 16
      %v2330 = vcvt.s32.f32 %v2328
      %v2331 = vcvt.s32.f32 %v2329
      %2332 = vmin.xlane.f32.xlu0 %v2331
      %v2333 = vpop.xlane.xlu0 %2332
      %vm2334 = vcmp.eq.f32.partialorder %v2331, %v2333
      %v2335 = vsel %vm2334, %v2330, inf
      %2336 = vmin.xlane.f32.xlu0 %v2335
      %v2337 = vpop.xlane.xlu0 %2336
      %v2338 = vcvt.f32.s32 %v2337
      %v2339 = vcvt.f32.s32 %v2333
      %v2340 = vshll.u32 %v2339, 16
      %v2341 = vadd.s32 %v2340, %v2338
      %v2342 = vsel %vm1626, %v2324, %v2319
      %v2343 = vsel %vm1626, %v2341, %v2320
      %v2344 = vadd.f32 %v2249, %v1743
      %v2345 = vsel %vm1616, %v2344, -inf
      %2346 = vmax.xlane.f32.xlu0 %v2345
      %v2347 = vpop.xlane.xlu0 %2346
      %vm2348 = vcmp.eq.f32.partialorder %v2344, %v2347
      %v2349 = vsel %vm2348, %v608, 5
      %v2350 = vsel %vm1616, %v2349, 2147483647
      %v2351 = vand.u32 %v2350, 65535
      %v2352 = vshra.s32 %v2350, 16
      %v2353 = vcvt.s32.f32 %v2351
      %v2354 = vcvt.s32.f32 %v2352
      %2355 = vmin.xlane.f32.xlu0 %v2354
      %v2356 = vpop.xlane.xlu0 %2355
      %vm2357 = vcmp.eq.f32.partialorder %v2354, %v2356
      %v2358 = vsel %vm2357, %v2353, inf
      %2359 = vmin.xlane.f32.xlu0 %v2358
      %v2360 = vpop.xlane.xlu0 %2359
      %v2361 = vcvt.f32.s32 %v2360
      %v2362 = vcvt.f32.s32 %v2356
      %v2363 = vshll.u32 %v2362, 16
      %v2364 = vadd.s32 %v2363, %v2361
      %v2365 = vsel %vm1765, %v2347, %v2342
      %v2366 = vsel %vm1765, %v2364, %v2343
      %s2367 = scalar_lea.vmem [#allocation5], 40
      %2368 = vst.msk [vmem:[%s2367] sm:$0xff] %vm1616, %v2366
      %v2369 = vadd.f32 %v2365, %v2251
      %s2370 = scalar_lea.vmem [#allocation4], 48
      %v2371 = vld [vmem:[%s2370] sm:$0xff]
      %v2372 = vadd.f32 %v2369, %v1632
      %v2373 = vsel %vm1616, %v2372, -inf
      %2374 = vmax.xlane.f32.xlu0 %v2373
      %v2375 = vpop.xlane.xlu0 %2374
      %vm2376 = vcmp.eq.f32.partialorder %v2372, %v2375
      %v2377 = vsel %vm2376, %v608, 5
      %v2378 = vsel %vm1616, %v2377, 2147483647
      %v2379 = vand.u32 %v2378, 65535
      %v2380 = vshra.s32 %v2378, 16
      %v2381 = vcvt.s32.f32 %v2379
      %v2382 = vcvt.s32.f32 %v2380
      %2383 = vmin.xlane.f32.xlu0 %v2382
      %v2384 = vpop.xlane.xlu0 %2383
      %vm2385 = vcmp.eq.f32.partialorder %v2382, %v2384
      %v2386 = vsel %vm2385, %v2381, inf
      %2387 = vmin.xlane.f32.xlu0 %v2386
      %v2388 = vpop.xlane.xlu0 %2387
      %v2389 = vcvt.f32.s32 %v2388
      %v2390 = vcvt.f32.s32 %v2384
      %v2391 = vshll.u32 %v2390, 16
      %v2392 = vadd.s32 %v2391, %v2389
      %v2393 = vsel %vm1654, %v2375, 0.0
      %v2394 = vsel %vm1654, %v2392, 0
      %v2395 = vadd.f32 %v2369, %v1660
      %v2396 = vsel %vm1616, %v2395, -inf
      %2397 = vmax.xlane.f32.xlu0 %v2396
      %v2398 = vpop.xlane.xlu0 %2397
      %vm2399 = vcmp.eq.f32.partialorder %v2395, %v2398
      %v2400 = vsel %vm2399, %v608, 5
      %v2401 = vsel %vm1616, %v2400, 2147483647
      %v2402 = vand.u32 %v2401, 65535
      %v2403 = vshra.s32 %v2401, 16
      %v2404 = vcvt.s32.f32 %v2402
      %v2405 = vcvt.s32.f32 %v2403
      %2406 = vmin.xlane.f32.xlu0 %v2405
      %v2407 = vpop.xlane.xlu0 %2406
      %vm2408 = vcmp.eq.f32.partialorder %v2405, %v2407
      %v2409 = vsel %vm2408, %v2404, inf
      %2410 = vmin.xlane.f32.xlu0 %v2409
      %v2411 = vpop.xlane.xlu0 %2410
      %v2412 = vcvt.f32.s32 %v2411
      %v2413 = vcvt.f32.s32 %v2407
      %v2414 = vshll.u32 %v2413, 16
      %v2415 = vadd.s32 %v2414, %v2412
      %v2416 = vsel %vm1682, %v2398, %v2393
      %v2417 = vsel %vm1682, %v2415, %v2394
      %v2418 = vadd.f32 %v2369, %v1688
      %v2419 = vsel %vm1616, %v2418, -inf
      %2420 = vmax.xlane.f32.xlu0 %v2419
      %v2421 = vpop.xlane.xlu0 %2420
      %vm2422 = vcmp.eq.f32.partialorder %v2418, %v2421
      %v2423 = vsel %vm2422, %v608, 5
      %v2424 = vsel %vm1616, %v2423, 2147483647
      %v2425 = vand.u32 %v2424, 65535
      %v2426 = vshra.s32 %v2424, 16
      %v2427 = vcvt.s32.f32 %v2425
      %v2428 = vcvt.s32.f32 %v2426
      %2429 = vmin.xlane.f32.xlu0 %v2428
      %v2430 = vpop.xlane.xlu0 %2429
      %vm2431 = vcmp.eq.f32.partialorder %v2428, %v2430
      %v2432 = vsel %vm2431, %v2427, inf
      %2433 = vmin.xlane.f32.xlu0 %v2432
      %v2434 = vpop.xlane.xlu0 %2433
      %v2435 = vcvt.f32.s32 %v2434
      %v2436 = vcvt.f32.s32 %v2430
      %v2437 = vshll.u32 %v2436, 16
      %v2438 = vadd.s32 %v2437, %v2435
      %v2439 = vsel %vm1710, %v2421, %v2416
      %v2440 = vsel %vm1710, %v2438, %v2417
      %v2441 = vadd.f32 %v2369, %v1716
      %v2442 = vsel %vm1616, %v2441, -inf
      %2443 = vmax.xlane.f32.xlu0 %v2442
      %v2444 = vpop.xlane.xlu0 %2443
      %vm2445 = vcmp.eq.f32.partialorder %v2441, %v2444
      %v2446 = vsel %vm2445, %v608, 5
      %v2447 = vsel %vm1616, %v2446, 2147483647
      %v2448 = vand.u32 %v2447, 65535
      %v2449 = vshra.s32 %v2447, 16
      %v2450 = vcvt.s32.f32 %v2448
      %v2451 = vcvt.s32.f32 %v2449
      %2452 = vmin.xlane.f32.xlu0 %v2451
      %v2453 = vpop.xlane.xlu0 %2452
      %vm2454 = vcmp.eq.f32.partialorder %v2451, %v2453
      %v2455 = vsel %vm2454, %v2450, inf
      %2456 = vmin.xlane.f32.xlu0 %v2455
      %v2457 = vpop.xlane.xlu0 %2456
      %v2458 = vcvt.f32.s32 %v2457
      %v2459 = vcvt.f32.s32 %v2453
      %v2460 = vshll.u32 %v2459, 16
      %v2461 = vadd.s32 %v2460, %v2458
      %v2462 = vsel %vm1626, %v2444, %v2439
      %v2463 = vsel %vm1626, %v2461, %v2440
      %v2464 = vadd.f32 %v2369, %v1743
      %v2465 = vsel %vm1616, %v2464, -inf
      %2466 = vmax.xlane.f32.xlu0 %v2465
      %v2467 = vpop.xlane.xlu0 %2466
      %vm2468 = vcmp.eq.f32.partialorder %v2464, %v2467
      %v2469 = vsel %vm2468, %v608, 5
      %v2470 = vsel %vm1616, %v2469, 2147483647
      %v2471 = vand.u32 %v2470, 65535
      %v2472 = vshra.s32 %v2470, 16
      %v2473 = vcvt.s32.f32 %v2471
      %v2474 = vcvt.s32.f32 %v2472
      %2475 = vmin.xlane.f32.xlu0 %v2474
      %v2476 = vpop.xlane.xlu0 %2475
      %vm2477 = vcmp.eq.f32.partialorder %v2474, %v2476
      %v2478 = vsel %vm2477, %v2473, inf
      %2479 = vmin.xlane.f32.xlu0 %v2478
      %v2480 = vpop.xlane.xlu0 %2479
      %v2481 = vcvt.f32.s32 %v2480
      %v2482 = vcvt.f32.s32 %v2476
      %v2483 = vshll.u32 %v2482, 16
      %v2484 = vadd.s32 %v2483, %v2481
      %v2485 = vsel %vm1765, %v2467, %v2462
      %v2486 = vsel %vm1765, %v2484, %v2463
      %s2487 = scalar_lea.vmem [#allocation5], 48
      %2488 = vst.msk [vmem:[%s2487] sm:$0xff] %vm1616, %v2486
      %v2489 = vadd.f32 %v2485, %v2371
      %s2490 = scalar_lea.vmem [#allocation4], 56
      %v2491 = vld [vmem:[%s2490] sm:$0xff]
      %v2492 = vadd.f32 %v2489, %v1632
      %v2493 = vsel %vm1616, %v2492, -inf
      %2494 = vmax.xlane.f32.xlu0 %v2493
      %v2495 = vpop.xlane.xlu0 %2494
      %vm2496 = vcmp.eq.f32.partialorder %v2492, %v2495
      %v2497 = vsel %vm2496, %v608, 5
      %v2498 = vsel %vm1616, %v2497, 2147483647
      %v2499 = vand.u32 %v2498, 65535
      %v2500 = vshra.s32 %v2498, 16
      %v2501 = vcvt.s32.f32 %v2499
      %v2502 = vcvt.s32.f32 %v2500
      %2503 = vmin.xlane.f32.xlu0 %v2502
      %v2504 = vpop.xlane.xlu0 %2503
      %vm2505 = vcmp.eq.f32.partialorder %v2502, %v2504
      %v2506 = vsel %vm2505, %v2501, inf
      %2507 = vmin.xlane.f32.xlu0 %v2506
      %v2508 = vpop.xlane.xlu0 %2507
      %v2509 = vcvt.f32.s32 %v2508
      %v2510 = vcvt.f32.s32 %v2504
      %v2511 = vshll.u32 %v2510, 16
      %v2512 = vadd.s32 %v2511, %v2509
      %v2513 = vsel %vm1654, %v2495, 0.0
      %v2514 = vsel %vm1654, %v2512, 0
      %v2515 = vadd.f32 %v2489, %v1660
      %v2516 = vsel %vm1616, %v2515, -inf
      %2517 = vmax.xlane.f32.xlu0 %v2516
      %v2518 = vpop.xlane.xlu0 %2517
      %vm2519 = vcmp.eq.f32.partialorder %v2515, %v2518
      %v2520 = vsel %vm2519, %v608, 5
      %v2521 = vsel %vm1616, %v2520, 2147483647
      %v2522 = vand.u32 %v2521, 65535
      %v2523 = vshra.s32 %v2521, 16
      %v2524 = vcvt.s32.f32 %v2522
      %v2525 = vcvt.s32.f32 %v2523
      %2526 = vmin.xlane.f32.xlu0 %v2525
      %v2527 = vpop.xlane.xlu0 %2526
      %vm2528 = vcmp.eq.f32.partialorder %v2525, %v2527
      %v2529 = vsel %vm2528, %v2524, inf
      %2530 = vmin.xlane.f32.xlu0 %v2529
      %v2531 = vpop.xlane.xlu0 %2530
      %v2532 = vcvt.f32.s32 %v2531
      %v2533 = vcvt.f32.s32 %v2527
      %v2534 = vshll.u32 %v2533, 16
      %v2535 = vadd.s32 %v2534, %v2532
      %v2536 = vsel %vm1682, %v2518, %v2513
      %v2537 = vsel %vm1682, %v2535, %v2514
      %v2538 = vadd.f32 %v2489, %v1688
      %v2539 = vsel %vm1616, %v2538, -inf
      %2540 = vmax.xlane.f32.xlu0 %v2539
      %v2541 = vpop.xlane.xlu0 %2540
      %vm2542 = vcmp.eq.f32.partialorder %v2538, %v2541
      %v2543 = vsel %vm2542, %v608, 5
      %v2544 = vsel %vm1616, %v2543, 2147483647
      %v2545 = vand.u32 %v2544, 65535
      %v2546 = vshra.s32 %v2544, 16
      %v2547 = vcvt.s32.f32 %v2545
      %v2548 = vcvt.s32.f32 %v2546
      %2549 = vmin.xlane.f32.xlu0 %v2548
      %v2550 = vpop.xlane.xlu0 %2549
      %vm2551 = vcmp.eq.f32.partialorder %v2548, %v2550
      %v2552 = vsel %vm2551, %v2547, inf
      %2553 = vmin.xlane.f32.xlu0 %v2552
      %v2554 = vpop.xlane.xlu0 %2553
      %v2555 = vcvt.f32.s32 %v2554
      %v2556 = vcvt.f32.s32 %v2550
      %v2557 = vshll.u32 %v2556, 16
      %v2558 = vadd.s32 %v2557, %v2555
      %v2559 = vsel %vm1710, %v2541, %v2536
      %v2560 = vsel %vm1710, %v2558, %v2537
      %v2561 = vadd.f32 %v2489, %v1716
      %v2562 = vsel %vm1616, %v2561, -inf
      %2563 = vmax.xlane.f32.xlu0 %v2562
      %v2564 = vpop.xlane.xlu0 %2563
      %vm2565 = vcmp.eq.f32.partialorder %v2561, %v2564
      %v2566 = vsel %vm2565, %v608, 5
      %v2567 = vsel %vm1616, %v2566, 2147483647
      %v2568 = vand.u32 %v2567, 65535
      %v2569 = vshra.s32 %v2567, 16
      %v2570 = vcvt.s32.f32 %v2568
      %v2571 = vcvt.s32.f32 %v2569
      %2572 = vmin.xlane.f32.xlu0 %v2571
      %v2573 = vpop.xlane.xlu0 %2572
      %vm2574 = vcmp.eq.f32.partialorder %v2571, %v2573
      %v2575 = vsel %vm2574, %v2570, inf
      %2576 = vmin.xlane.f32.xlu0 %v2575
      %v2577 = vpop.xlane.xlu0 %2576
      %v2578 = vcvt.f32.s32 %v2577
      %v2579 = vcvt.f32.s32 %v2573
      %v2580 = vshll.u32 %v2579, 16
      %v2581 = vadd.s32 %v2580, %v2578
      %v2582 = vsel %vm1626, %v2564, %v2559
      %v2583 = vsel %vm1626, %v2581, %v2560
      %v2584 = vadd.f32 %v2489, %v1743
      %v2585 = vsel %vm1616, %v2584, -inf
      %2586 = vmax.xlane.f32.xlu0 %v2585
      %v2587 = vpop.xlane.xlu0 %2586
      %vm2588 = vcmp.eq.f32.partialorder %v2584, %v2587
      %v2589 = vsel %vm2588, %v608, 5
      %v2590 = vsel %vm1616, %v2589, 2147483647
      %v2591 = vand.u32 %v2590, 65535
      %v2592 = vshra.s32 %v2590, 16
      %v2593 = vcvt.s32.f32 %v2591
      %v2594 = vcvt.s32.f32 %v2592
      %2595 = vmin.xlane.f32.xlu0 %v2594
      %v2596 = vpop.xlane.xlu0 %2595
      %vm2597 = vcmp.eq.f32.partialorder %v2594, %v2596
      %v2598 = vsel %vm2597, %v2593, inf
      %2599 = vmin.xlane.f32.xlu0 %v2598
      %v2600 = vpop.xlane.xlu0 %2599
      %v2601 = vcvt.f32.s32 %v2600
      %v2602 = vcvt.f32.s32 %v2596
      %v2603 = vshll.u32 %v2602, 16
      %v2604 = vadd.s32 %v2603, %v2601
      %v2605 = vsel %vm1765, %v2587, %v2582
      %v2606 = vsel %vm1765, %v2604, %v2583
      %s2607 = scalar_lea.vmem [#allocation5], 56
      %2608 = vst.msk [vmem:[%s2607] sm:$0xff] %vm1616, %v2606
      %v2609 = vadd.f32 %v2605, %v2491
      %v2610 = vadd.f32 %v2609, %v1743
      %v2611 = vsel %vm1616, %v2610, -inf
      %2612 = vmax.xlane.f32.xlu0 %v2611
      %v2613 = vpop.xlane.xlu0 %2612
      %vm2614 = vcmask 7168
      %2615 = vst.msk [vmem:[%s437] sm:$0xff] %vm2614, %v2613
      %vm2616 = vcmp.eq.f32.partialorder %v2610, %v2613
      %v2617 = vsel %vm2616, %v608, 5
      %v2618 = vsel %vm1616, %v2617, 2147483647
      %v2619 = vand.u32 %v2618, 65535
      %v2620 = vshra.s32 %v2618, 16
      %v2621 = vcvt.s32.f32 %v2619
      %v2622 = vcvt.s32.f32 %v2620
      %2623 = vmin.xlane.f32.xlu0 %v2622
      %v2624 = vpop.xlane.xlu0 %2623
      %vm2625 = vcmp.eq.f32.partialorder %v2622, %v2624
      %v2626 = vsel %vm2625, %v2621, inf
      %2627 = vmin.xlane.f32.xlu0 %v2626
      %v2628 = vpop.xlane.xlu0 %2627
      %v2629 = vcvt.f32.s32 %v2628
      %v2630 = vcvt.f32.s32 %v2624
      %v2631 = vshll.u32 %v2630, 16
      %v2632 = vadd.s32 %v2631, %v2629
      %vm2633 = vcmp.eq.s32.totalorder %v608, 7
      %v2634 = vsel %vm2633, %v2632, 0
      %v2635 = vld [vmem:[%s2607] sm:$0xff]
      %vm2636 = vcmp.eq.s32.totalorder %v608, %v2632
      %v2637 = vsel %vm2636, %v2635, 0
      %v2638 = vsel %vm1616, %v2637, 0
      %v2639 = vand.u32 %v2638, 65535
      %v2640 = vshrl.u32 %v2638, 16
      %v2641 = vcvt.s32.f32 %v2639
      %v2642 = vcvt.s32.f32 %v2640
      %2643 = vadd.xlane.f32.xlu0 %v2641
      %v2644 = vpop.xlane.xlu0 %2643
      %2645 = vadd.xlane.f32.xlu0 %v2642
      %v2646 = vpop.xlane.xlu0 %2645
      %v2647 = vcvt.f32.s32 %v2644
      %v2648 = vcvt.f32.s32 %v2646
      %v2649 = vshll.u32 %v2648, 16
      %v2650 = vadd.s32 %v2649, %v2647
      %vm2651 = vcmp.eq.s32.totalorder %v608, 6
      %v2652 = vsel %vm2651, %v2650, %v2634
      %v2653 = vld [vmem:[%s2487] sm:$0xff]
      %vm2654 = vcmp.eq.s32.totalorder %v608, %v2650
      %v2655 = vsel %vm2654, %v2653, 0
      %v2656 = vsel %vm1616, %v2655, 0
      %v2657 = vand.u32 %v2656, 65535
      %v2658 = vshrl.u32 %v2656, 16
      %v2659 = vcvt.s32.f32 %v2657
      %v2660 = vcvt.s32.f32 %v2658
      %2661 = vadd.xlane.f32.xlu0 %v2659
      %v2662 = vpop.xlane.xlu0 %2661
      %2663 = vadd.xlane.f32.xlu0 %v2660
      %v2664 = vpop.xlane.xlu0 %2663
      %v2665 = vcvt.f32.s32 %v2662
      %v2666 = vcvt.f32.s32 %v2664
      %v2667 = vshll.u32 %v2666, 16
      %v2668 = vadd.s32 %v2667, %v2665
      %vm2669 = vcmp.eq.s32.totalorder %v608, 5
      %v2670 = vsel %vm2669, %v2668, %v2652
      %v2671 = vld [vmem:[%s2367] sm:$0xff]
      %vm2672 = vcmp.eq.s32.totalorder %v608, %v2668
      %v2673 = vsel %vm2672, %v2671, 0
      %v2674 = vsel %vm1616, %v2673, 0
      %v2675 = vand.u32 %v2674, 65535
      %v2676 = vshrl.u32 %v2674, 16
      %v2677 = vcvt.s32.f32 %v2675
      %v2678 = vcvt.s32.f32 %v2676
      %2679 = vadd.xlane.f32.xlu0 %v2677
      %v2680 = vpop.xlane.xlu0 %2679
      %2681 = vadd.xlane.f32.xlu0 %v2678
      %v2682 = vpop.xlane.xlu0 %2681
      %v2683 = vcvt.f32.s32 %v2680
      %v2684 = vcvt.f32.s32 %v2682
      %v2685 = vshll.u32 %v2684, 16
      %v2686 = vadd.s32 %v2685, %v2683
      %v2687 = vsel %vm1765, %v2686, %v2670
      %v2688 = vld [vmem:[%s2247] sm:$0xff]
      %vm2689 = vcmp.eq.s32.totalorder %v608, %v2686
      %v2690 = vsel %vm2689, %v2688, 0
      %v2691 = vsel %vm1616, %v2690, 0
      %v2692 = vand.u32 %v2691, 65535
      %v2693 = vshrl.u32 %v2691, 16
      %v2694 = vcvt.s32.f32 %v2692
      %v2695 = vcvt.s32.f32 %v2693
      %2696 = vadd.xlane.f32.xlu0 %v2694
      %v2697 = vpop.xlane.xlu0 %2696
      %2698 = vadd.xlane.f32.xlu0 %v2695
      %v2699 = vpop.xlane.xlu0 %2698
      %v2700 = vcvt.f32.s32 %v2697
      %v2701 = vcvt.f32.s32 %v2699
      %v2702 = vshll.u32 %v2701, 16
      %v2703 = vadd.s32 %v2702, %v2700
      %v2704 = vsel %vm1626, %v2703, %v2687
      %v2705 = vld [vmem:[%s2127] sm:$0xff]
      %vm2706 = vcmp.eq.s32.totalorder %v608, %v2703
      %v2707 = vsel %vm2706, %v2705, 0
      %v2708 = vsel %vm1616, %v2707, 0
      %v2709 = vand.u32 %v2708, 65535
      %v2710 = vshrl.u32 %v2708, 16
      %v2711 = vcvt.s32.f32 %v2709
      %v2712 = vcvt.s32.f32 %v2710
      %2713 = vadd.xlane.f32.xlu0 %v2711
      %v2714 = vpop.xlane.xlu0 %2713
      %2715 = vadd.xlane.f32.xlu0 %v2712
      %v2716 = vpop.xlane.xlu0 %2715
      %v2717 = vcvt.f32.s32 %v2714
      %v2718 = vcvt.f32.s32 %v2716
      %v2719 = vshll.u32 %v2718, 16
      %v2720 = vadd.s32 %v2719, %v2717
      %v2721 = vsel %vm1710, %v2720, %v2704
      %v2722 = vld [vmem:[%s2007] sm:$0xff]
      %vm2723 = vcmp.eq.s32.totalorder %v608, %v2720
      %v2724 = vsel %vm2723, %v2722, 0
      %v2725 = vsel %vm1616, %v2724, 0
      %v2726 = vand.u32 %v2725, 65535
      %v2727 = vshrl.u32 %v2725, 16
      %v2728 = vcvt.s32.f32 %v2726
      %v2729 = vcvt.s32.f32 %v2727
      %2730 = vadd.xlane.f32.xlu0 %v2728
      %v2731 = vpop.xlane.xlu0 %2730
      %2732 = vadd.xlane.f32.xlu0 %v2729
      %v2733 = vpop.xlane.xlu0 %2732
      %v2734 = vcvt.f32.s32 %v2731
      %v2735 = vcvt.f32.s32 %v2733
      %v2736 = vshll.u32 %v2735, 16
      %v2737 = vadd.s32 %v2736, %v2734
      %v2738 = vsel %vm1682, %v2737, %v2721
      %v2739 = vld [vmem:[%s1887] sm:$0xff]
      %vm2740 = vcmp.eq.s32.totalorder %v608, %v2737
      %v2741 = vsel %vm2740, %v2739, 0
      %v2742 = vsel %vm1616, %v2741, 0
      %v2743 = vand.u32 %v2742, 65535
      %v2744 = vshrl.u32 %v2742, 16
      %v2745 = vcvt.s32.f32 %v2743
      %v2746 = vcvt.s32.f32 %v2744
      %2747 = vadd.xlane.f32.xlu0 %v2745
      %v2748 = vpop.xlane.xlu0 %2747
      %2749 = vadd.xlane.f32.xlu0 %v2746
      %v2750 = vpop.xlane.xlu0 %2749
      %v2751 = vcvt.f32.s32 %v2748
      %v2752 = vcvt.f32.s32 %v2750
      %v2753 = vshll.u32 %v2752, 16
      %v2754 = vadd.s32 %v2753, %v2751
      %v2755 = vsel %vm1654, %v2754, %v2738
      %vm2756 = vcmask 64512
      %2757 = vst.msk [vmem:[%s433] sm:$0xff] %vm2756, %v2755
      %v2758 = vld [vmem:[#allocation5] sm:$0xff]
      %vm2759 = vcmp.eq.s32.totalorder %v608, %v2754
      %v2760 = vsel %vm2759, %v2758, 0
      %v2761 = vsel %vm1616, %v2760, 0
      %v2762 = vand.u32 %v2761, 65535
      %v2763 = vshrl.u32 %v2761, 16
      %v2764 = vcvt.s32.f32 %v2762
      %v2765 = vcvt.s32.f32 %v2763
      %2766 = vadd.xlane.f32.xlu0 %v2764
      %v2767 = vpop.xlane.xlu0 %2766
      %2768 = vadd.xlane.f32.xlu0 %v2765
      %v2769 = vpop.xlane.xlu0 %2768
      %v2770 = vcvt.f32.s32 %v2767
      %v2771 = vcvt.f32.s32 %v2769
      %v2772 = vshll.u32 %v2771, 16
      %v2773 = vadd.s32 %v2772, %v2770
      %2774 = vst.msk [vmem:[%s441] sm:$0xff] %vm2614, %v2773
      %p2775 = scmp.lt.s32.totalorder %s23, 1
      %s2776 = scalar_select %p2775, %s23, 1
      %s2777 = smul.addr %s2776, 8
      %s2778 = scalar_lea.vmem %s9, %s2777
      %p2779 = scmp.lt.s32.totalorder %s23, 1
      %s2780 = scalar_select %p2779, %s23, 1
      %s2781 = smul.addr %s2780, 8
      %s2782 = scalar_lea.vmem %s10, %s2781
      %p2783 = scmp.lt.s32.totalorder %s23, 1
      %s2784 = scalar_select %p2783, %s23, 1
      %s2785 = smul.addr %s2784, 8
      %s2786 = scalar_lea.vmem %s11, %s2785
      // Predicated region
      $region57: #{tpu_custom_call.1} parent=55 // pred_check
        %p2787 = pneg %p245
      $region58: #{tpu_custom_call.1} parent=55 // pred_check_branch
        %2789 = sbr.rel (%p2787) target = $region60
      $region59: #{tpu_custom_call.1} parent=55 // pred_region
        _
      $region60: #{tpu_custom_call.1} parent=55 // pred_fallthru
        _
      // Predicated region
      $region61: #{tpu_custom_call.1} parent=55 // pred_check
        %p2790 = pneg %p271
      $region62: #{tpu_custom_call.1} parent=55 // pred_check_branch
        %2792 = sbr.rel (%p2790) target = $region64
      $region63: #{tpu_custom_call.1} parent=55 // pred_region
        _
      $region64: #{tpu_custom_call.1} parent=55 // pred_fallthru
        _
      // Predicated region
      $region65: #{tpu_custom_call.1} parent=55 // pred_check
        %p2793 = pneg %p297
      $region66: #{tpu_custom_call.1} parent=55 // pred_check_branch
        %2795 = sbr.rel (%p2793) target = $region68
      $region67: #{tpu_custom_call.1} parent=55 // pred_region
        _
      $region68: #{tpu_custom_call.1} parent=55 // pred_fallthru
        _
    $region56: #{tpu_custom_call.1} parent=5 // pred_fallthru
      _
    %p2796 = scmp.le.s32.totalorder 2, %s18
    // Predicated region
    $region69: #{tpu_custom_call.1} parent=5 // pred_check
      %p2797 = pneg %p2796
    $region70: #{tpu_custom_call.1} parent=5 // pred_check_branch
      %2799 = sbr.rel (%p2797) target = $region72
    $region71: #{tpu_custom_call.1} parent=5 // pred_region
      %s2800 = ssub.s32 %s18, 2
      // Predicated region
      $region73: #{tpu_custom_call.1} parent=71 // pred_check
        %p2801 = pneg %p251
      $region74: #{tpu_custom_call.1} parent=71 // pred_check_branch
        %2803 = sbr.rel (%p2801) target = $region76
      $region75: #{tpu_custom_call.1} parent=71 // pred_region
        %p2804 = scmp.lt.s32.totalorder %s24, 1
        %s2805 = scalar_select %p2804, %s24, 1
        %s2806 = smul.addr %s2805, 8
        %s2807 = scalar_lea.vmem %s9, %s2806
      $region76: #{tpu_custom_call.1} parent=71 // pred_fallthru
        _
      // Predicated region
      $region77: #{tpu_custom_call.1} parent=71 // pred_check
        %p2808 = pneg %p277
      $region78: #{tpu_custom_call.1} parent=71 // pred_check_branch
        %2810 = sbr.rel (%p2808) target = $region80
      $region79: #{tpu_custom_call.1} parent=71 // pred_region
        %p2811 = scmp.lt.s32.totalorder %s24, 1
        %s2812 = scalar_select %p2811, %s24, 1
        %s2813 = smul.addr %s2812, 8
        %s2814 = scalar_lea.vmem %s10, %s2813
      $region80: #{tpu_custom_call.1} parent=71 // pred_fallthru
        _
      // Predicated region
      $region81: #{tpu_custom_call.1} parent=71 // pred_check
        %p2815 = pneg %p303
      $region82: #{tpu_custom_call.1} parent=71 // pred_check_branch
        %2817 = sbr.rel (%p2815) target = $region84
      $region83: #{tpu_custom_call.1} parent=71 // pred_region
        %p2818 = scmp.lt.s32.totalorder %s24, 1
        %s2819 = scalar_select %p2818, %s24, 1
        %s2820 = smul.addr %s2819, 8
        %s2821 = scalar_lea.vmem %s11, %s2820
      $region84: #{tpu_custom_call.1} parent=71 // pred_fallthru
        _
    $region72: #{tpu_custom_call.1} parent=5 // pred_fallthru
      _
  $region6: #{tpu_custom_call.1} parent=0 // loop_footer
    %s22 = sadd.s32 1, %s18
  $region7: #{tpu_custom_call.1} parent=0 // loop_footer_branch
    %17 = sbr.rel target = $region3
  $region8: #{tpu_custom_call.1} parent=0 // loop_exit
    _

</llo_original>
